<compile_context>
chip_gen: v7x
topology: tpu7x:2x2x1
jax: 0.10.0
libtpu: 0.0.40
codegen_flags: <defaults>
</compile_context>

<pallas_src>
import jax
import jax.numpy as jnp
from jax.experimental import pallas as pl
from jax.experimental.pallas import tpu as pltpu


def _round_up(n, m):
    return ((n + m - 1) // m) * m


# ----------------------------------------------------------------------------
# Pallas kernel: fused 7-layer MLP forward for one batch tile.
# ----------------------------------------------------------------------------
def _mlp_kernel(x_ref,
                w1_ref, b1_ref, w2_ref, b2_ref, w3_ref, b3_ref, w4_ref, b4_ref,
                w5_ref, b5_ref, w6_ref, b6_ref, w7_ref, b7_ref,
                out_ref):
    def linear(h, w_ref, b_ref, relu):
        # bf16 operands -> MXU native rate; f32 accumulation.  The epilogue
        # (bias-add / ReLU) runs in the bias dtype: bf16 on v6e/v7x, f32 on v5e.
        y = jnp.dot(h.astype(jnp.bfloat16), w_ref[...],
                    preferred_element_type=jnp.float32)
        y = y.astype(b_ref.dtype) + b_ref[...]            # (1, out) broadcasts over rows
        return jnp.maximum(y, 0) if relu else y

    h = x_ref[...]                                        # (TB, C_in) bf16
    # features
    h = linear(h, w1_ref, b1_ref, True)                   # (TB, 64)
    h = linear(h, w2_ref, b2_ref, True)                   # (TB, 128)
    h = linear(h, w3_ref, b3_ref, True)                   # (TB, 256)
    h = linear(h, w4_ref, b4_ref, True)                   # (TB, 512)
    # classifier
    h = linear(h, w5_ref, b5_ref, True)                   # (TB, 256)
    h = linear(h, w6_ref, b6_ref, True)                   # (TB, 128)
    # final layer: no ReLU, f32 bias/epilogue, lane-dense padded output (TB, 128)
    y = linear(h, w7_ref, b7_ref, False)
    out_ref[...] = y.astype(out_ref.dtype)


# ----------------------------------------------------------------------------
# One-time parameter preparation (do NOT do this per forward call).
# ----------------------------------------------------------------------------
def prepare_params(params, *, bf16_epilogue=True):
    """params: list of (w, b) with w stored (in_dim, out_dim).

    Returns (flat_params, num_classes, ncls_pad):
      * weights cast to bf16 (MXU operand dtype),
      * final layer zero-padded to a multiple of 128 output columns (lane-dense store),
      * biases reshaped to (1, out); intermediate biases in the epilogue dtype
        (bf16 on v6e/v7x, f32 on v5e), final bias kept f32.
    """
    num_classes = params[-1][0].shape[1]
    ncls_pad = _round_up(num_classes, 128)
    epi_dtype = jnp.bfloat16 if bf16_epilogue else jnp.float32
    n_layers = len(params)

    flat = []
    for li, (w, b) in enumerate(params):
        last = li == n_layers - 1
        if last and ncls_pad != num_classes:
            w = jnp.pad(w, ((0, 0), (0, ncls_pad - num_classes)))
            b = jnp.pad(b, ((0, ncls_pad - num_classes),))
        w = w.astype(jnp.bfloat16)
        b = b.reshape(1, -1).astype(jnp.float32 if last else epi_dtype)
        flat += [w, b]
    return tuple(flat), num_classes, ncls_pad


# ----------------------------------------------------------------------------
# Tiling choice: multiple of 16, >= 2 grid steps when the batch allows (v7x megacore).
# ----------------------------------------------------------------------------
def _choose_tiling(B, batch_tile):
    b16 = _round_up(B, 16)
    tile = max(16, min((batch_tile // 16) * 16, b16))
    bp = _round_up(b16, tile)
    if bp // tile == 1 and bp >= 32:
        # Split a single-step grid so both v7x TensorCores get work.
        tile = _round_up((bp + 1) // 2, 16)
        bp = 2 * tile
    return tile, bp


# ----------------------------------------------------------------------------
# Wrapper
# ----------------------------------------------------------------------------
def alexnet_eeg_forward(x, prepared, *, batch_tile=512):
    """x: (B, input_channels) float32 (or bf16).  prepared: output of prepare_params."""
    flat_params, num_classes, ncls_pad = prepared
    B, C_in = x.shape

    tile, Bp = _choose_tiling(B, batch_tile)
    x = x.astype(jnp.bfloat16)                            # halves input DMA
    if Bp != B:
        # Padded rows are independent (row-wise MLP) and sliced off below.
        x = jnp.pad(x, ((0, Bp - B), (0, 0)))

    out_spec = pl.BlockSpec((tile, ncls_pad), lambda i: (i, 0))

    def build_in_specs(weight_pipeline_mode):
        specs = [pl.BlockSpec((tile, C_in), lambda i: (i, 0))]
        for p in flat_params:
            # Constant index_map -> DMA'd once, stays resident across grid steps.
            if weight_pipeline_mode is None:
                specs.append(pl.BlockSpec(p.shape, lambda i: (0, 0)))
            else:
                specs.append(pl.BlockSpec(p.shape, lambda i: (0, 0),
                                          pipeline_mode=weight_pipeline_mode))
        return specs

    def run(in_specs):
        return pl.pallas_call(
            _mlp_kernel,
            out_shape=jax.ShapeDtypeStruct((Bp, ncls_pad), jnp.float32),
            grid_spec=pltpu.PrefetchScalarGridSpec(
                num_scalar_prefetch=0,
                grid=(Bp // tile,),
                in_specs=in_specs,
                out_specs=out_spec,
            ),
            compiler_params=pltpu.CompilerParams(
                dimension_semantics=("parallel",)),
        )(x, *flat_params)

    try:
        # Single-buffer the resident weight/bias operands (saves ~0.7 MiB VMEM).
        out = run(build_in_specs(pl.Buffered(1)))
    except Exception:
        # Fallback for JAX versions that reject Buffered(1) on TPU BlockSpecs.
        out = run(build_in_specs(None))

    return out[:B, :num_classes]


# ----------------------------------------------------------------------------
# Deterministic init (matches nn.init.normal_(w, 0, 0.01), bias=0).
# ----------------------------------------------------------------------------
def init_params(key, num_classes=4, input_channels=16):
    dims = [input_channels, 64, 128, 256, 512, 256, 128, num_classes]
    params = []
    for i in range(len(dims) - 1):
        key, sub = jax.random.split(key)
        # PyTorch weight is (out, in); we store transposed (in, out) for the kernel.
        w = 0.01 * jax.random.normal(sub, (dims[i], dims[i + 1]), dtype=jnp.float32)
        b = jnp.zeros((dims[i + 1],), dtype=jnp.float32)
        params.append((w, b))
    return params


# Pure-JAX references.
def reference_forward(x, params, *, mimic_kernel=False, bf16_epilogue=True):
    n = len(params)
    if not mimic_kernel:
        # PyTorch f32 nn.Linear semantics.
        h = x
        for i, (w, b) in enumerate(params):
            y = h @ w + b
            h = jnp.maximum(y, 0.0) if i < n - 1 else y
        return h
    # Same arithmetic as the kernel (bf16 MXU operands, f32 accumulation, chosen epilogue).
    epi = jnp.bfloat16 if bf16_epilogue else jnp.float32
    h = x.astype(jnp.bfloat16)
    for i, (w, b) in enumerate(params):
        last = i == n - 1
        dt = jnp.float32 if last else epi
        y = jnp.dot(h.astype(jnp.bfloat16), w.astype(jnp.bfloat16),
                    preferred_element_type=jnp.float32)
        y = y.astype(dt) + b.astype(dt)
        h = y if last else jnp.maximum(y, 0)
    return h.astype(jnp.float32)


def _rel_err(a, b):
    return float(jnp.max(jnp.abs(a - b)) / (jnp.max(jnp.abs(b)) + 1e-12))


if __name__ == "__main__":
    key = jax.random.PRNGKey(0)
    kx, kp = jax.random.split(key)

    B, C_IN, NUM_CLASSES = 8, 16, 4
    x = jax.random.normal(kx, (B, C_IN), dtype=jnp.float32)
    params = init_params(kp, num_classes=NUM_CLASSES, input_channels=C_IN)

    # bf16-epilogue path (v6e / v7x default).
    prepared_bf16 = prepare_params(params, bf16_epilogue=True)
    out = jax.block_until_ready(alexnet_eeg_forward(x, prepared_bf16))
    assert out.shape == (B, NUM_CLASSES)

    ref_mimic = reference_forward(x, params, mimic_kernel=True, bf16_epilogue=True)
    ref_f32 = reference_forward(x, params)
    assert _rel_err(out, ref_mimic) < 1e-2, "mismatch vs kernel-arithmetic reference"
    # NOTE: bf16 MXU operands deviate from PyTorch f32 nn.Linear; loose bound by design.
    assert _rel_err(out, ref_f32) < 0.25, "mismatch vs f32 (PyTorch-semantics) reference"

    # f32-epilogue path (v5e), multi-step grid, batch padding (B not divisible by tile).
    x2 = jax.random.normal(jax.random.PRNGKey(1), (200, C_IN), dtype=jnp.float32)
    prepared_f32 = prepare_params(params, bf16_epilogue=False)
    out2 = jax.block_until_ready(alexnet_eeg_forward(x2, prepared_f32, batch_tile=64))
    assert out2.shape == (200, NUM_CLASSES)
    ref2 = reference_forward(x2, params, mimic_kernel=True, bf16_epilogue=False)
    assert _rel_err(out2, ref2) < 1e-2, "mismatch on multi-step / f32-epilogue path"

    # Default large-tile path: exercises the >=2-step split for v7x megacore.
    out3 = jax.block_until_ready(alexnet_eeg_forward(x2, prepared_bf16))
    assert out3.shape == (200, NUM_CLASSES)
    ref3 = reference_forward(x2, params, mimic_kernel=True, bf16_epilogue=True)
    assert _rel_err(out3, ref3) < 1e-2, "mismatch on default-tile path"

    print("KERNEL_OK")
</pallas_src>

<mosaic_0001>
module attributes {stable_mosaic.version = 11 : i64} {
  func.func @_mlp_kernel(%arg0: i32, %arg1: memref<16x16xbf16, #tpu.memory_space<vmem>>, %arg2: memref<16x64xbf16, #tpu.memory_space<vmem>>, %arg3: memref<1x64xbf16, #tpu.memory_space<vmem>>, %arg4: memref<64x128xbf16, #tpu.memory_space<vmem>>, %arg5: memref<1x128xbf16, #tpu.memory_space<vmem>>, %arg6: memref<128x256xbf16, #tpu.memory_space<vmem>>, %arg7: memref<1x256xbf16, #tpu.memory_space<vmem>>, %arg8: memref<256x512xbf16, #tpu.memory_space<vmem>>, %arg9: memref<1x512xbf16, #tpu.memory_space<vmem>>, %arg10: memref<512x256xbf16, #tpu.memory_space<vmem>>, %arg11: memref<1x256xbf16, #tpu.memory_space<vmem>>, %arg12: memref<256x128xbf16, #tpu.memory_space<vmem>>, %arg13: memref<1x128xbf16, #tpu.memory_space<vmem>>, %arg14: memref<128x128xbf16, #tpu.memory_space<vmem>>, %arg15: memref<1x128xf32, #tpu.memory_space<vmem>>, %arg16: memref<16x128xf32, #tpu.memory_space<vmem>>) attributes {dimension_semantics = [#tpu.dimension_semantics<parallel>], iteration_bounds = array<i64: 1>, scalar_prefetch = 0 : i64, scratch_operands = 0 : i64, tpu.core_type = #tpu.core_type<tc>, window_params = [{transform_indices = @transform_0, window_bounds = array<i64: 16, 16>}, {pipeline_mode = #tpu.pipeline_mode<synchronous>, transform_indices = @transform_1, window_bounds = array<i64: 16, 64>}, {pipeline_mode = #tpu.pipeline_mode<synchronous>, transform_indices = @transform_2, window_bounds = array<i64: 1, 64>}, {pipeline_mode = #tpu.pipeline_mode<synchronous>, transform_indices = @transform_3, window_bounds = array<i64: 64, 128>}, {pipeline_mode = #tpu.pipeline_mode<synchronous>, transform_indices = @transform_4, window_bounds = array<i64: 1, 128>}, {pipeline_mode = #tpu.pipeline_mode<synchronous>, transform_indices = @transform_5, window_bounds = array<i64: 128, 256>}, {pipeline_mode = #tpu.pipeline_mode<synchronous>, transform_indices = @transform_6, window_bounds = array<i64: 1, 256>}, {pipeline_mode = #tpu.pipeline_mode<synchronous>, transform_indices = @transform_7, window_bounds = array<i64: 256, 512>}, {pipeline_mode = #tpu.pipeline_mode<synchronous>, transform_indices = @transform_8, window_bounds = array<i64: 1, 512>}, {pipeline_mode = #tpu.pipeline_mode<synchronous>, transform_indices = @transform_9, window_bounds = array<i64: 512, 256>}, {pipeline_mode = #tpu.pipeline_mode<synchronous>, transform_indices = @transform_10, window_bounds = array<i64: 1, 256>}, {pipeline_mode = #tpu.pipeline_mode<synchronous>, transform_indices = @transform_11, window_bounds = array<i64: 256, 128>}, {pipeline_mode = #tpu.pipeline_mode<synchronous>, transform_indices = @transform_12, window_bounds = array<i64: 1, 128>}, {pipeline_mode = #tpu.pipeline_mode<synchronous>, transform_indices = @transform_13, window_bounds = array<i64: 128, 128>}, {pipeline_mode = #tpu.pipeline_mode<synchronous>, transform_indices = @transform_14, window_bounds = array<i64: 1, 128>}, {transform_indices = @transform_15, window_bounds = array<i64: 16, 128>}]} {
    %c0 = arith.constant 0 : index
    %c0_0 = arith.constant 0 : index
    %0 = vector.load %arg1[%c0, %c0_0] : memref<16x16xbf16, #tpu.memory_space<vmem>>, vector<16x16xbf16>
    %c0_1 = arith.constant 0 : index
    %c0_2 = arith.constant 0 : index
    %1 = vector.load %arg2[%c0_1, %c0_2] : memref<16x64xbf16, #tpu.memory_space<vmem>>, vector<16x64xbf16>
    %cst = arith.constant dense<0.000000e+00> : vector<16x64xf32>
    %2 = tpu.matmul %0, %1, %cst {dimension_numbers = #tpu.dot_dimension_numbers<[1], [0], [0], [1], [0, 0, 1, 1], [], []>} : vector<16x16xbf16>, vector<16x64xbf16>, vector<16x64xf32> -> vector<16x64xf32>
    %3 = arith.truncf %2 : vector<16x64xf32> to vector<16x64xbf16>
    %c0_3 = arith.constant 0 : index
    %c0_4 = arith.constant 0 : index
    %4 = vector.load %arg3[%c0_3, %c0_4] : memref<1x64xbf16, #tpu.memory_space<vmem>>, vector<1x64xbf16>
    %5 = vector.broadcast %4 : vector<1x64xbf16> to vector<16x64xbf16>
    %6 = arith.addf %3, %5 : vector<16x64xbf16>
    %cst_5 = arith.constant 0.000000e+00 : bf16
    %7 = vector.broadcast %cst_5 : bf16 to vector<16x64xbf16>
    %8 = arith.maximumf %6, %7 : vector<16x64xbf16>
    %c0_6 = arith.constant 0 : index
    %c0_7 = arith.constant 0 : index
    %9 = vector.load %arg4[%c0_6, %c0_7] : memref<64x128xbf16, #tpu.memory_space<vmem>>, vector<64x128xbf16>
    %cst_8 = arith.constant dense<0.000000e+00> : vector<16x128xf32>
    %10 = tpu.matmul %8, %9, %cst_8 {dimension_numbers = #tpu.dot_dimension_numbers<[1], [0], [0], [1], [0, 0, 1, 1], [], []>} : vector<16x64xbf16>, vector<64x128xbf16>, vector<16x128xf32> -> vector<16x128xf32>
    %11 = arith.truncf %10 : vector<16x128xf32> to vector<16x128xbf16>
    %c0_9 = arith.constant 0 : index
    %c0_10 = arith.constant 0 : index
    %12 = vector.load %arg5[%c0_9, %c0_10] : memref<1x128xbf16, #tpu.memory_space<vmem>>, vector<1x128xbf16>
    %13 = vector.broadcast %12 : vector<1x128xbf16> to vector<16x128xbf16>
    %14 = arith.addf %11, %13 : vector<16x128xbf16>
    %cst_11 = arith.constant 0.000000e+00 : bf16
    %15 = vector.broadcast %cst_11 : bf16 to vector<16x128xbf16>
    %16 = arith.maximumf %14, %15 : vector<16x128xbf16>
    %c0_12 = arith.constant 0 : index
    %c0_13 = arith.constant 0 : index
    %17 = vector.load %arg6[%c0_12, %c0_13] : memref<128x256xbf16, #tpu.memory_space<vmem>>, vector<128x256xbf16>
    %cst_14 = arith.constant dense<0.000000e+00> : vector<16x256xf32>
    %18 = tpu.matmul %16, %17, %cst_14 {dimension_numbers = #tpu.dot_dimension_numbers<[1], [0], [0], [1], [0, 0, 1, 1], [], []>} : vector<16x128xbf16>, vector<128x256xbf16>, vector<16x256xf32> -> vector<16x256xf32>
    %19 = arith.truncf %18 : vector<16x256xf32> to vector<16x256xbf16>
    %c0_15 = arith.constant 0 : index
    %c0_16 = arith.constant 0 : index
    %20 = vector.load %arg7[%c0_15, %c0_16] : memref<1x256xbf16, #tpu.memory_space<vmem>>, vector<1x256xbf16>
    %21 = vector.broadcast %20 : vector<1x256xbf16> to vector<16x256xbf16>
    %22 = arith.addf %19, %21 : vector<16x256xbf16>
    %cst_17 = arith.constant 0.000000e+00 : bf16
    %23 = vector.broadcast %cst_17 : bf16 to vector<16x256xbf16>
    %24 = arith.maximumf %22, %23 : vector<16x256xbf16>
    %c0_18 = arith.constant 0 : index
    %c0_19 = arith.constant 0 : index
    %25 = vector.load %arg8[%c0_18, %c0_19] : memref<256x512xbf16, #tpu.memory_space<vmem>>, vector<256x512xbf16>
    %cst_20 = arith.constant dense<0.000000e+00> : vector<16x512xf32>
    %26 = tpu.matmul %24, %25, %cst_20 {dimension_numbers = #tpu.dot_dimension_numbers<[1], [0], [0], [1], [0, 0, 1, 1], [], []>} : vector<16x256xbf16>, vector<256x512xbf16>, vector<16x512xf32> -> vector<16x512xf32>
    %27 = arith.truncf %26 : vector<16x512xf32> to vector<16x512xbf16>
    %c0_21 = arith.constant 0 : index
    %c0_22 = arith.constant 0 : index
    %28 = vector.load %arg9[%c0_21, %c0_22] : memref<1x512xbf16, #tpu.memory_space<vmem>>, vector<1x512xbf16>
    %29 = vector.broadcast %28 : vector<1x512xbf16> to vector<16x512xbf16>
    %30 = arith.addf %27, %29 : vector<16x512xbf16>
    %cst_23 = arith.constant 0.000000e+00 : bf16
    %31 = vector.broadcast %cst_23 : bf16 to vector<16x512xbf16>
    %32 = arith.maximumf %30, %31 : vector<16x512xbf16>
    %c0_24 = arith.constant 0 : index
    %c0_25 = arith.constant 0 : index
    %33 = vector.load %arg10[%c0_24, %c0_25] : memref<512x256xbf16, #tpu.memory_space<vmem>>, vector<512x256xbf16>
    %cst_26 = arith.constant dense<0.000000e+00> : vector<16x256xf32>
    %34 = tpu.matmul %32, %33, %cst_26 {dimension_numbers = #tpu.dot_dimension_numbers<[1], [0], [0], [1], [0, 0, 1, 1], [], []>} : vector<16x512xbf16>, vector<512x256xbf16>, vector<16x256xf32> -> vector<16x256xf32>
    %35 = arith.truncf %34 : vector<16x256xf32> to vector<16x256xbf16>
    %c0_27 = arith.constant 0 : index
    %c0_28 = arith.constant 0 : index
    %36 = vector.load %arg11[%c0_27, %c0_28] : memref<1x256xbf16, #tpu.memory_space<vmem>>, vector<1x256xbf16>
    %37 = vector.broadcast %36 : vector<1x256xbf16> to vector<16x256xbf16>
    %38 = arith.addf %35, %37 : vector<16x256xbf16>
    %cst_29 = arith.constant 0.000000e+00 : bf16
    %39 = vector.broadcast %cst_29 : bf16 to vector<16x256xbf16>
    %40 = arith.maximumf %38, %39 : vector<16x256xbf16>
    %c0_30 = arith.constant 0 : index
    %c0_31 = arith.constant 0 : index
    %41 = vector.load %arg12[%c0_30, %c0_31] : memref<256x128xbf16, #tpu.memory_space<vmem>>, vector<256x128xbf16>
    %cst_32 = arith.constant dense<0.000000e+00> : vector<16x128xf32>
    %42 = tpu.matmul %40, %41, %cst_32 {dimension_numbers = #tpu.dot_dimension_numbers<[1], [0], [0], [1], [0, 0, 1, 1], [], []>} : vector<16x256xbf16>, vector<256x128xbf16>, vector<16x128xf32> -> vector<16x128xf32>
    %43 = arith.truncf %42 : vector<16x128xf32> to vector<16x128xbf16>
    %c0_33 = arith.constant 0 : index
    %c0_34 = arith.constant 0 : index
    %44 = vector.load %arg13[%c0_33, %c0_34] : memref<1x128xbf16, #tpu.memory_space<vmem>>, vector<1x128xbf16>
    %45 = vector.broadcast %44 : vector<1x128xbf16> to vector<16x128xbf16>
    %46 = arith.addf %43, %45 : vector<16x128xbf16>
    %cst_35 = arith.constant 0.000000e+00 : bf16
    %47 = vector.broadcast %cst_35 : bf16 to vector<16x128xbf16>
    %48 = arith.maximumf %46, %47 : vector<16x128xbf16>
    %c0_36 = arith.constant 0 : index
    %c0_37 = arith.constant 0 : index
    %49 = vector.load %arg14[%c0_36, %c0_37] : memref<128x128xbf16, #tpu.memory_space<vmem>>, vector<128x128xbf16>
    %cst_38 = arith.constant dense<0.000000e+00> : vector<16x128xf32>
    %50 = tpu.matmul %48, %49, %cst_38 {dimension_numbers = #tpu.dot_dimension_numbers<[1], [0], [0], [1], [0, 0, 1, 1], [], []>} : vector<16x128xbf16>, vector<128x128xbf16>, vector<16x128xf32> -> vector<16x128xf32>
    %c0_39 = arith.constant 0 : index
    %c0_40 = arith.constant 0 : index
    %51 = vector.load %arg15[%c0_39, %c0_40] : memref<1x128xf32, #tpu.memory_space<vmem>>, vector<1x128xf32>
    %52 = vector.broadcast %51 : vector<1x128xf32> to vector<16x128xf32>
    %53 = arith.addf %50, %52 : vector<16x128xf32>
    %c0_41 = arith.constant 0 : index
    %c0_42 = arith.constant 0 : index
    %54 = vector.load %arg16[%c0_41, %c0_42] : memref<16x128xf32, #tpu.memory_space<vmem>>, vector<16x128xf32>
    tpu.vector_store %arg16[%c0_41, %c0_42], %53 {strides = array<i32>} : memref<16x128xf32, #tpu.memory_space<vmem>>, vector<16x128xf32>,
    return
  }
  func.func @transform_0(%arg0: i32) -> (i32, i32) {
    %c0_i32 = arith.constant 0 : i32
    %c0_i32_0 = arith.constant 0 : i32
    return %arg0, %c0_i32 : i32, i32
  }
  func.func @transform_1(%arg0: i32) -> (i32, i32) {
    %c0_i32 = arith.constant 0 : i32
    %c0_i32_0 = arith.constant 0 : i32
    %c0_i32_1 = arith.constant 0 : i32
    return %c0_i32, %c0_i32_0 : i32, i32
  }
  func.func @transform_2(%arg0: i32) -> (i32, i32) {
    %c0_i32 = arith.constant 0 : i32
    %c0_i32_0 = arith.constant 0 : i32
    %c0_i32_1 = arith.constant 0 : i32
    return %c0_i32, %c0_i32_0 : i32, i32
  }
  func.func @transform_3(%arg0: i32) -> (i32, i32) {
    %c0_i32 = arith.constant 0 : i32
    %c0_i32_0 = arith.constant 0 : i32
    %c0_i32_1 = arith.constant 0 : i32
    return %c0_i32, %c0_i32_0 : i32, i32
  }
  func.func @transform_4(%arg0: i32) -> (i32, i32) {
    %c0_i32 = arith.constant 0 : i32
    %c0_i32_0 = arith.constant 0 : i32
    %c0_i32_1 = arith.constant 0 : i32
    return %c0_i32, %c0_i32_0 : i32, i32
  }
  func.func @transform_5(%arg0: i32) -> (i32, i32) {
    %c0_i32 = arith.constant 0 : i32
    %c0_i32_0 = arith.constant 0 : i32
    %c0_i32_1 = arith.constant 0 : i32
    return %c0_i32, %c0_i32_0 : i32, i32
  }
  func.func @transform_6(%arg0: i32) -> (i32, i32) {
    %c0_i32 = arith.constant 0 : i32
    %c0_i32_0 = arith.constant 0 : i32
    %c0_i32_1 = arith.constant 0 : i32
    return %c0_i32, %c0_i32_0 : i32, i32
  }
  func.func @transform_7(%arg0: i32) -> (i32, i32) {
    %c0_i32 = arith.constant 0 : i32
    %c0_i32_0 = arith.constant 0 : i32
    %c0_i32_1 = arith.constant 0 : i32
    return %c0_i32, %c0_i32_0 : i32, i32
  }
  func.func @transform_8(%arg0: i32) -> (i32, i32) {
    %c0_i32 = arith.constant 0 : i32
    %c0_i32_0 = arith.constant 0 : i32
    %c0_i32_1 = arith.constant 0 : i32
    return %c0_i32, %c0_i32_0 : i32, i32
  }
  func.func @transform_9(%arg0: i32) -> (i32, i32) {
    %c0_i32 = arith.constant 0 : i32
    %c0_i32_0 = arith.constant 0 : i32
    %c0_i32_1 = arith.constant 0 : i32
    return %c0_i32, %c0_i32_0 : i32, i32
  }
  func.func @transform_10(%arg0: i32) -> (i32, i32) {
    %c0_i32 = arith.constant 0 : i32
    %c0_i32_0 = arith.constant 0 : i32
    %c0_i32_1 = arith.constant 0 : i32
    return %c0_i32, %c0_i32_0 : i32, i32
  }
  func.func @transform_11(%arg0: i32) -> (i32, i32) {
    %c0_i32 = arith.constant 0 : i32
    %c0_i32_0 = arith.constant 0 : i32
    %c0_i32_1 = arith.constant 0 : i32
    return %c0_i32, %c0_i32_0 : i32, i32
  }
  func.func @transform_12(%arg0: i32) -> (i32, i32) {
    %c0_i32 = arith.constant 0 : i32
    %c0_i32_0 = arith.constant 0 : i32
    %c0_i32_1 = arith.constant 0 : i32
    return %c0_i32, %c0_i32_0 : i32, i32
  }
  func.func @transform_13(%arg0: i32) -> (i32, i32) {
    %c0_i32 = arith.constant 0 : i32
    %c0_i32_0 = arith.constant 0 : i32
    %c0_i32_1 = arith.constant 0 : i32
    return %c0_i32, %c0_i32_0 : i32, i32
  }
  func.func @transform_14(%arg0: i32) -> (i32, i32) {
    %c0_i32 = arith.constant 0 : i32
    %c0_i32_0 = arith.constant 0 : i32
    %c0_i32_1 = arith.constant 0 : i32
    return %c0_i32, %c0_i32_0 : i32, i32
  }
  func.func @transform_15(%arg0: i32) -> (i32, i32) {
    %c0_i32 = arith.constant 0 : i32
    %c0_i32_0 = arith.constant 0 : i32
    return %arg0, %c0_i32 : i32, i32
  }
}

module attributes {stable_mosaic.version = 11 : i64} {
  func.func @_mlp_kernel(%arg0: i32, %arg1: memref<16x16xbf16, #tpu.memory_space<vmem>>, %arg2: memref<16x64xbf16, #tpu.memory_space<vmem>>, %arg3: memref<1x64xbf16, #tpu.memory_space<vmem>>, %arg4: memref<64x128xbf16, #tpu.memory_space<vmem>>, %arg5: memref<1x128xbf16, #tpu.memory_space<vmem>>, %arg6: memref<128x256xbf16, #tpu.memory_space<vmem>>, %arg7: memref<1x256xbf16, #tpu.memory_space<vmem>>, %arg8: memref<256x512xbf16, #tpu.memory_space<vmem>>, %arg9: memref<1x512xbf16, #tpu.memory_space<vmem>>, %arg10: memref<512x256xbf16, #tpu.memory_space<vmem>>, %arg11: memref<1x256xbf16, #tpu.memory_space<vmem>>, %arg12: memref<256x128xbf16, #tpu.memory_space<vmem>>, %arg13: memref<1x128xbf16, #tpu.memory_space<vmem>>, %arg14: memref<128x128xbf16, #tpu.memory_space<vmem>>, %arg15: memref<1x128xf32, #tpu.memory_space<vmem>>, %arg16: memref<16x128xf32, #tpu.memory_space<vmem>>) attributes {dimension_semantics = [#tpu.dimension_semantics<parallel>], iteration_bounds = array<i64: 1>, scalar_prefetch = 0 : i64, scratch_operands = 0 : i64, tpu.core_type = #tpu.core_type<tc>, window_params = [{transform_indices = @transform_0, window_bounds = array<i64: 16, 16>}, {pipeline_mode = #tpu.pipeline_mode<synchronous>, transform_indices = @transform_1, window_bounds = array<i64: 16, 64>}, {pipeline_mode = #tpu.pipeline_mode<synchronous>, transform_indices = @transform_2, window_bounds = array<i64: 1, 64>}, {pipeline_mode = #tpu.pipeline_mode<synchronous>, transform_indices = @transform_3, window_bounds = array<i64: 64, 128>}, {pipeline_mode = #tpu.pipeline_mode<synchronous>, transform_indices = @transform_4, window_bounds = array<i64: 1, 128>}, {pipeline_mode = #tpu.pipeline_mode<synchronous>, transform_indices = @transform_5, window_bounds = array<i64: 128, 256>}, {pipeline_mode = #tpu.pipeline_mode<synchronous>, transform_indices = @transform_6, window_bounds = array<i64: 1, 256>}, {pipeline_mode = #tpu.pipeline_mode<synchronous>, transform_indices = @transform_7, window_bounds = array<i64: 256, 512>}, {pipeline_mode = #tpu.pipeline_mode<synchronous>, transform_indices = @transform_8, window_bounds = array<i64: 1, 512>}, {pipeline_mode = #tpu.pipeline_mode<synchronous>, transform_indices = @transform_9, window_bounds = array<i64: 512, 256>}, {pipeline_mode = #tpu.pipeline_mode<synchronous>, transform_indices = @transform_10, window_bounds = array<i64: 1, 256>}, {pipeline_mode = #tpu.pipeline_mode<synchronous>, transform_indices = @transform_11, window_bounds = array<i64: 256, 128>}, {pipeline_mode = #tpu.pipeline_mode<synchronous>, transform_indices = @transform_12, window_bounds = array<i64: 1, 128>}, {pipeline_mode = #tpu.pipeline_mode<synchronous>, transform_indices = @transform_13, window_bounds = array<i64: 128, 128>}, {pipeline_mode = #tpu.pipeline_mode<synchronous>, transform_indices = @transform_14, window_bounds = array<i64: 1, 128>}, {transform_indices = @transform_15, window_bounds = array<i64: 16, 128>}]} {
    %c0 = arith.constant 0 : index
    %c0_0 = arith.constant 0 : index
    %0 = vector.load %arg1[%c0, %c0_0] : memref<16x16xbf16, #tpu.memory_space<vmem>>, vector<16x16xbf16>
    %c0_1 = arith.constant 0 : index
    %c0_2 = arith.constant 0 : index
    %1 = vector.load %arg2[%c0_1, %c0_2] : memref<16x64xbf16, #tpu.memory_space<vmem>>, vector<16x64xbf16>
    %cst = arith.constant dense<0.000000e+00> : vector<16x64xf32>
    %2 = tpu.matmul %0, %1, %cst {dimension_numbers = #tpu.dot_dimension_numbers<[1], [0], [0], [1], [0, 0, 1, 1], [], []>} : vector<16x16xbf16>, vector<16x64xbf16>, vector<16x64xf32> -> vector<16x64xf32>
    %3 = arith.truncf %2 : vector<16x64xf32> to vector<16x64xbf16>
    %c0_3 = arith.constant 0 : index
    %c0_4 = arith.constant 0 : index
    %4 = vector.load %arg3[%c0_3, %c0_4] : memref<1x64xbf16, #tpu.memory_space<vmem>>, vector<1x64xbf16>
    %5 = vector.broadcast %4 : vector<1x64xbf16> to vector<16x64xbf16>
    %6 = arith.addf %3, %5 : vector<16x64xbf16>
    %cst_5 = arith.constant 0.000000e+00 : bf16
    %7 = vector.broadcast %cst_5 : bf16 to vector<16x64xbf16>
    %8 = arith.maximumf %6, %7 : vector<16x64xbf16>
    %c0_6 = arith.constant 0 : index
    %c0_7 = arith.constant 0 : index
    %9 = vector.load %arg4[%c0_6, %c0_7] : memref<64x128xbf16, #tpu.memory_space<vmem>>, vector<64x128xbf16>
    %cst_8 = arith.constant dense<0.000000e+00> : vector<16x128xf32>
    %10 = tpu.matmul %8, %9, %cst_8 {dimension_numbers = #tpu.dot_dimension_numbers<[1], [0], [0], [1], [0, 0, 1, 1], [], []>} : vector<16x64xbf16>, vector<64x128xbf16>, vector<16x128xf32> -> vector<16x128xf32>
    %11 = arith.truncf %10 : vector<16x128xf32> to vector<16x128xbf16>
    %c0_9 = arith.constant 0 : index
    %c0_10 = arith.constant 0 : index
    %12 = vector.load %arg5[%c0_9, %c0_10] : memref<1x128xbf16, #tpu.memory_space<vmem>>, vector<1x128xbf16>
    %13 = vector.broadcast %12 : vector<1x128xbf16> to vector<16x128xbf16>
    %14 = arith.addf %11, %13 : vector<16x128xbf16>
    %cst_11 = arith.constant 0.000000e+00 : bf16
    %15 = vector.broadcast %cst_11 : bf16 to vector<16x128xbf16>
    %16 = arith.maximumf %14, %15 : vector<16x128xbf16>
    %c0_12 = arith.constant 0 : index
    %c0_13 = arith.constant 0 : index
    %17 = vector.load %arg6[%c0_12, %c0_13] : memref<128x256xbf16, #tpu.memory_space<vmem>>, vector<128x256xbf16>
    %cst_14 = arith.constant dense<0.000000e+00> : vector<16x256xf32>
    %18 = tpu.matmul %16, %17, %cst_14 {dimension_numbers = #tpu.dot_dimension_numbers<[1], [0], [0], [1], [0, 0, 1, 1], [], []>} : vector<16x128xbf16>, vector<128x256xbf16>, vector<16x256xf32> -> vector<16x256xf32>
    %19 = arith.truncf %18 : vector<16x256xf32> to vector<16x256xbf16>
    %c0_15 = arith.constant 0 : index
    %c0_16 = arith.constant 0 : index
    %20 = vector.load %arg7[%c0_15, %c0_16] : memref<1x256xbf16, #tpu.memory_space<vmem>>, vector<1x256xbf16>
    %21 = vector.broadcast %20 : vector<1x256xbf16> to vector<16x256xbf16>
    %22 = arith.addf %19, %21 : vector<16x256xbf16>
    %cst_17 = arith.constant 0.000000e+00 : bf16
    %23 = vector.broadcast %cst_17 : bf16 to vector<16x256xbf16>
    %24 = arith.maximumf %22, %23 : vector<16x256xbf16>
    %c0_18 = arith.constant 0 : index
    %c0_19 = arith.constant 0 : index
    %25 = vector.load %arg8[%c0_18, %c0_19] : memref<256x512xbf16, #tpu.memory_space<vmem>>, vector<256x512xbf16>
    %cst_20 = arith.constant dense<0.000000e+00> : vector<16x512xf32>
    %26 = tpu.matmul %24, %25, %cst_20 {dimension_numbers = #tpu.dot_dimension_numbers<[1], [0], [0], [1], [0, 0, 1, 1], [], []>} : vector<16x256xbf16>, vector<256x512xbf16>, vector<16x512xf32> -> vector<16x512xf32>
    %27 = arith.truncf %26 : vector<16x512xf32> to vector<16x512xbf16>
    %c0_21 = arith.constant 0 : index
    %c0_22 = arith.constant 0 : index
    %28 = vector.load %arg9[%c0_21, %c0_22] : memref<1x512xbf16, #tpu.memory_space<vmem>>, vector<1x512xbf16>
    %29 = vector.broadcast %28 : vector<1x512xbf16> to vector<16x512xbf16>
    %30 = arith.addf %27, %29 : vector<16x512xbf16>
    %cst_23 = arith.constant 0.000000e+00 : bf16
    %31 = vector.broadcast %cst_23 : bf16 to vector<16x512xbf16>
    %32 = arith.maximumf %30, %31 : vector<16x512xbf16>
    %c0_24 = arith.constant 0 : index
    %c0_25 = arith.constant 0 : index
    %33 = vector.load %arg10[%c0_24, %c0_25] : memref<512x256xbf16, #tpu.memory_space<vmem>>, vector<512x256xbf16>
    %cst_26 = arith.constant dense<0.000000e+00> : vector<16x256xf32>
    %34 = tpu.matmul %32, %33, %cst_26 {dimension_numbers = #tpu.dot_dimension_numbers<[1], [0], [0], [1], [0, 0, 1, 1], [], []>} : vector<16x512xbf16>, vector<512x256xbf16>, vector<16x256xf32> -> vector<16x256xf32>
    %35 = arith.truncf %34 : vector<16x256xf32> to vector<16x256xbf16>
    %c0_27 = arith.constant 0 : index
    %c0_28 = arith.constant 0 : index
    %36 = vector.load %arg11[%c0_27, %c0_28] : memref<1x256xbf16, #tpu.memory_space<vmem>>, vector<1x256xbf16>
    %37 = vector.broadcast %36 : vector<1x256xbf16> to vector<16x256xbf16>
    %38 = arith.addf %35, %37 : vector<16x256xbf16>
    %cst_29 = arith.constant 0.000000e+00 : bf16
    %39 = vector.broadcast %cst_29 : bf16 to vector<16x256xbf16>
    %40 = arith.maximumf %38, %39 : vector<16x256xbf16>
    %c0_30 = arith.constant 0 : index
    %c0_31 = arith.constant 0 : index
    %41 = vector.load %arg12[%c0_30, %c0_31] : memref<256x128xbf16, #tpu.memory_space<vmem>>, vector<256x128xbf16>
    %cst_32 = arith.constant dense<0.000000e+00> : vector<16x128xf32>
    %42 = tpu.matmul %40, %41, %cst_32 {dimension_numbers = #tpu.dot_dimension_numbers<[1], [0], [0], [1], [0, 0, 1, 1], [], []>} : vector<16x256xbf16>, vector<256x128xbf16>, vector<16x128xf32> -> vector<16x128xf32>
    %43 = arith.truncf %42 : vector<16x128xf32> to vector<16x128xbf16>
    %c0_33 = arith.constant 0 : index
    %c0_34 = arith.constant 0 : index
    %44 = vector.load %arg13[%c0_33, %c0_34] : memref<1x128xbf16, #tpu.memory_space<vmem>>, vector<1x128xbf16>
    %45 = vector.broadcast %44 : vector<1x128xbf16> to vector<16x128xbf16>
    %46 = arith.addf %43, %45 : vector<16x128xbf16>
    %cst_35 = arith.constant 0.000000e+00 : bf16
    %47 = vector.broadcast %cst_35 : bf16 to vector<16x128xbf16>
    %48 = arith.maximumf %46, %47 : vector<16x128xbf16>
    %c0_36 = arith.constant 0 : index
    %c0_37 = arith.constant 0 : index
    %49 = vector.load %arg14[%c0_36, %c0_37] : memref<128x128xbf16, #tpu.memory_space<vmem>>, vector<128x128xbf16>
    %cst_38 = arith.constant dense<0.000000e+00> : vector<16x128xf32>
    %50 = tpu.matmul %48, %49, %cst_38 {dimension_numbers = #tpu.dot_dimension_numbers<[1], [0], [0], [1], [0, 0, 1, 1], [], []>} : vector<16x128xbf16>, vector<128x128xbf16>, vector<16x128xf32> -> vector<16x128xf32>
    %c0_39 = arith.constant 0 : index
    %c0_40 = arith.constant 0 : index
    %51 = vector.load %arg15[%c0_39, %c0_40] : memref<1x128xf32, #tpu.memory_space<vmem>>, vector<1x128xf32>
    %52 = vector.broadcast %51 : vector<1x128xf32> to vector<16x128xf32>
    %53 = arith.addf %50, %52 : vector<16x128xf32>
    %c0_41 = arith.constant 0 : index
    %c0_42 = arith.constant 0 : index
    %54 = vector.load %arg16[%c0_41, %c0_42] : memref<16x128xf32, #tpu.memory_space<vmem>>, vector<16x128xf32>
    tpu.vector_store %arg16[%c0_41, %c0_42], %53 {strides = array<i32>} : memref<16x128xf32, #tpu.memory_space<vmem>>, vector<16x128xf32>,
    return
  }
  func.func @transform_0(%arg0: i32) -> (i32, i32) {
    %c0_i32 = arith.constant 0 : i32
    %c0_i32_0 = arith.constant 0 : i32
    return %arg0, %c0_i32 : i32, i32
  }
  func.func @transform_1(%arg0: i32) -> (i32, i32) {
    %c0_i32 = arith.constant 0 : i32
    %c0_i32_0 = arith.constant 0 : i32
    %c0_i32_1 = arith.constant 0 : i32
    return %c0_i32, %c0_i32_0 : i32, i32
  }
  func.func @transform_2(%arg0: i32) -> (i32, i32) {
    %c0_i32 = arith.constant 0 : i32
    %c0_i32_0 = arith.constant 0 : i32
    %c0_i32_1 = arith.constant 0 : i32
    return %c0_i32, %c0_i32_0 : i32, i32
  }
  func.func @transform_3(%arg0: i32) -> (i32, i32) {
    %c0_i32 = arith.constant 0 : i32
    %c0_i32_0 = arith.constant 0 : i32
    %c0_i32_1 = arith.constant 0 : i32
    return %c0_i32, %c0_i32_0 : i32, i32
  }
  func.func @transform_4(%arg0: i32) -> (i32, i32) {
    %c0_i32 = arith.constant 0 : i32
    %c0_i32_0 = arith.constant 0 : i32
    %c0_i32_1 = arith.constant 0 : i32
    return %c0_i32, %c0_i32_0 : i32, i32
  }
  func.func @transform_5(%arg0: i32) -> (i32, i32) {
    %c0_i32 = arith.constant 0 : i32
    %c0_i32_0 = arith.constant 0 : i32
    %c0_i32_1 = arith.constant 0 : i32
    return %c0_i32, %c0_i32_0 : i32, i32
  }
  func.func @transform_6(%arg0: i32) -> (i32, i32) {
    %c0_i32 = arith.constant 0 : i32
    %c0_i32_0 = arith.constant 0 : i32
    %c0_i32_1 = arith.constant 0 : i32
    return %c0_i32, %c0_i32_0 : i32, i32
  }
  func.func @transform_7(%arg0: i32) -> (i32, i32) {
    %c0_i32 = arith.constant 0 : i32
    %c0_i32_0 = arith.constant 0 : i32
    %c0_i32_1 = arith.constant 0 : i32
    return %c0_i32, %c0_i32_0 : i32, i32
  }
  func.func @transform_8(%arg0: i32) -> (i32, i32) {
    %c0_i32 = arith.constant 0 : i32
    %c0_i32_0 = arith.constant 0 : i32
    %c0_i32_1 = arith.constant 0 : i32
    return %c0_i32, %c0_i32_0 : i32, i32
  }
  func.func @transform_9(%arg0: i32) -> (i32, i32) {
    %c0_i32 = arith.constant 0 : i32
    %c0_i32_0 = arith.constant 0 : i32
    %c0_i32_1 = arith.constant 0 : i32
    return %c0_i32, %c0_i32_0 : i32, i32
  }
  func.func @transform_10(%arg0: i32) -> (i32, i32) {
    %c0_i32 = arith.constant 0 : i32
    %c0_i32_0 = arith.constant 0 : i32
    %c0_i32_1 = arith.constant 0 : i32
    return %c0_i32, %c0_i32_0 : i32, i32
  }
  func.func @transform_11(%arg0: i32) -> (i32, i32) {
    %c0_i32 = arith.constant 0 : i32
    %c0_i32_0 = arith.constant 0 : i32
    %c0_i32_1 = arith.constant 0 : i32
    return %c0_i32, %c0_i32_0 : i32, i32
  }
  func.func @transform_12(%arg0: i32) -> (i32, i32) {
    %c0_i32 = arith.constant 0 : i32
    %c0_i32_0 = arith.constant 0 : i32
    %c0_i32_1 = arith.constant 0 : i32
    return %c0_i32, %c0_i32_0 : i32, i32
  }
  func.func @transform_13(%arg0: i32) -> (i32, i32) {
    %c0_i32 = arith.constant 0 : i32
    %c0_i32_0 = arith.constant 0 : i32
    %c0_i32_1 = arith.constant 0 : i32
    return %c0_i32, %c0_i32_0 : i32, i32
  }
  func.func @transform_14(%arg0: i32) -> (i32, i32) {
    %c0_i32 = arith.constant 0 : i32
    %c0_i32_0 = arith.constant 0 : i32
    %c0_i32_1 = arith.constant 0 : i32
    return %c0_i32, %c0_i32_0 : i32, i32
  }
  func.func @transform_15(%arg0: i32) -> (i32, i32) {
    %c0_i32 = arith.constant 0 : i32
    %c0_i32_0 = arith.constant 0 : i32
    return %arg0, %c0_i32 : i32, i32
  }
}

</mosaic_0001>

<llo_original>
// kernel: tpu_custom_call.1
$region0: #{tpu_custom_call.1}
  #allocation0 [shape = 'u32[]', space=smem, size = 0x4, offset = 0x4, fixed_abs, tag = 'smem constant byte address 0x4 - core index']
  #allocation1 [shape = 'u32[144,128]{1,0:T(1,128)}', space=vmem, size = 0x12000, scoped, tag = 'internal scratch']
  %s0 = inlined_call_operand.hbm [shape: bf16[16,16], index: 0, kind: input, shape index: {}]
  %s1 = inlined_call_operand.hbm [shape: bf16[16,64], index: 1, kind: input, shape index: {}]
  %s2 = inlined_call_operand.vmem [shape: bf16[1,64], index: 2, kind: input, shape index: {}]
  %s3 = inlined_call_operand.hbm [shape: bf16[64,128], index: 3, kind: input, shape index: {}]
  %s4 = inlined_call_operand.vmem [shape: bf16[1,128], index: 4, kind: input, shape index: {}]
  %s5 = inlined_call_operand.hbm [shape: bf16[128,256], index: 5, kind: input, shape index: {}]
  %s6 = inlined_call_operand.vmem [shape: bf16[1,256], index: 6, kind: input, shape index: {}]
  %s7 = inlined_call_operand.hbm [shape: bf16[256,512], index: 7, kind: input, shape index: {}]
  %s8 = inlined_call_operand.vmem [shape: bf16[1,512], index: 8, kind: input, shape index: {}]
  %s9 = inlined_call_operand.hbm [shape: bf16[512,256], index: 9, kind: input, shape index: {}]
  %s10 = inlined_call_operand.vmem [shape: bf16[1,256], index: 10, kind: input, shape index: {}]
  %s11 = inlined_call_operand.hbm [shape: bf16[256,128], index: 11, kind: input, shape index: {}]
  %s12 = inlined_call_operand.vmem [shape: bf16[1,128], index: 12, kind: input, shape index: {}]
  %s13 = inlined_call_operand.hbm [shape: bf16[128,128], index: 13, kind: input, shape index: {}]
  %s14 = inlined_call_operand.vmem [shape: f32[1,128], index: 14, kind: input, shape index: {}]
  %s15 = inlined_call_operand.hbm [shape: f32[16,128], index: 15, kind: output, shape index: {}]
  %s16 = sld [smem:[#allocation0]]
  $region102: #{tpu_custom_call.1} parent=0
    _
  %s18 = ssub.s32 1, %s16
  %s19 = scalar_select 0, %s18, %s16
  $region1: #{tpu_custom_call.1} parent=0
    #allocation2 [shape = 'u8[4096]{0}', space=vmem, size = 0x1000, scoped, tag = 'input window, operand 0, single buffered']
    #allocation3 [shape = 's32[1]{0}', space=sflag, size = 0x4, scoped, tag = 'scoped memory for tpu_custom_call.1']
    #allocation4 [shape = 's32[1]{0}', space=sflag, size = 0x4, scoped, tag = 'scoped memory for tpu_custom_call.1']
    #allocation5 [shape = 'u8[4096]{0}', space=vmem, size = 0x1000, scoped, tag = 'input window, operand 1, single buffered']
    #allocation6 [shape = 's32[1]{0}', space=sflag, size = 0x4, scoped, tag = 'scoped memory for tpu_custom_call.1']
    #allocation7 [shape = 'u8[16384]{0}', space=vmem, size = 0x4000, scoped, tag = 'input window, operand 3, single buffered']
    #allocation8 [shape = 'u8[65536]{0}', space=vmem, size = 0x10000, scoped, tag = 'input window, operand 5, single buffered']
    #allocation9 [shape = 's32[1]{0}', space=sflag, size = 0x4, scoped, tag = 'scoped memory for tpu_custom_call.1']
    #allocation10 [shape = 'u8[262144]{0}', space=vmem, size = 0x40000, scoped, tag = 'input window, operand 7, single buffered']
    #allocation11 [shape = 'u8[262144]{0}', space=vmem, size = 0x40000, scoped, tag = 'input window, operand 9, single buffered']
    #allocation12 [shape = 's32[1]{0}', space=sflag, size = 0x4, scoped, tag = 'scoped memory for tpu_custom_call.1']
    #allocation13 [shape = 'u8[65536]{0}', space=vmem, size = 0x10000, scoped, tag = 'input window, operand 11, single buffered']
    #allocation14 [shape = 'u8[32768]{0}', space=vmem, size = 0x8000, scoped, tag = 'input window, operand 13, single buffered']
    #allocation15 [shape = 's32[1]{0}', space=sflag, size = 0x4, scoped, tag = 'scoped memory for tpu_custom_call.1']
    #allocation16 [shape = 'u8[8192]{0}', space=vmem, size = 0x2000, scoped, tag = 'output window, operand 0, single buffered']
    %20 = vsyncpa [#allocation3], 0
    %21 = vsyncpa [#allocation6], 0
    %22 = vsyncpa [#allocation9], 0
    %23 = vsyncpa [#allocation12], 0
    %24 = vsyncpa [#allocation15], 0
    %25 = vsyncpa [#allocation4], 0
    // Predicated region
    $region2: #{tpu_custom_call.1} parent=1 // pred_check
      _
    $region3: #{tpu_custom_call.1} parent=1 // pred_check_branch
      %27 = sbr.rel (0) target = $region5
    $region4: #{tpu_custom_call.1} parent=1 // pred_region
      %s29 = ssub.s32 128, 128
      %30 = vsyncadd [#allocation3], %s29
      %s31 = sshll.u32 [#allocation2], 4
      %s32 = int_to_ptr.vmem [resolvable:$true] %s31
      %37 = dma.hbm_to_vmem [thread:$0]  %s0, 128, %s32, [#allocation3], 64, 64, 4
    $region5: #{tpu_custom_call.1} parent=1 // pred_fallthru
      _
    // Predicated region
    $region6: #{tpu_custom_call.1} parent=1 // pred_check
      _
    $region7: #{tpu_custom_call.1} parent=1 // pred_check_branch
      %39 = sbr.rel (0) target = $region9
    $region8: #{tpu_custom_call.1} parent=1 // pred_region
      %s41 = ssub.s32 128, 128
      %42 = vsyncadd [#allocation6], %s41
      %s43 = sshll.u32 [#allocation5], 4
      %s44 = int_to_ptr.vmem [resolvable:$true] %s43
      %49 = dma.hbm_to_vmem [thread:$0]  %s1, 128, %s44, [#allocation6], 64, 64, 4
    $region9: #{tpu_custom_call.1} parent=1 // pred_fallthru
      _
    // Predicated region
    $region10: #{tpu_custom_call.1} parent=1 // pred_check
      _
    $region11: #{tpu_custom_call.1} parent=1 // pred_check_branch
      %51 = sbr.rel (0) target = $region13
    $region12: #{tpu_custom_call.1} parent=1 // pred_region
      _
    $region13: #{tpu_custom_call.1} parent=1 // pred_fallthru
      _
    // Predicated region
    $region14: #{tpu_custom_call.1} parent=1 // pred_check
      _
    $region15: #{tpu_custom_call.1} parent=1 // pred_check_branch
      %53 = sbr.rel (0) target = $region17
    $region16: #{tpu_custom_call.1} parent=1 // pred_region
      %s55 = ssub.s32 512, 512
      %56 = vsyncadd [#allocation6], %s55
      %s57 = sshll.u32 [#allocation7], 4
      %s58 = int_to_ptr.vmem [resolvable:$true] %s57
      %63 = dma.hbm_to_vmem [thread:$0]  %s3, 512, %s58, [#allocation6], 64, 64, 4
    $region17: #{tpu_custom_call.1} parent=1 // pred_fallthru
      _
    // Predicated region
    $region18: #{tpu_custom_call.1} parent=1 // pred_check
      _
    $region19: #{tpu_custom_call.1} parent=1 // pred_check_branch
      %65 = sbr.rel (0) target = $region21
    $region20: #{tpu_custom_call.1} parent=1 // pred_region
      _
    $region21: #{tpu_custom_call.1} parent=1 // pred_fallthru
      _
    // Predicated region
    $region22: #{tpu_custom_call.1} parent=1 // pred_check
      _
    $region23: #{tpu_custom_call.1} parent=1 // pred_check_branch
      %67 = sbr.rel (0) target = $region25
    $region24: #{tpu_custom_call.1} parent=1 // pred_region
      %s69 = ssub.s32 2048, 2048
      %70 = vsyncadd [#allocation9], %s69
      %s71 = sshll.u32 [#allocation8], 4
      %s72 = int_to_ptr.vmem [resolvable:$true] %s71
      %77 = dma.hbm_to_vmem [thread:$0]  %s5, 2048, %s72, [#allocation9], 128, 128, 8
    $region25: #{tpu_custom_call.1} parent=1 // pred_fallthru
      _
    // Predicated region
    $region26: #{tpu_custom_call.1} parent=1 // pred_check
      _
    $region27: #{tpu_custom_call.1} parent=1 // pred_check_branch
      %79 = sbr.rel (0) target = $region29
    $region28: #{tpu_custom_call.1} parent=1 // pred_region
      _
    $region29: #{tpu_custom_call.1} parent=1 // pred_fallthru
      _
    // Predicated region
    $region30: #{tpu_custom_call.1} parent=1 // pred_check
      _
    $region31: #{tpu_custom_call.1} parent=1 // pred_check_branch
      %81 = sbr.rel (0) target = $region33
    $region32: #{tpu_custom_call.1} parent=1 // pred_region
      %s83 = ssub.s32 8192, 8192
      %84 = vsyncadd [#allocation9], %s83
      %s85 = sshll.u32 [#allocation10], 4
      %s86 = int_to_ptr.vmem [resolvable:$true] %s85
      %91 = dma.hbm_to_vmem [thread:$0]  %s7, 8192, %s86, [#allocation9], 256, 256, 16
    $region33: #{tpu_custom_call.1} parent=1 // pred_fallthru
      _
    // Predicated region
    $region34: #{tpu_custom_call.1} parent=1 // pred_check
      _
    $region35: #{tpu_custom_call.1} parent=1 // pred_check_branch
      %93 = sbr.rel (0) target = $region37
    $region36: #{tpu_custom_call.1} parent=1 // pred_region
      _
    $region37: #{tpu_custom_call.1} parent=1 // pred_fallthru
      _
    // Predicated region
    $region38: #{tpu_custom_call.1} parent=1 // pred_check
      _
    $region39: #{tpu_custom_call.1} parent=1 // pred_check_branch
      %95 = sbr.rel (0) target = $region41
    $region40: #{tpu_custom_call.1} parent=1 // pred_region
      %s97 = ssub.s32 8192, 8192
      %98 = vsyncadd [#allocation12], %s97
      %s99 = sshll.u32 [#allocation11], 4
      %s100 = int_to_ptr.vmem [resolvable:$true] %s99
      %105 = dma.hbm_to_vmem [thread:$0]  %s9, 8192, %s100, [#allocation12], 128, 128, 8
    $region41: #{tpu_custom_call.1} parent=1 // pred_fallthru
      _
    // Predicated region
    $region42: #{tpu_custom_call.1} parent=1 // pred_check
      _
    $region43: #{tpu_custom_call.1} parent=1 // pred_check_branch
      %107 = sbr.rel (0) target = $region45
    $region44: #{tpu_custom_call.1} parent=1 // pred_region
      _
    $region45: #{tpu_custom_call.1} parent=1 // pred_fallthru
      _
    // Predicated region
    $region46: #{tpu_custom_call.1} parent=1 // pred_check
      _
    $region47: #{tpu_custom_call.1} parent=1 // pred_check_branch
      %109 = sbr.rel (0) target = $region49
    $region48: #{tpu_custom_call.1} parent=1 // pred_region
      %s111 = ssub.s32 2048, 2048
      %112 = vsyncadd [#allocation12], %s111
      %s113 = sshll.u32 [#allocation13], 4
      %s114 = int_to_ptr.vmem [resolvable:$true] %s113
      %119 = dma.hbm_to_vmem [thread:$0]  %s11, 2048, %s114, [#allocation12], 64, 64, 4
    $region49: #{tpu_custom_call.1} parent=1 // pred_fallthru
      _
    // Predicated region
    $region50: #{tpu_custom_call.1} parent=1 // pred_check
      _
    $region51: #{tpu_custom_call.1} parent=1 // pred_check_branch
      %121 = sbr.rel (0) target = $region53
    $region52: #{tpu_custom_call.1} parent=1 // pred_region
      _
    $region53: #{tpu_custom_call.1} parent=1 // pred_fallthru
      _
    // Predicated region
    $region54: #{tpu_custom_call.1} parent=1 // pred_check
      _
    $region55: #{tpu_custom_call.1} parent=1 // pred_check_branch
      %123 = sbr.rel (0) target = $region57
    $region56: #{tpu_custom_call.1} parent=1 // pred_region
      %s125 = ssub.s32 1024, 1024
      %126 = vsyncadd [#allocation15], %s125
      %s127 = sshll.u32 [#allocation14], 4
      %s128 = int_to_ptr.vmem [resolvable:$true] %s127
      %133 = dma.hbm_to_vmem [thread:$0]  %s13, 1024, %s128, [#allocation15], 64, 64, 4
    $region57: #{tpu_custom_call.1} parent=1 // pred_fallthru
      _
    // Predicated region
    $region58: #{tpu_custom_call.1} parent=1 // pred_check
      _
    $region59: #{tpu_custom_call.1} parent=1 // pred_check_branch
      %135 = sbr.rel (0) target = $region61
    $region60: #{tpu_custom_call.1} parent=1 // pred_region
      _
    $region61: #{tpu_custom_call.1} parent=1 // pred_fallthru
      _
    // Predicated region
    $region62: #{tpu_custom_call.1} parent=1 // pred_check
      _
    $region63: #{tpu_custom_call.1} parent=1 // pred_check_branch
      %137 = sbr.rel (0) target = $region65
    $region64: #{tpu_custom_call.1} parent=1 // pred_region
      %138 = dma.done [#allocation3], 128
    $region65: #{tpu_custom_call.1} parent=1 // pred_fallthru
      _
    // Predicated region
    $region66: #{tpu_custom_call.1} parent=1 // pred_check
      _
    $region67: #{tpu_custom_call.1} parent=1 // pred_check_branch
      %140 = sbr.rel (0) target = $region69
    $region68: #{tpu_custom_call.1} parent=1 // pred_region
      %141 = dma.done [#allocation6], 128
    $region69: #{tpu_custom_call.1} parent=1 // pred_fallthru
      _
    // Predicated region
    $region70: #{tpu_custom_call.1} parent=1 // pred_check
      _
    $region71: #{tpu_custom_call.1} parent=1 // pred_check_branch
      %143 = sbr.rel (0) target = $region73
    $region72: #{tpu_custom_call.1} parent=1 // pred_region
      %144 = dma.done [#allocation6], 512
    $region73: #{tpu_custom_call.1} parent=1 // pred_fallthru
      _
    // Predicated region
    $region74: #{tpu_custom_call.1} parent=1 // pred_check
      _
    $region75: #{tpu_custom_call.1} parent=1 // pred_check_branch
      %146 = sbr.rel (0) target = $region77
    $region76: #{tpu_custom_call.1} parent=1 // pred_region
      %147 = dma.done [#allocation9], 2048
    $region77: #{tpu_custom_call.1} parent=1 // pred_fallthru
      _
    // Predicated region
    $region78: #{tpu_custom_call.1} parent=1 // pred_check
      _
    $region79: #{tpu_custom_call.1} parent=1 // pred_check_branch
      %149 = sbr.rel (0) target = $region81
    $region80: #{tpu_custom_call.1} parent=1 // pred_region
      %150 = dma.done [#allocation9], 8192
    $region81: #{tpu_custom_call.1} parent=1 // pred_fallthru
      _
    // Predicated region
    $region82: #{tpu_custom_call.1} parent=1 // pred_check
      _
    $region83: #{tpu_custom_call.1} parent=1 // pred_check_branch
      %152 = sbr.rel (0) target = $region85
    $region84: #{tpu_custom_call.1} parent=1 // pred_region
      %153 = dma.done [#allocation12], 8192
    $region85: #{tpu_custom_call.1} parent=1 // pred_fallthru
      _
    // Predicated region
    $region86: #{tpu_custom_call.1} parent=1 // pred_check
      _
    $region87: #{tpu_custom_call.1} parent=1 // pred_check_branch
      %155 = sbr.rel (0) target = $region89
    $region88: #{tpu_custom_call.1} parent=1 // pred_region
      %156 = dma.done [#allocation12], 2048
    $region89: #{tpu_custom_call.1} parent=1 // pred_fallthru
      _
    // Predicated region
    $region90: #{tpu_custom_call.1} parent=1 // pred_check
      _
    $region91: #{tpu_custom_call.1} parent=1 // pred_check_branch
      %158 = sbr.rel (0) target = $region93
    $region92: #{tpu_custom_call.1} parent=1 // pred_region
      %159 = dma.done [#allocation15], 1024
    $region93: #{tpu_custom_call.1} parent=1 // pred_fallthru
      _
    %v161 = vld [vmem:[#allocation2] sm:$0xf]
    %v162 = vld [vmem:[#allocation2 + $0x4] sm:$0xf]
    %v163 = vld [vmem:[#allocation5] sm:$0xf]
    %v164 = vld [vmem:[#allocation5 + $0x4] sm:$0xf]
    %v167 = vunpack.c.l.b16 %v161
    %v168 = vunpack.c.l.b16 %v162
    %v169 = vpack.c.b16 %v168, %v167
    %v172 = vunpack.c.l.b16 %v163
    %v173 = vunpack.c.l.b16 %v164
    %v174 = vpack.c.b16 %v173, %v172
    %vm176 = vcmask 130048
    %v178 = vsel %vm176, %v169, 0
    %180 = vmatprep.subr.bf16.mxu0 0
    %181 = vmatpush1.bf16.msra.mxu0 %v174
    %182 = vmatprep.subr.bf16.mxu0 0
    %183 = vmatpush1.bf16.msra.mxu0 0
    %184 = vmatprep.subr.bf16.mxu0 0
    %185 = vmatpush1.bf16.msra.mxu0 0
    %186 = vmatprep.subr.bf16.mxu0 0
    %187 = vmatpush1.bf16.msra.mxu0 0
    %188 = vmatprep.subr.bf16.mxu0 0
    %189 = vmatpush1.bf16.msra.mxu0 0
    %190 = vmatprep.subr.bf16.mxu0 0
    %191 = vmatpush1.bf16.msra.mxu0 0
    %192 = vmatprep.subr.bf16.mxu0 0
    %193 = vmatpush1.bf16.msra.mxu0 0
    %194 = vmatprep.subr.bf16.mxu0 0
    %195 = vmatpush1.bf16.msra.mxu0 0
    %196 = vmatprep.subr.bf16.mxu0 0
    %197 = vmatpush1.bf16.msra.mxu0 0
    %198 = vmatprep.subr.bf16.mxu0 0
    %199 = vmatpush1.bf16.msra.mxu0 0
    %200 = vmatprep.subr.bf16.mxu0 0
    %201 = vmatpush1.bf16.msra.mxu0 0
    %202 = vmatprep.subr.bf16.mxu0 0
    %203 = vmatpush1.bf16.msra.mxu0 0
    %204 = vmatprep.subr.bf16.mxu0 0
    %205 = vmatpush1.bf16.msra.mxu0 0
    %206 = vmatprep.subr.bf16.mxu0 0
    %207 = vmatpush1.bf16.msra.mxu0 0
    %208 = vmatprep.subr.bf16.mxu0 0
    %209 = vmatpush1.bf16.msra.mxu0 0
    %210 = vmatprep.subr.bf16.mxu0 0
    %211 = vmatpush1.bf16.msra.mxu0 0
    %212 = vmatprep.mubr.bf16.mxu0 0
    %213 = vmatmul.mubr.bf16.gmra.mrb[0].mxu0 %v178
    %v214 = vpop.f32.mrb[0].mxu0
    %v215 = vadd.f32 0.0, %v214
    %v216 = vpop.f32.mrb[0].mxu0
    %v217 = vpop.f32.mrb[0].mxu0
    %v218 = vadd.f32 0.0, %v217
    %v219 = vpop.f32.mrb[0].mxu0
    %220 = vdwg.mxu0
    %v221 = vpack.c.bf16 %v218, %v215
    %v222 = vld [vmem:[%s2] sm:$0x1]
    %v224 = vpack.i.b16 %v222, %v222
    %v226 = vlaneseq
    %v227 = vshrl.u32 %v226, 7
    %v228 = vsub.s32 0, %v227
    %v229 = vrot.slane %v224, %v228
    %v230 = vadd.bf16 %v221, %v229
    %v231 = vmax.bf16 %v230, 0
    %v232 = vld [vmem:[#allocation7] sm:$0xf]
    %v233 = vld [vmem:[#allocation7 + $0x4] sm:$0xf]
    %v234 = vld [vmem:[#allocation7 + $0x8] sm:$0xf]
    %v235 = vld [vmem:[#allocation7 + $0xc] sm:$0xf]
    %v236 = vld [vmem:[#allocation7 + $0x10] sm:$0xf]
    %v237 = vld [vmem:[#allocation7 + $0x14] sm:$0xf]
    %v238 = vld [vmem:[#allocation7 + $0x18] sm:$0xf]
    %v239 = vld [vmem:[#allocation7 + $0x1c] sm:$0xf]
    %v248 = vunpack.c.l.b16 %v232
    %v249 = vunpack.c.l.b16 %v233
    %v250 = vunpack.c.l.b16 %v234
    %v251 = vunpack.c.l.b16 %v235
    %v252 = vunpack.c.l.b16 %v236
    %v253 = vunpack.c.l.b16 %v237
    %v254 = vunpack.c.l.b16 %v238
    %v255 = vunpack.c.l.b16 %v239
    %v256 = vpack.c.b16 %v249, %v248
    %v257 = vpack.c.b16 %v251, %v250
    %v258 = vpack.c.b16 %v253, %v252
    %v259 = vpack.c.b16 %v255, %v254
    %vm264 = vcmask 523264
    %v266 = vsel %vm264, %v231, 0
    %268 = vmatprep.subr.bf16.mxu0 0
    %269 = vmatpush1.bf16.msra.mxu0 %v256
    %270 = vmatprep.subr.bf16.mxu0 0
    %271 = vmatpush1.bf16.msra.mxu0 %v257
    %272 = vmatprep.subr.bf16.mxu0 0
    %273 = vmatpush1.bf16.msra.mxu0 %v258
    %274 = vmatprep.subr.bf16.mxu0 0
    %275 = vmatpush1.bf16.msra.mxu0 %v259
    %276 = vmatprep.subr.bf16.mxu0 0
    %277 = vmatpush1.bf16.msra.mxu0 0
    %278 = vmatprep.subr.bf16.mxu0 0
    %279 = vmatpush1.bf16.msra.mxu0 0
    %280 = vmatprep.subr.bf16.mxu0 0
    %281 = vmatpush1.bf16.msra.mxu0 0
    %282 = vmatprep.subr.bf16.mxu0 0
    %283 = vmatpush1.bf16.msra.mxu0 0
    %284 = vmatprep.subr.bf16.mxu0 0
    %285 = vmatpush1.bf16.msra.mxu0 0
    %286 = vmatprep.subr.bf16.mxu0 0
    %287 = vmatpush1.bf16.msra.mxu0 0
    %288 = vmatprep.subr.bf16.mxu0 0
    %289 = vmatpush1.bf16.msra.mxu0 0
    %290 = vmatprep.subr.bf16.mxu0 0
    %291 = vmatpush1.bf16.msra.mxu0 0
    %292 = vmatprep.subr.bf16.mxu0 0
    %293 = vmatpush1.bf16.msra.mxu0 0
    %294 = vmatprep.subr.bf16.mxu0 0
    %295 = vmatpush1.bf16.msra.mxu0 0
    %296 = vmatprep.subr.bf16.mxu0 0
    %297 = vmatpush1.bf16.msra.mxu0 0
    %298 = vmatprep.subr.bf16.mxu0 0
    %299 = vmatpush1.bf16.msra.mxu0 0
    %300 = vmatprep.mubr.bf16.mxu0 0
    %301 = vmatmul.mubr.bf16.gmra.mrb[0].mxu0 %v266
    %v302 = vpop.f32.mrb[0].mxu0
    %v303 = vadd.f32 0.0, %v302
    %v304 = vpop.f32.mrb[0].mxu0
    %v305 = vpop.f32.mrb[0].mxu0
    %v306 = vadd.f32 0.0, %v305
    %v307 = vpop.f32.mrb[0].mxu0
    %308 = vdwg.mxu0
    %v309 = vpack.c.bf16 %v306, %v303
    %v310 = vld [vmem:[%s4] sm:$0x1]
    %v312 = vpack.i.b16 %v310, %v310
    %v314 = vlaneseq
    %v315 = vshrl.u32 %v314, 7
    %v316 = vsub.s32 0, %v315
    %v317 = vrot.slane %v312, %v316
    %v318 = vadd.bf16 %v309, %v317
    %v319 = vmax.bf16 %v318, 0
    %v320 = vld [vmem:[#allocation8] sm:$0xff]
    %v321 = vld [vmem:[#allocation8 + $0x8] sm:$0xff]
    %v322 = vld [vmem:[#allocation8 + $0x10] sm:$0xff]
    %v323 = vld [vmem:[#allocation8 + $0x18] sm:$0xff]
    %v324 = vld [vmem:[#allocation8 + $0x20] sm:$0xff]
    %v325 = vld [vmem:[#allocation8 + $0x28] sm:$0xff]
    %v326 = vld [vmem:[#allocation8 + $0x30] sm:$0xff]
    %v327 = vld [vmem:[#allocation8 + $0x38] sm:$0xff]
    %v328 = vld [vmem:[#allocation8 + $0x40] sm:$0xff]
    %v329 = vld [vmem:[#allocation8 + $0x48] sm:$0xff]
    %v330 = vld [vmem:[#allocation8 + $0x50] sm:$0xff]
    %v331 = vld [vmem:[#allocation8 + $0x58] sm:$0xff]
    %v332 = vld [vmem:[#allocation8 + $0x60] sm:$0xff]
    %v333 = vld [vmem:[#allocation8 + $0x68] sm:$0xff]
    %v334 = vld [vmem:[#allocation8 + $0x70] sm:$0xff]
    %v335 = vld [vmem:[#allocation8 + $0x78] sm:$0xff]
    %v352 = vunpack.c.l.b16 %v320
    %v353 = vunpack.c.h.b16 %v320
    %v354 = vunpack.c.l.b16 %v321
    %v355 = vunpack.c.h.b16 %v321
    %v356 = vunpack.c.l.b16 %v322
    %v357 = vunpack.c.h.b16 %v322
    %v358 = vunpack.c.l.b16 %v323
    %v359 = vunpack.c.h.b16 %v323
    %v360 = vunpack.c.l.b16 %v324
    %v361 = vunpack.c.h.b16 %v324
    %v362 = vunpack.c.l.b16 %v325
    %v363 = vunpack.c.h.b16 %v325
    %v364 = vunpack.c.l.b16 %v326
    %v365 = vunpack.c.h.b16 %v326
    %v366 = vunpack.c.l.b16 %v327
    %v367 = vunpack.c.h.b16 %v327
    %v368 = vunpack.c.l.b16 %v328
    %v369 = vunpack.c.h.b16 %v328
    %v370 = vunpack.c.l.b16 %v329
    %v371 = vunpack.c.h.b16 %v329
    %v372 = vunpack.c.l.b16 %v330
    %v373 = vunpack.c.h.b16 %v330
    %v374 = vunpack.c.l.b16 %v331
    %v375 = vunpack.c.h.b16 %v331
    %v376 = vunpack.c.l.b16 %v332
    %v377 = vunpack.c.h.b16 %v332
    %v378 = vunpack.c.l.b16 %v333
    %v379 = vunpack.c.h.b16 %v333
    %v380 = vunpack.c.l.b16 %v334
    %v381 = vunpack.c.h.b16 %v334
    %v382 = vunpack.c.l.b16 %v335
    %v383 = vunpack.c.h.b16 %v335
    %v384 = vpack.c.b16 %v354, %v352
    %v385 = vpack.c.b16 %v355, %v353
    %v386 = vpack.c.b16 %v358, %v356
    %v387 = vpack.c.b16 %v359, %v357
    %v388 = vpack.c.b16 %v362, %v360
    %v389 = vpack.c.b16 %v363, %v361
    %v390 = vpack.c.b16 %v366, %v364
    %v391 = vpack.c.b16 %v367, %v365
    %v392 = vpack.c.b16 %v370, %v368
    %v393 = vpack.c.b16 %v371, %v369
    %v394 = vpack.c.b16 %v374, %v372
    %v395 = vpack.c.b16 %v375, %v373
    %v396 = vpack.c.b16 %v378, %v376
    %v397 = vpack.c.b16 %v379, %v377
    %v398 = vpack.c.b16 %v382, %v380
    %v399 = vpack.c.b16 %v383, %v381
    %416 = vmatprep.subr.bf16.mxu0 %v385
    %417 = vmatpush1.bf16.msra.mxu0 %v384
    %418 = vmatprep.subr.bf16.mxu0 %v387
    %419 = vmatpush1.bf16.msra.mxu0 %v386
    %420 = vmatprep.subr.bf16.mxu0 %v389
    %421 = vmatpush1.bf16.msra.mxu0 %v388
    %422 = vmatprep.subr.bf16.mxu0 %v391
    %423 = vmatpush1.bf16.msra.mxu0 %v390
    %424 = vmatprep.subr.bf16.mxu0 %v393
    %425 = vmatpush1.bf16.msra.mxu0 %v392
    %426 = vmatprep.subr.bf16.mxu0 %v395
    %427 = vmatpush1.bf16.msra.mxu0 %v394
    %428 = vmatprep.subr.bf16.mxu0 %v397
    %429 = vmatpush1.bf16.msra.mxu0 %v396
    %430 = vmatprep.subr.bf16.mxu0 %v399
    %431 = vmatpush1.bf16.msra.mxu0 %v398
    %432 = vmatprep.subr.bf16.mxu0 0
    %433 = vmatpush1.bf16.msra.mxu0 0
    %434 = vmatprep.subr.bf16.mxu0 0
    %435 = vmatpush1.bf16.msra.mxu0 0
    %436 = vmatprep.subr.bf16.mxu0 0
    %437 = vmatpush1.bf16.msra.mxu0 0
    %438 = vmatprep.subr.bf16.mxu0 0
    %439 = vmatpush1.bf16.msra.mxu0 0
    %440 = vmatprep.subr.bf16.mxu0 0
    %441 = vmatpush1.bf16.msra.mxu0 0
    %442 = vmatprep.subr.bf16.mxu0 0
    %443 = vmatpush1.bf16.msra.mxu0 0
    %444 = vmatprep.subr.bf16.mxu0 0
    %445 = vmatpush1.bf16.msra.mxu0 0
    %446 = vmatprep.subr.bf16.mxu0 0
    %447 = vmatpush1.bf16.msra.mxu0 0
    %448 = vmatprep.mubr.bf16.mxu0 0
    %449 = vmatmul.mubr.bf16.gmra.mrb[0].mxu0 %v319
    %v450 = vpop.f32.mrb[0].mxu0
    %v451 = vadd.f32 0.0, %v450
    %v452 = vpop.f32.mrb[0].mxu0
    %v453 = vadd.f32 0.0, %v452
    %v454 = vpop.f32.mrb[0].mxu0
    %v455 = vadd.f32 0.0, %v454
    %v456 = vpop.f32.mrb[0].mxu0
    %v457 = vadd.f32 0.0, %v456
    %458 = vdwg.mxu0
    %v459 = vpack.c.bf16 %v455, %v451
    %v460 = vpack.c.bf16 %v457, %v453
    %v461 = vld [vmem:[%s6] sm:$0x3]
    %v464 = vunpack.c.l.s4 1966171168
    %v465 = vunpack.c.0.s8 %v464
    %v466 = vlaneseq
    %v467 = vshrl.u32 %v466, 7
    %v468 = vsub.s32 %v465, %v467
    %v469 = vrot.slane %v461, %v468
    %v470 = vcombine.high %v469, %v469
    %v472 = vunpack.c.l.s4 1966171168
    %v473 = vunpack.c.0.s8 %v472
    %v474 = vlaneseq
    %v475 = vshrl.u32 %v474, 7
    %v476 = vsub.s32 %v473, %v475
    %v477 = vrot.slane %v469, %v476
    %v479 = vunpack.c.l.s4 1966171168
    %v480 = vunpack.c.0.s8 %v479
    %v481 = vlaneseq
    %v482 = vshrl.u32 %v481, 7
    %v483 = vsub.s32 %v480, %v482
    %v484 = vrot.slane %v470, %v483
    %v486 = vpack.i.b16 %v477, %v477
    %v488 = vlaneseq
    %v489 = vshrl.u32 %v488, 7
    %v490 = vsub.s32 0, %v489
    %v491 = vrot.slane %v486, %v490
    %v493 = vpack.i.b16 %v484, %v484
    %v495 = vlaneseq
    %v496 = vshrl.u32 %v495, 7
    %v497 = vsub.s32 0, %v496
    %v498 = vrot.slane %v493, %v497
    %v499 = vadd.bf16 %v459, %v491
    %v500 = vadd.bf16 %v460, %v498
    %v501 = vmax.bf16 %v499, 0
    %v502 = vmax.bf16 %v500, 0
    %v503 = vld [vmem:[#allocation10] sm:$0xff]
    %v504 = vld [vmem:[#allocation10 + $0x8] sm:$0xff]
    %v505 = vld [vmem:[#allocation10 + $0x10] sm:$0xff]
    %v506 = vld [vmem:[#allocation10 + $0x18] sm:$0xff]
    %v507 = vld [vmem:[#allocation10 + $0x20] sm:$0xff]
    %v508 = vld [vmem:[#allocation10 + $0x28] sm:$0xff]
    %v509 = vld [vmem:[#allocation10 + $0x30] sm:$0xff]
    %v510 = vld [vmem:[#allocation10 + $0x38] sm:$0xff]
    %v511 = vld [vmem:[#allocation10 + $0x40] sm:$0xff]
    %v512 = vld [vmem:[#allocation10 + $0x48] sm:$0xff]
    %v513 = vld [vmem:[#allocation10 + $0x50] sm:$0xff]
    %v514 = vld [vmem:[#allocation10 + $0x58] sm:$0xff]
    %v515 = vld [vmem:[#allocation10 + $0x60] sm:$0xff]
    %v516 = vld [vmem:[#allocation10 + $0x68] sm:$0xff]
    %v517 = vld [vmem:[#allocation10 + $0x70] sm:$0xff]
    %v518 = vld [vmem:[#allocation10 + $0x78] sm:$0xff]
    %v519 = vld [vmem:[#allocation10 + $0x80] sm:$0xff]
    %v520 = vld [vmem:[#allocation10 + $0x88] sm:$0xff]
    %v521 = vld [vmem:[#allocation10 + $0x90] sm:$0xff]
    %v522 = vld [vmem:[#allocation10 + $0x98] sm:$0xff]
    %v523 = vld [vmem:[#allocation10 + $0xa0] sm:$0xff]
    %v524 = vld [vmem:[#allocation10 + $0xa8] sm:$0xff]
    %v525 = vld [vmem:[#allocation10 + $0xb0] sm:$0xff]
    %v526 = vld [vmem:[#allocation10 + $0xb8] sm:$0xff]
    %v527 = vld [vmem:[#allocation10 + $0xc0] sm:$0xff]
    %v528 = vld [vmem:[#allocation10 + $0xc8] sm:$0xff]
    %v529 = vld [vmem:[#allocation10 + $0xd0] sm:$0xff]
    %v530 = vld [vmem:[#allocation10 + $0xd8] sm:$0xff]
    %v531 = vld [vmem:[#allocation10 + $0xe0] sm:$0xff]
    %v532 = vld [vmem:[#allocation10 + $0xe8] sm:$0xff]
    %v533 = vld [vmem:[#allocation10 + $0xf0] sm:$0xff]
    %v534 = vld [vmem:[#allocation10 + $0xf8] sm:$0xff]
    %v535 = vld [vmem:[#allocation10 + $0x100] sm:$0xff]
    %v536 = vld [vmem:[#allocation10 + $0x108] sm:$0xff]
    %v537 = vld [vmem:[#allocation10 + $0x110] sm:$0xff]
    %v538 = vld [vmem:[#allocation10 + $0x118] sm:$0xff]
    %v539 = vld [vmem:[#allocation10 + $0x120] sm:$0xff]
    %v540 = vld [vmem:[#allocation10 + $0x128] sm:$0xff]
    %v541 = vld [vmem:[#allocation10 + $0x130] sm:$0xff]
    %v542 = vld [vmem:[#allocation10 + $0x138] sm:$0xff]
    %v543 = vld [vmem:[#allocation10 + $0x140] sm:$0xff]
    %v544 = vld [vmem:[#allocation10 + $0x148] sm:$0xff]
    %v545 = vld [vmem:[#allocation10 + $0x150] sm:$0xff]
    %v546 = vld [vmem:[#allocation10 + $0x158] sm:$0xff]
    %v547 = vld [vmem:[#allocation10 + $0x160] sm:$0xff]
    %v548 = vld [vmem:[#allocation10 + $0x168] sm:$0xff]
    %v549 = vld [vmem:[#allocation10 + $0x170] sm:$0xff]
    %v550 = vld [vmem:[#allocation10 + $0x178] sm:$0xff]
    %v551 = vld [vmem:[#allocation10 + $0x180] sm:$0xff]
    %v552 = vld [vmem:[#allocation10 + $0x188] sm:$0xff]
    %v553 = vld [vmem:[#allocation10 + $0x190] sm:$0xff]
    %v554 = vld [vmem:[#allocation10 + $0x198] sm:$0xff]
    %v555 = vld [vmem:[#allocation10 + $0x1a0] sm:$0xff]
    %v556 = vld [vmem:[#allocation10 + $0x1a8] sm:$0xff]
    %v557 = vld [vmem:[#allocation10 + $0x1b0] sm:$0xff]
    %v558 = vld [vmem:[#allocation10 + $0x1b8] sm:$0xff]
    %v559 = vld [vmem:[#allocation10 + $0x1c0] sm:$0xff]
    %v560 = vld [vmem:[#allocation10 + $0x1c8] sm:$0xff]
    %v561 = vld [vmem:[#allocation10 + $0x1d0] sm:$0xff]
    %v562 = vld [vmem:[#allocation10 + $0x1d8] sm:$0xff]
    %v563 = vld [vmem:[#allocation10 + $0x1e0] sm:$0xff]
    %v564 = vld [vmem:[#allocation10 + $0x1e8] sm:$0xff]
    %v565 = vld [vmem:[#allocation10 + $0x1f0] sm:$0xff]
    %v566 = vld [vmem:[#allocation10 + $0x1f8] sm:$0xff]
    %v631 = vunpack.c.l.b16 %v503
    %v632 = vunpack.c.h.b16 %v503
    %v633 = vunpack.c.l.b16 %v504
    %v634 = vunpack.c.h.b16 %v504
    %v635 = vunpack.c.l.b16 %v505
    %v636 = vunpack.c.h.b16 %v505
    %v637 = vunpack.c.l.b16 %v506
    %v638 = vunpack.c.h.b16 %v506
    %v639 = vunpack.c.l.b16 %v507
    %v640 = vunpack.c.h.b16 %v507
    %v641 = vunpack.c.l.b16 %v508
    %v642 = vunpack.c.h.b16 %v508
    %v643 = vunpack.c.l.b16 %v509
    %v644 = vunpack.c.h.b16 %v509
    %v645 = vunpack.c.l.b16 %v510
    %v646 = vunpack.c.h.b16 %v510
    %v647 = vunpack.c.l.b16 %v511
    %v648 = vunpack.c.h.b16 %v511
    %v649 = vunpack.c.l.b16 %v512
    %v650 = vunpack.c.h.b16 %v512
    %v651 = vunpack.c.l.b16 %v513
    %v652 = vunpack.c.h.b16 %v513
    %v653 = vunpack.c.l.b16 %v514
    %v654 = vunpack.c.h.b16 %v514
    %v655 = vunpack.c.l.b16 %v515
    %v656 = vunpack.c.h.b16 %v515
    %v657 = vunpack.c.l.b16 %v516
    %v658 = vunpack.c.h.b16 %v516
    %v659 = vunpack.c.l.b16 %v517
    %v660 = vunpack.c.h.b16 %v517
    %v661 = vunpack.c.l.b16 %v518
    %v662 = vunpack.c.h.b16 %v518
    %v663 = vunpack.c.l.b16 %v519
    %v664 = vunpack.c.h.b16 %v519
    %v665 = vunpack.c.l.b16 %v520
    %v666 = vunpack.c.h.b16 %v520
    %v667 = vunpack.c.l.b16 %v521
    %v668 = vunpack.c.h.b16 %v521
    %v669 = vunpack.c.l.b16 %v522
    %v670 = vunpack.c.h.b16 %v522
    %v671 = vunpack.c.l.b16 %v523
    %v672 = vunpack.c.h.b16 %v523
    %v673 = vunpack.c.l.b16 %v524
    %v674 = vunpack.c.h.b16 %v524
    %v675 = vunpack.c.l.b16 %v525
    %v676 = vunpack.c.h.b16 %v525
    %v677 = vunpack.c.l.b16 %v526
    %v678 = vunpack.c.h.b16 %v526
    %v679 = vunpack.c.l.b16 %v527
    %v680 = vunpack.c.h.b16 %v527
    %v681 = vunpack.c.l.b16 %v528
    %v682 = vunpack.c.h.b16 %v528
    %v683 = vunpack.c.l.b16 %v529
    %v684 = vunpack.c.h.b16 %v529
    %v685 = vunpack.c.l.b16 %v530
    %v686 = vunpack.c.h.b16 %v530
    %v687 = vunpack.c.l.b16 %v531
    %v688 = vunpack.c.h.b16 %v531
    %v689 = vunpack.c.l.b16 %v532
    %v690 = vunpack.c.h.b16 %v532
    %v691 = vunpack.c.l.b16 %v533
    %v692 = vunpack.c.h.b16 %v533
    %v693 = vunpack.c.l.b16 %v534
    %v694 = vunpack.c.h.b16 %v534
    %v695 = vunpack.c.l.b16 %v535
    %v696 = vunpack.c.h.b16 %v535
    %v697 = vunpack.c.l.b16 %v536
    %v698 = vunpack.c.h.b16 %v536
    %v699 = vunpack.c.l.b16 %v537
    %v700 = vunpack.c.h.b16 %v537
    %v701 = vunpack.c.l.b16 %v538
    %v702 = vunpack.c.h.b16 %v538
    %v703 = vunpack.c.l.b16 %v539
    %v704 = vunpack.c.h.b16 %v539
    %v705 = vunpack.c.l.b16 %v540
    %v706 = vunpack.c.h.b16 %v540
    %v707 = vunpack.c.l.b16 %v541
    %v708 = vunpack.c.h.b16 %v541
    %v709 = vunpack.c.l.b16 %v542
    %v710 = vunpack.c.h.b16 %v542
    %v711 = vunpack.c.l.b16 %v543
    %v712 = vunpack.c.h.b16 %v543
    %v713 = vunpack.c.l.b16 %v544
    %v714 = vunpack.c.h.b16 %v544
    %v715 = vunpack.c.l.b16 %v545
    %v716 = vunpack.c.h.b16 %v545
    %v717 = vunpack.c.l.b16 %v546
    %v718 = vunpack.c.h.b16 %v546
    %v719 = vunpack.c.l.b16 %v547
    %v720 = vunpack.c.h.b16 %v547
    %v721 = vunpack.c.l.b16 %v548
    %v722 = vunpack.c.h.b16 %v548
    %v723 = vunpack.c.l.b16 %v549
    %v724 = vunpack.c.h.b16 %v549
    %v725 = vunpack.c.l.b16 %v550
    %v726 = vunpack.c.h.b16 %v550
    %v727 = vunpack.c.l.b16 %v551
    %v728 = vunpack.c.h.b16 %v551
    %v729 = vunpack.c.l.b16 %v552
    %v730 = vunpack.c.h.b16 %v552
    %v731 = vunpack.c.l.b16 %v553
    %v732 = vunpack.c.h.b16 %v553
    %v733 = vunpack.c.l.b16 %v554
    %v734 = vunpack.c.h.b16 %v554
    %v735 = vunpack.c.l.b16 %v555
    %v736 = vunpack.c.h.b16 %v555
    %v737 = vunpack.c.l.b16 %v556
    %v738 = vunpack.c.h.b16 %v556
    %v739 = vunpack.c.l.b16 %v557
    %v740 = vunpack.c.h.b16 %v557
    %v741 = vunpack.c.l.b16 %v558
    %v742 = vunpack.c.h.b16 %v558
    %v743 = vunpack.c.l.b16 %v559
    %v744 = vunpack.c.h.b16 %v559
    %v745 = vunpack.c.l.b16 %v560
    %v746 = vunpack.c.h.b16 %v560
    %v747 = vunpack.c.l.b16 %v561
    %v748 = vunpack.c.h.b16 %v561
    %v749 = vunpack.c.l.b16 %v562
    %v750 = vunpack.c.h.b16 %v562
    %v751 = vunpack.c.l.b16 %v563
    %v752 = vunpack.c.h.b16 %v563
    %v753 = vunpack.c.l.b16 %v564
    %v754 = vunpack.c.h.b16 %v564
    %v755 = vunpack.c.l.b16 %v565
    %v756 = vunpack.c.h.b16 %v565
    %v757 = vunpack.c.l.b16 %v566
    %v758 = vunpack.c.h.b16 %v566
    %v759 = vpack.c.b16 %v635, %v631
    %v760 = vpack.c.b16 %v636, %v632
    %v761 = vpack.c.b16 %v637, %v633
    %v762 = vpack.c.b16 %v638, %v634
    %v763 = vpack.c.b16 %v643, %v639
    %v764 = vpack.c.b16 %v644, %v640
    %v765 = vpack.c.b16 %v645, %v641
    %v766 = vpack.c.b16 %v646, %v642
    %v767 = vpack.c.b16 %v651, %v647
    %v768 = vpack.c.b16 %v652, %v648
    %v769 = vpack.c.b16 %v653, %v649
    %v770 = vpack.c.b16 %v654, %v650
    %v771 = vpack.c.b16 %v659, %v655
    %v772 = vpack.c.b16 %v660, %v656
    %v773 = vpack.c.b16 %v661, %v657
    %v774 = vpack.c.b16 %v662, %v658
    %v775 = vpack.c.b16 %v667, %v663
    %v776 = vpack.c.b16 %v668, %v664
    %v777 = vpack.c.b16 %v669, %v665
    %v778 = vpack.c.b16 %v670, %v666
    %v779 = vpack.c.b16 %v675, %v671
    %v780 = vpack.c.b16 %v676, %v672
    %v781 = vpack.c.b16 %v677, %v673
    %v782 = vpack.c.b16 %v678, %v674
    %v783 = vpack.c.b16 %v683, %v679
    %v784 = vpack.c.b16 %v684, %v680
    %v785 = vpack.c.b16 %v685, %v681
    %v786 = vpack.c.b16 %v686, %v682
    %v787 = vpack.c.b16 %v691, %v687
    %v788 = vpack.c.b16 %v692, %v688
    %v789 = vpack.c.b16 %v693, %v689
    %v790 = vpack.c.b16 %v694, %v690
    %v791 = vpack.c.b16 %v699, %v695
    %v792 = vpack.c.b16 %v700, %v696
    %v793 = vpack.c.b16 %v701, %v697
    %v794 = vpack.c.b16 %v702, %v698
    %v795 = vpack.c.b16 %v707, %v703
    %v796 = vpack.c.b16 %v708, %v704
    %v797 = vpack.c.b16 %v709, %v705
    %v798 = vpack.c.b16 %v710, %v706
    %v799 = vpack.c.b16 %v715, %v711
    %v800 = vpack.c.b16 %v716, %v712
    %v801 = vpack.c.b16 %v717, %v713
    %v802 = vpack.c.b16 %v718, %v714
    %v803 = vpack.c.b16 %v723, %v719
    %v804 = vpack.c.b16 %v724, %v720
    %v805 = vpack.c.b16 %v725, %v721
    %v806 = vpack.c.b16 %v726, %v722
    %v807 = vpack.c.b16 %v731, %v727
    %v808 = vpack.c.b16 %v732, %v728
    %v809 = vpack.c.b16 %v733, %v729
    %v810 = vpack.c.b16 %v734, %v730
    %v811 = vpack.c.b16 %v739, %v735
    %v812 = vpack.c.b16 %v740, %v736
    %v813 = vpack.c.b16 %v741, %v737
    %v814 = vpack.c.b16 %v742, %v738
    %v815 = vpack.c.b16 %v747, %v743
    %v816 = vpack.c.b16 %v748, %v744
    %v817 = vpack.c.b16 %v749, %v745
    %v818 = vpack.c.b16 %v750, %v746
    %v819 = vpack.c.b16 %v755, %v751
    %v820 = vpack.c.b16 %v756, %v752
    %v821 = vpack.c.b16 %v757, %v753
    %v822 = vpack.c.b16 %v758, %v754
    %887 = vmatprep.subr.bf16.mxu0 %v760
    %888 = vmatpush1.bf16.msra.mxu0 %v759
    %889 = vmatprep.subr.bf16.mxu0 %v764
    %890 = vmatpush1.bf16.msra.mxu0 %v763
    %891 = vmatprep.subr.bf16.mxu0 %v768
    %892 = vmatpush1.bf16.msra.mxu0 %v767
    %893 = vmatprep.subr.bf16.mxu0 %v772
    %894 = vmatpush1.bf16.msra.mxu0 %v771
    %895 = vmatprep.subr.bf16.mxu0 %v776
    %896 = vmatpush1.bf16.msra.mxu0 %v775
    %897 = vmatprep.subr.bf16.mxu0 %v780
    %898 = vmatpush1.bf16.msra.mxu0 %v779
    %899 = vmatprep.subr.bf16.mxu0 %v784
    %900 = vmatpush1.bf16.msra.mxu0 %v783
    %901 = vmatprep.subr.bf16.mxu0 %v788
    %902 = vmatpush1.bf16.msra.mxu0 %v787
    %903 = vmatprep.subr.bf16.mxu0 %v792
    %904 = vmatpush1.bf16.msra.mxu0 %v791
    %905 = vmatprep.subr.bf16.mxu0 %v796
    %906 = vmatpush1.bf16.msra.mxu0 %v795
    %907 = vmatprep.subr.bf16.mxu0 %v800
    %908 = vmatpush1.bf16.msra.mxu0 %v799
    %909 = vmatprep.subr.bf16.mxu0 %v804
    %910 = vmatpush1.bf16.msra.mxu0 %v803
    %911 = vmatprep.subr.bf16.mxu0 %v808
    %912 = vmatpush1.bf16.msra.mxu0 %v807
    %913 = vmatprep.subr.bf16.mxu0 %v812
    %914 = vmatpush1.bf16.msra.mxu0 %v811
    %915 = vmatprep.subr.bf16.mxu0 %v816
    %916 = vmatpush1.bf16.msra.mxu0 %v815
    %917 = vmatprep.subr.bf16.mxu0 %v820
    %918 = vmatpush1.bf16.msra.mxu0 %v819
    %919 = vmatprep.mubr.bf16.mxu0 %v502
    %920 = vmatmul.mubr.bf16.gmra.mrb[0].mxu0 %v501
    %v921 = vpop.f32.mrb[0].mxu0
    %v922 = vadd.f32 0.0, %v921
    %v923 = vpop.f32.mrb[0].mxu0
    %v924 = vadd.f32 0.0, %v923
    %v925 = vpop.f32.mrb[0].mxu0
    %v926 = vadd.f32 0.0, %v925
    %v927 = vpop.f32.mrb[0].mxu0
    %v928 = vadd.f32 0.0, %v927
    %929 = vdwg.mxu0
    %930 = vmatprep.subr.bf16.mxu0 %v762
    %931 = vmatpush1.bf16.msra.mxu0 %v761
    %932 = vmatprep.subr.bf16.mxu0 %v766
    %933 = vmatpush1.bf16.msra.mxu0 %v765
    %934 = vmatprep.subr.bf16.mxu0 %v770
    %935 = vmatpush1.bf16.msra.mxu0 %v769
    %936 = vmatprep.subr.bf16.mxu0 %v774
    %937 = vmatpush1.bf16.msra.mxu0 %v773
    %938 = vmatprep.subr.bf16.mxu0 %v778
    %939 = vmatpush1.bf16.msra.mxu0 %v777
    %940 = vmatprep.subr.bf16.mxu0 %v782
    %941 = vmatpush1.bf16.msra.mxu0 %v781
    %942 = vmatprep.subr.bf16.mxu0 %v786
    %943 = vmatpush1.bf16.msra.mxu0 %v785
    %944 = vmatprep.subr.bf16.mxu0 %v790
    %945 = vmatpush1.bf16.msra.mxu0 %v789
    %946 = vmatprep.subr.bf16.mxu0 %v794
    %947 = vmatpush1.bf16.msra.mxu0 %v793
    %948 = vmatprep.subr.bf16.mxu0 %v798
    %949 = vmatpush1.bf16.msra.mxu0 %v797
    %950 = vmatprep.subr.bf16.mxu0 %v802
    %951 = vmatpush1.bf16.msra.mxu0 %v801
    %952 = vmatprep.subr.bf16.mxu0 %v806
    %953 = vmatpush1.bf16.msra.mxu0 %v805
    %954 = vmatprep.subr.bf16.mxu0 %v810
    %955 = vmatpush1.bf16.msra.mxu0 %v809
    %956 = vmatprep.subr.bf16.mxu0 %v814
    %957 = vmatpush1.bf16.msra.mxu0 %v813
    %958 = vmatprep.subr.bf16.mxu0 %v818
    %959 = vmatpush1.bf16.msra.mxu0 %v817
    %960 = vmatprep.subr.bf16.mxu0 %v822
    %961 = vmatpush1.bf16.msra.mxu0 %v821
    %962 = vmatprep.mubr.bf16.mxu0 %v502
    %963 = vmatmul.mubr.bf16.gmra.mrb[0].mxu0 %v501
    %v964 = vpop.f32.mrb[0].mxu0
    %v965 = vadd.f32 0.0, %v964
    %v966 = vpop.f32.mrb[0].mxu0
    %v967 = vadd.f32 0.0, %v966
    %v968 = vpop.f32.mrb[0].mxu0
    %v969 = vadd.f32 0.0, %v968
    %v970 = vpop.f32.mrb[0].mxu0
    %v971 = vadd.f32 0.0, %v970
    %972 = vdwg.mxu0
    %v973 = vpack.c.bf16 %v926, %v922
    %v974 = vpack.c.bf16 %v928, %v924
    %v975 = vpack.c.bf16 %v969, %v965
    %v976 = vpack.c.bf16 %v971, %v967
    %v977 = vld [vmem:[%s8] sm:$0xf]
    %v980 = vunpack.c.l.s4 1966171168
    %v981 = vunpack.c.0.s8 %v980
    %v982 = vlaneseq
    %v983 = vshrl.u32 %v982, 7
    %v984 = vsub.s32 %v981, %v983
    %v985 = vrot.slane %v977, %v984
    %v986 = vcombine.high %v985, %v985
    %v988 = vunpack.c.l.s4 1966171168
    %v989 = vunpack.c.0.s8 %v988
    %v990 = vlaneseq
    %v991 = vshrl.u32 %v990, 7
    %v992 = vsub.s32 %v989, %v991
    %v993 = vrot.slane %v985, %v992
    %v995 = vunpack.c.l.s4 1966171168
    %v996 = vunpack.c.0.s8 %v995
    %v997 = vlaneseq
    %v998 = vshrl.u32 %v997, 7
    %v999 = vsub.s32 %v996, %v998
    %v1000 = vrot.slane %v986, %v999
    %v1001 = vcombine.high %v993, %v993
    %v1002 = vcombine.high %v1000, %v1000
    %v1004 = vpack.i.b16 %v993, %v993
    %v1006 = vlaneseq
    %v1007 = vshrl.u32 %v1006, 7
    %v1008 = vsub.s32 0, %v1007
    %v1009 = vrot.slane %v1004, %v1008
    %v1011 = vpack.i.b16 %v1000, %v1000
    %v1013 = vlaneseq
    %v1014 = vshrl.u32 %v1013, 7
    %v1015 = vsub.s32 0, %v1014
    %v1016 = vrot.slane %v1011, %v1015
    %v1018 = vpack.i.b16 %v1001, %v1001
    %v1020 = vlaneseq
    %v1021 = vshrl.u32 %v1020, 7
    %v1022 = vsub.s32 0, %v1021
    %v1023 = vrot.slane %v1018, %v1022
    %v1025 = vpack.i.b16 %v1002, %v1002
    %v1027 = vlaneseq
    %v1028 = vshrl.u32 %v1027, 7
    %v1029 = vsub.s32 0, %v1028
    %v1030 = vrot.slane %v1025, %v1029
    %v1031 = vadd.bf16 %v973, %v1009
    %v1032 = vadd.bf16 %v974, %v1016
    %v1033 = vadd.bf16 %v975, %v1023
    %v1034 = vadd.bf16 %v976, %v1030
    %v1035 = vmax.bf16 %v1031, 0
    %v1036 = vmax.bf16 %v1032, 0
    %v1037 = vmax.bf16 %v1033, 0
    %v1038 = vmax.bf16 %v1034, 0
    %v1039 = vld [vmem:[#allocation11] sm:$0xff]
    %v1040 = vld [vmem:[#allocation11 + $0x8] sm:$0xff]
    %v1041 = vld [vmem:[#allocation11 + $0x10] sm:$0xff]
    %v1042 = vld [vmem:[#allocation11 + $0x18] sm:$0xff]
    %v1043 = vld [vmem:[#allocation11 + $0x20] sm:$0xff]
    %v1044 = vld [vmem:[#allocation11 + $0x28] sm:$0xff]
    %v1045 = vld [vmem:[#allocation11 + $0x30] sm:$0xff]
    %v1046 = vld [vmem:[#allocation11 + $0x38] sm:$0xff]
    %v1047 = vld [vmem:[#allocation11 + $0x40] sm:$0xff]
    %v1048 = vld [vmem:[#allocation11 + $0x48] sm:$0xff]
    %v1049 = vld [vmem:[#allocation11 + $0x50] sm:$0xff]
    %v1050 = vld [vmem:[#allocation11 + $0x58] sm:$0xff]
    %v1051 = vld [vmem:[#allocation11 + $0x60] sm:$0xff]
    %v1052 = vld [vmem:[#allocation11 + $0x68] sm:$0xff]
    %v1053 = vld [vmem:[#allocation11 + $0x70] sm:$0xff]
    %v1054 = vld [vmem:[#allocation11 + $0x78] sm:$0xff]
    %v1055 = vld [vmem:[#allocation11 + $0x80] sm:$0xff]
    %v1056 = vld [vmem:[#allocation11 + $0x88] sm:$0xff]
    %v1057 = vld [vmem:[#allocation11 + $0x90] sm:$0xff]
    %v1058 = vld [vmem:[#allocation11 + $0x98] sm:$0xff]
    %v1059 = vld [vmem:[#allocation11 + $0xa0] sm:$0xff]
    %v1060 = vld [vmem:[#allocation11 + $0xa8] sm:$0xff]
    %v1061 = vld [vmem:[#allocation11 + $0xb0] sm:$0xff]
    %v1062 = vld [vmem:[#allocation11 + $0xb8] sm:$0xff]
    %v1063 = vld [vmem:[#allocation11 + $0xc0] sm:$0xff]
    %v1064 = vld [vmem:[#allocation11 + $0xc8] sm:$0xff]
    %v1065 = vld [vmem:[#allocation11 + $0xd0] sm:$0xff]
    %v1066 = vld [vmem:[#allocation11 + $0xd8] sm:$0xff]
    %v1067 = vld [vmem:[#allocation11 + $0xe0] sm:$0xff]
    %v1068 = vld [vmem:[#allocation11 + $0xe8] sm:$0xff]
    %v1069 = vld [vmem:[#allocation11 + $0xf0] sm:$0xff]
    %v1070 = vld [vmem:[#allocation11 + $0xf8] sm:$0xff]
    %v1071 = vld [vmem:[#allocation11 + $0x100] sm:$0xff]
    %v1072 = vld [vmem:[#allocation11 + $0x108] sm:$0xff]
    %v1073 = vld [vmem:[#allocation11 + $0x110] sm:$0xff]
    %v1074 = vld [vmem:[#allocation11 + $0x118] sm:$0xff]
    %v1075 = vld [vmem:[#allocation11 + $0x120] sm:$0xff]
    %v1076 = vld [vmem:[#allocation11 + $0x128] sm:$0xff]
    %v1077 = vld [vmem:[#allocation11 + $0x130] sm:$0xff]
    %v1078 = vld [vmem:[#allocation11 + $0x138] sm:$0xff]
    %v1079 = vld [vmem:[#allocation11 + $0x140] sm:$0xff]
    %v1080 = vld [vmem:[#allocation11 + $0x148] sm:$0xff]
    %v1081 = vld [vmem:[#allocation11 + $0x150] sm:$0xff]
    %v1082 = vld [vmem:[#allocation11 + $0x158] sm:$0xff]
    %v1083 = vld [vmem:[#allocation11 + $0x160] sm:$0xff]
    %v1084 = vld [vmem:[#allocation11 + $0x168] sm:$0xff]
    %v1085 = vld [vmem:[#allocation11 + $0x170] sm:$0xff]
    %v1086 = vld [vmem:[#allocation11 + $0x178] sm:$0xff]
    %v1087 = vld [vmem:[#allocation11 + $0x180] sm:$0xff]
    %v1088 = vld [vmem:[#allocation11 + $0x188] sm:$0xff]
    %v1089 = vld [vmem:[#allocation11 + $0x190] sm:$0xff]
    %v1090 = vld [vmem:[#allocation11 + $0x198] sm:$0xff]
    %v1091 = vld [vmem:[#allocation11 + $0x1a0] sm:$0xff]
    %v1092 = vld [vmem:[#allocation11 + $0x1a8] sm:$0xff]
    %v1093 = vld [vmem:[#allocation11 + $0x1b0] sm:$0xff]
    %v1094 = vld [vmem:[#allocation11 + $0x1b8] sm:$0xff]
    %v1095 = vld [vmem:[#allocation11 + $0x1c0] sm:$0xff]
    %v1096 = vld [vmem:[#allocation11 + $0x1c8] sm:$0xff]
    %v1097 = vld [vmem:[#allocation11 + $0x1d0] sm:$0xff]
    %v1098 = vld [vmem:[#allocation11 + $0x1d8] sm:$0xff]
    %v1099 = vld [vmem:[#allocation11 + $0x1e0] sm:$0xff]
    %v1100 = vld [vmem:[#allocation11 + $0x1e8] sm:$0xff]
    %v1101 = vld [vmem:[#allocation11 + $0x1f0] sm:$0xff]
    %v1102 = vld [vmem:[#allocation11 + $0x1f8] sm:$0xff]
    %v1167 = vunpack.c.l.b16 %v1039
    %v1168 = vunpack.c.h.b16 %v1039
    %v1169 = vunpack.c.l.b16 %v1040
    %v1170 = vunpack.c.h.b16 %v1040
    %v1171 = vunpack.c.l.b16 %v1041
    %v1172 = vunpack.c.h.b16 %v1041
    %v1173 = vunpack.c.l.b16 %v1042
    %v1174 = vunpack.c.h.b16 %v1042
    %v1175 = vunpack.c.l.b16 %v1043
    %v1176 = vunpack.c.h.b16 %v1043
    %v1177 = vunpack.c.l.b16 %v1044
    %v1178 = vunpack.c.h.b16 %v1044
    %v1179 = vunpack.c.l.b16 %v1045
    %v1180 = vunpack.c.h.b16 %v1045
    %v1181 = vunpack.c.l.b16 %v1046
    %v1182 = vunpack.c.h.b16 %v1046
    %v1183 = vunpack.c.l.b16 %v1047
    %v1184 = vunpack.c.h.b16 %v1047
    %v1185 = vunpack.c.l.b16 %v1048
    %v1186 = vunpack.c.h.b16 %v1048
    %v1187 = vunpack.c.l.b16 %v1049
    %v1188 = vunpack.c.h.b16 %v1049
    %v1189 = vunpack.c.l.b16 %v1050
    %v1190 = vunpack.c.h.b16 %v1050
    %v1191 = vunpack.c.l.b16 %v1051
    %v1192 = vunpack.c.h.b16 %v1051
    %v1193 = vunpack.c.l.b16 %v1052
    %v1194 = vunpack.c.h.b16 %v1052
    %v1195 = vunpack.c.l.b16 %v1053
    %v1196 = vunpack.c.h.b16 %v1053
    %v1197 = vunpack.c.l.b16 %v1054
    %v1198 = vunpack.c.h.b16 %v1054
    %v1199 = vunpack.c.l.b16 %v1055
    %v1200 = vunpack.c.h.b16 %v1055
    %v1201 = vunpack.c.l.b16 %v1056
    %v1202 = vunpack.c.h.b16 %v1056
    %v1203 = vunpack.c.l.b16 %v1057
    %v1204 = vunpack.c.h.b16 %v1057
    %v1205 = vunpack.c.l.b16 %v1058
    %v1206 = vunpack.c.h.b16 %v1058
    %v1207 = vunpack.c.l.b16 %v1059
    %v1208 = vunpack.c.h.b16 %v1059
    %v1209 = vunpack.c.l.b16 %v1060
    %v1210 = vunpack.c.h.b16 %v1060
    %v1211 = vunpack.c.l.b16 %v1061
    %v1212 = vunpack.c.h.b16 %v1061
    %v1213 = vunpack.c.l.b16 %v1062
    %v1214 = vunpack.c.h.b16 %v1062
    %v1215 = vunpack.c.l.b16 %v1063
    %v1216 = vunpack.c.h.b16 %v1063
    %v1217 = vunpack.c.l.b16 %v1064
    %v1218 = vunpack.c.h.b16 %v1064
    %v1219 = vunpack.c.l.b16 %v1065
    %v1220 = vunpack.c.h.b16 %v1065
    %v1221 = vunpack.c.l.b16 %v1066
    %v1222 = vunpack.c.h.b16 %v1066
    %v1223 = vunpack.c.l.b16 %v1067
    %v1224 = vunpack.c.h.b16 %v1067
    %v1225 = vunpack.c.l.b16 %v1068
    %v1226 = vunpack.c.h.b16 %v1068
    %v1227 = vunpack.c.l.b16 %v1069
    %v1228 = vunpack.c.h.b16 %v1069
    %v1229 = vunpack.c.l.b16 %v1070
    %v1230 = vunpack.c.h.b16 %v1070
    %v1231 = vunpack.c.l.b16 %v1071
    %v1232 = vunpack.c.h.b16 %v1071
    %v1233 = vunpack.c.l.b16 %v1072
    %v1234 = vunpack.c.h.b16 %v1072
    %v1235 = vunpack.c.l.b16 %v1073
    %v1236 = vunpack.c.h.b16 %v1073
    %v1237 = vunpack.c.l.b16 %v1074
    %v1238 = vunpack.c.h.b16 %v1074
    %v1239 = vunpack.c.l.b16 %v1075
    %v1240 = vunpack.c.h.b16 %v1075
    %v1241 = vunpack.c.l.b16 %v1076
    %v1242 = vunpack.c.h.b16 %v1076
    %v1243 = vunpack.c.l.b16 %v1077
    %v1244 = vunpack.c.h.b16 %v1077
    %v1245 = vunpack.c.l.b16 %v1078
    %v1246 = vunpack.c.h.b16 %v1078
    %v1247 = vunpack.c.l.b16 %v1079
    %v1248 = vunpack.c.h.b16 %v1079
    %v1249 = vunpack.c.l.b16 %v1080
    %v1250 = vunpack.c.h.b16 %v1080
    %v1251 = vunpack.c.l.b16 %v1081
    %v1252 = vunpack.c.h.b16 %v1081
    %v1253 = vunpack.c.l.b16 %v1082
    %v1254 = vunpack.c.h.b16 %v1082
    %v1255 = vunpack.c.l.b16 %v1083
    %v1256 = vunpack.c.h.b16 %v1083
    %v1257 = vunpack.c.l.b16 %v1084
    %v1258 = vunpack.c.h.b16 %v1084
    %v1259 = vunpack.c.l.b16 %v1085
    %v1260 = vunpack.c.h.b16 %v1085
    %v1261 = vunpack.c.l.b16 %v1086
    %v1262 = vunpack.c.h.b16 %v1086
    %v1263 = vunpack.c.l.b16 %v1087
    %v1264 = vunpack.c.h.b16 %v1087
    %v1265 = vunpack.c.l.b16 %v1088
    %v1266 = vunpack.c.h.b16 %v1088
    %v1267 = vunpack.c.l.b16 %v1089
    %v1268 = vunpack.c.h.b16 %v1089
    %v1269 = vunpack.c.l.b16 %v1090
    %v1270 = vunpack.c.h.b16 %v1090
    %v1271 = vunpack.c.l.b16 %v1091
    %v1272 = vunpack.c.h.b16 %v1091
    %v1273 = vunpack.c.l.b16 %v1092
    %v1274 = vunpack.c.h.b16 %v1092
    %v1275 = vunpack.c.l.b16 %v1093
    %v1276 = vunpack.c.h.b16 %v1093
    %v1277 = vunpack.c.l.b16 %v1094
    %v1278 = vunpack.c.h.b16 %v1094
    %v1279 = vunpack.c.l.b16 %v1095
    %v1280 = vunpack.c.h.b16 %v1095
    %v1281 = vunpack.c.l.b16 %v1096
    %v1282 = vunpack.c.h.b16 %v1096
    %v1283 = vunpack.c.l.b16 %v1097
    %v1284 = vunpack.c.h.b16 %v1097
    %v1285 = vunpack.c.l.b16 %v1098
    %v1286 = vunpack.c.h.b16 %v1098
    %v1287 = vunpack.c.l.b16 %v1099
    %v1288 = vunpack.c.h.b16 %v1099
    %v1289 = vunpack.c.l.b16 %v1100
    %v1290 = vunpack.c.h.b16 %v1100
    %v1291 = vunpack.c.l.b16 %v1101
    %v1292 = vunpack.c.h.b16 %v1101
    %v1293 = vunpack.c.l.b16 %v1102
    %v1294 = vunpack.c.h.b16 %v1102
    %v1295 = vpack.c.b16 %v1169, %v1167
    %v1296 = vpack.c.b16 %v1170, %v1168
    %v1297 = vpack.c.b16 %v1173, %v1171
    %v1298 = vpack.c.b16 %v1174, %v1172
    %v1299 = vpack.c.b16 %v1177, %v1175
    %v1300 = vpack.c.b16 %v1178, %v1176
    %v1301 = vpack.c.b16 %v1181, %v1179
    %v1302 = vpack.c.b16 %v1182, %v1180
    %v1303 = vpack.c.b16 %v1185, %v1183
    %v1304 = vpack.c.b16 %v1186, %v1184
    %v1305 = vpack.c.b16 %v1189, %v1187
    %v1306 = vpack.c.b16 %v1190, %v1188
    %v1307 = vpack.c.b16 %v1193, %v1191
    %v1308 = vpack.c.b16 %v1194, %v1192
    %v1309 = vpack.c.b16 %v1197, %v1195
    %v1310 = vpack.c.b16 %v1198, %v1196
    %v1311 = vpack.c.b16 %v1201, %v1199
    %v1312 = vpack.c.b16 %v1202, %v1200
    %v1313 = vpack.c.b16 %v1205, %v1203
    %v1314 = vpack.c.b16 %v1206, %v1204
    %v1315 = vpack.c.b16 %v1209, %v1207
    %v1316 = vpack.c.b16 %v1210, %v1208
    %v1317 = vpack.c.b16 %v1213, %v1211
    %v1318 = vpack.c.b16 %v1214, %v1212
    %v1319 = vpack.c.b16 %v1217, %v1215
    %v1320 = vpack.c.b16 %v1218, %v1216
    %v1321 = vpack.c.b16 %v1221, %v1219
    %v1322 = vpack.c.b16 %v1222, %v1220
    %v1323 = vpack.c.b16 %v1225, %v1223
    %v1324 = vpack.c.b16 %v1226, %v1224
    %v1325 = vpack.c.b16 %v1229, %v1227
    %v1326 = vpack.c.b16 %v1230, %v1228
    %v1327 = vpack.c.b16 %v1233, %v1231
    %v1328 = vpack.c.b16 %v1234, %v1232
    %v1329 = vpack.c.b16 %v1237, %v1235
    %v1330 = vpack.c.b16 %v1238, %v1236
    %v1331 = vpack.c.b16 %v1241, %v1239
    %v1332 = vpack.c.b16 %v1242, %v1240
    %v1333 = vpack.c.b16 %v1245, %v1243
    %v1334 = vpack.c.b16 %v1246, %v1244
    %v1335 = vpack.c.b16 %v1249, %v1247
    %v1336 = vpack.c.b16 %v1250, %v1248
    %v1337 = vpack.c.b16 %v1253, %v1251
    %v1338 = vpack.c.b16 %v1254, %v1252
    %v1339 = vpack.c.b16 %v1257, %v1255
    %v1340 = vpack.c.b16 %v1258, %v1256
    %v1341 = vpack.c.b16 %v1261, %v1259
    %v1342 = vpack.c.b16 %v1262, %v1260
    %v1343 = vpack.c.b16 %v1265, %v1263
    %v1344 = vpack.c.b16 %v1266, %v1264
    %v1345 = vpack.c.b16 %v1269, %v1267
    %v1346 = vpack.c.b16 %v1270, %v1268
    %v1347 = vpack.c.b16 %v1273, %v1271
    %v1348 = vpack.c.b16 %v1274, %v1272
    %v1349 = vpack.c.b16 %v1277, %v1275
    %v1350 = vpack.c.b16 %v1278, %v1276
    %v1351 = vpack.c.b16 %v1281, %v1279
    %v1352 = vpack.c.b16 %v1282, %v1280
    %v1353 = vpack.c.b16 %v1285, %v1283
    %v1354 = vpack.c.b16 %v1286, %v1284
    %v1355 = vpack.c.b16 %v1289, %v1287
    %v1356 = vpack.c.b16 %v1290, %v1288
    %v1357 = vpack.c.b16 %v1293, %v1291
    %v1358 = vpack.c.b16 %v1294, %v1292
    %1423 = vmatprep.subr.bf16.mxu0 %v1296
    %1424 = vmatpush1.bf16.msra.mxu0 %v1295
    %1425 = vmatprep.subr.bf16.mxu0 %v1298
    %1426 = vmatpush1.bf16.msra.mxu0 %v1297
    %1427 = vmatprep.subr.bf16.mxu0 %v1300
    %1428 = vmatpush1.bf16.msra.mxu0 %v1299
    %1429 = vmatprep.subr.bf16.mxu0 %v1302
    %1430 = vmatpush1.bf16.msra.mxu0 %v1301
    %1431 = vmatprep.subr.bf16.mxu0 %v1304
    %1432 = vmatpush1.bf16.msra.mxu0 %v1303
    %1433 = vmatprep.subr.bf16.mxu0 %v1306
    %1434 = vmatpush1.bf16.msra.mxu0 %v1305
    %1435 = vmatprep.subr.bf16.mxu0 %v1308
    %1436 = vmatpush1.bf16.msra.mxu0 %v1307
    %1437 = vmatprep.subr.bf16.mxu0 %v1310
    %1438 = vmatpush1.bf16.msra.mxu0 %v1309
    %1439 = vmatprep.subr.bf16.mxu0 %v1312
    %1440 = vmatpush1.bf16.msra.mxu0 %v1311
    %1441 = vmatprep.subr.bf16.mxu0 %v1314
    %1442 = vmatpush1.bf16.msra.mxu0 %v1313
    %1443 = vmatprep.subr.bf16.mxu0 %v1316
    %1444 = vmatpush1.bf16.msra.mxu0 %v1315
    %1445 = vmatprep.subr.bf16.mxu0 %v1318
    %1446 = vmatpush1.bf16.msra.mxu0 %v1317
    %1447 = vmatprep.subr.bf16.mxu0 %v1320
    %1448 = vmatpush1.bf16.msra.mxu0 %v1319
    %1449 = vmatprep.subr.bf16.mxu0 %v1322
    %1450 = vmatpush1.bf16.msra.mxu0 %v1321
    %1451 = vmatprep.subr.bf16.mxu0 %v1324
    %1452 = vmatpush1.bf16.msra.mxu0 %v1323
    %1453 = vmatprep.subr.bf16.mxu0 %v1326
    %1454 = vmatpush1.bf16.msra.mxu0 %v1325
    %1455 = vmatprep.mubr.bf16.mxu0 %v1036
    %1456 = vmatmul.mubr.bf16.gmra.mrb[0].mxu0 %v1035
    %v1457 = vpop.f32.mrb[0].mxu0
    %v1458 = vadd.f32 0.0, %v1457
    %v1459 = vpop.f32.mrb[0].mxu0
    %v1460 = vadd.f32 0.0, %v1459
    %v1461 = vpop.f32.mrb[0].mxu0
    %v1462 = vadd.f32 0.0, %v1461
    %v1463 = vpop.f32.mrb[0].mxu0
    %v1464 = vadd.f32 0.0, %v1463
    %1465 = vdwg.mxu0
    %1466 = vmatprep.subr.bf16.mxu0 %v1328
    %1467 = vmatpush1.bf16.msra.mxu0 %v1327
    %1468 = vmatprep.subr.bf16.mxu0 %v1330
    %1469 = vmatpush1.bf16.msra.mxu0 %v1329
    %1470 = vmatprep.subr.bf16.mxu0 %v1332
    %1471 = vmatpush1.bf16.msra.mxu0 %v1331
    %1472 = vmatprep.subr.bf16.mxu0 %v1334
    %1473 = vmatpush1.bf16.msra.mxu0 %v1333
    %1474 = vmatprep.subr.bf16.mxu0 %v1336
    %1475 = vmatpush1.bf16.msra.mxu0 %v1335
    %1476 = vmatprep.subr.bf16.mxu0 %v1338
    %1477 = vmatpush1.bf16.msra.mxu0 %v1337
    %1478 = vmatprep.subr.bf16.mxu0 %v1340
    %1479 = vmatpush1.bf16.msra.mxu0 %v1339
    %1480 = vmatprep.subr.bf16.mxu0 %v1342
    %1481 = vmatpush1.bf16.msra.mxu0 %v1341
    %1482 = vmatprep.subr.bf16.mxu0 %v1344
    %1483 = vmatpush1.bf16.msra.mxu0 %v1343
    %1484 = vmatprep.subr.bf16.mxu0 %v1346
    %1485 = vmatpush1.bf16.msra.mxu0 %v1345
    %1486 = vmatprep.subr.bf16.mxu0 %v1348
    %1487 = vmatpush1.bf16.msra.mxu0 %v1347
    %1488 = vmatprep.subr.bf16.mxu0 %v1350
    %1489 = vmatpush1.bf16.msra.mxu0 %v1349
    %1490 = vmatprep.subr.bf16.mxu0 %v1352
    %1491 = vmatpush1.bf16.msra.mxu0 %v1351
    %1492 = vmatprep.subr.bf16.mxu0 %v1354
    %1493 = vmatpush1.bf16.msra.mxu0 %v1353
    %1494 = vmatprep.subr.bf16.mxu0 %v1356
    %1495 = vmatpush1.bf16.msra.mxu0 %v1355
    %1496 = vmatprep.subr.bf16.mxu0 %v1358
    %1497 = vmatpush1.bf16.msra.mxu0 %v1357
    %1498 = vmatprep.mubr.bf16.mxu0 %v1038
    %1499 = vmatmul.mubr.bf16.gmra.mrb[0].mxu0 %v1037
    %v1500 = vpop.f32.mrb[0].mxu0
    %v1501 = vadd.f32 %v1458, %v1500
    %v1502 = vpop.f32.mrb[0].mxu0
    %v1503 = vadd.f32 %v1460, %v1502
    %v1504 = vpop.f32.mrb[0].mxu0
    %v1505 = vadd.f32 %v1462, %v1504
    %v1506 = vpop.f32.mrb[0].mxu0
    %v1507 = vadd.f32 %v1464, %v1506
    %1508 = vdwg.mxu0
    %v1509 = vpack.c.bf16 %v1505, %v1501
    %v1510 = vpack.c.bf16 %v1507, %v1503
    %v1511 = vld [vmem:[%s10] sm:$0x3]
    %v1514 = vunpack.c.l.s4 1966171168
    %v1515 = vunpack.c.0.s8 %v1514
    %v1516 = vlaneseq
    %v1517 = vshrl.u32 %v1516, 7
    %v1518 = vsub.s32 %v1515, %v1517
    %v1519 = vrot.slane %v1511, %v1518
    %v1520 = vcombine.high %v1519, %v1519
    %v1522 = vunpack.c.l.s4 1966171168
    %v1523 = vunpack.c.0.s8 %v1522
    %v1524 = vlaneseq
    %v1525 = vshrl.u32 %v1524, 7
    %v1526 = vsub.s32 %v1523, %v1525
    %v1527 = vrot.slane %v1519, %v1526
    %v1529 = vunpack.c.l.s4 1966171168
    %v1530 = vunpack.c.0.s8 %v1529
    %v1531 = vlaneseq
    %v1532 = vshrl.u32 %v1531, 7
    %v1533 = vsub.s32 %v1530, %v1532
    %v1534 = vrot.slane %v1520, %v1533
    %v1536 = vpack.i.b16 %v1527, %v1527
    %v1538 = vlaneseq
    %v1539 = vshrl.u32 %v1538, 7
    %v1540 = vsub.s32 0, %v1539
    %v1541 = vrot.slane %v1536, %v1540
    %v1543 = vpack.i.b16 %v1534, %v1534
    %v1545 = vlaneseq
    %v1546 = vshrl.u32 %v1545, 7
    %v1547 = vsub.s32 0, %v1546
    %v1548 = vrot.slane %v1543, %v1547
    %v1549 = vadd.bf16 %v1509, %v1541
    %v1550 = vadd.bf16 %v1510, %v1548
    %v1551 = vmax.bf16 %v1549, 0
    %v1552 = vmax.bf16 %v1550, 0
    %v1553 = vld [vmem:[#allocation13] sm:$0xf]
    %v1554 = vld [vmem:[#allocation13 + $0x4] sm:$0xf]
    %v1555 = vld [vmem:[#allocation13 + $0x8] sm:$0xf]
    %v1556 = vld [vmem:[#allocation13 + $0xc] sm:$0xf]
    %v1557 = vld [vmem:[#allocation13 + $0x10] sm:$0xf]
    %v1558 = vld [vmem:[#allocation13 + $0x14] sm:$0xf]
    %v1559 = vld [vmem:[#allocation13 + $0x18] sm:$0xf]
    %v1560 = vld [vmem:[#allocation13 + $0x1c] sm:$0xf]
    %v1561 = vld [vmem:[#allocation13 + $0x20] sm:$0xf]
    %v1562 = vld [vmem:[#allocation13 + $0x24] sm:$0xf]
    %v1563 = vld [vmem:[#allocation13 + $0x28] sm:$0xf]
    %v1564 = vld [vmem:[#allocation13 + $0x2c] sm:$0xf]
    %v1565 = vld [vmem:[#allocation13 + $0x30] sm:$0xf]
    %v1566 = vld [vmem:[#allocation13 + $0x34] sm:$0xf]
    %v1567 = vld [vmem:[#allocation13 + $0x38] sm:$0xf]
    %v1568 = vld [vmem:[#allocation13 + $0x3c] sm:$0xf]
    %v1569 = vld [vmem:[#allocation13 + $0x40] sm:$0xf]
    %v1570 = vld [vmem:[#allocation13 + $0x44] sm:$0xf]
    %v1571 = vld [vmem:[#allocation13 + $0x48] sm:$0xf]
    %v1572 = vld [vmem:[#allocation13 + $0x4c] sm:$0xf]
    %v1573 = vld [vmem:[#allocation13 + $0x50] sm:$0xf]
    %v1574 = vld [vmem:[#allocation13 + $0x54] sm:$0xf]
    %v1575 = vld [vmem:[#allocation13 + $0x58] sm:$0xf]
    %v1576 = vld [vmem:[#allocation13 + $0x5c] sm:$0xf]
    %v1577 = vld [vmem:[#allocation13 + $0x60] sm:$0xf]
    %v1578 = vld [vmem:[#allocation13 + $0x64] sm:$0xf]
    %v1579 = vld [vmem:[#allocation13 + $0x68] sm:$0xf]
    %v1580 = vld [vmem:[#allocation13 + $0x6c] sm:$0xf]
    %v1581 = vld [vmem:[#allocation13 + $0x70] sm:$0xf]
    %v1582 = vld [vmem:[#allocation13 + $0x74] sm:$0xf]
    %v1583 = vld [vmem:[#allocation13 + $0x78] sm:$0xf]
    %v1584 = vld [vmem:[#allocation13 + $0x7c] sm:$0xf]
    %v1617 = vunpack.c.l.b16 %v1553
    %v1618 = vunpack.c.l.b16 %v1554
    %v1619 = vunpack.c.l.b16 %v1555
    %v1620 = vunpack.c.l.b16 %v1556
    %v1621 = vunpack.c.l.b16 %v1557
    %v1622 = vunpack.c.l.b16 %v1558
    %v1623 = vunpack.c.l.b16 %v1559
    %v1624 = vunpack.c.l.b16 %v1560
    %v1625 = vunpack.c.l.b16 %v1561
    %v1626 = vunpack.c.l.b16 %v1562
    %v1627 = vunpack.c.l.b16 %v1563
    %v1628 = vunpack.c.l.b16 %v1564
    %v1629 = vunpack.c.l.b16 %v1565
    %v1630 = vunpack.c.l.b16 %v1566
    %v1631 = vunpack.c.l.b16 %v1567
    %v1632 = vunpack.c.l.b16 %v1568
    %v1633 = vunpack.c.l.b16 %v1569
    %v1634 = vunpack.c.l.b16 %v1570
    %v1635 = vunpack.c.l.b16 %v1571
    %v1636 = vunpack.c.l.b16 %v1572
    %v1637 = vunpack.c.l.b16 %v1573
    %v1638 = vunpack.c.l.b16 %v1574
    %v1639 = vunpack.c.l.b16 %v1575
    %v1640 = vunpack.c.l.b16 %v1576
    %v1641 = vunpack.c.l.b16 %v1577
    %v1642 = vunpack.c.l.b16 %v1578
    %v1643 = vunpack.c.l.b16 %v1579
    %v1644 = vunpack.c.l.b16 %v1580
    %v1645 = vunpack.c.l.b16 %v1581
    %v1646 = vunpack.c.l.b16 %v1582
    %v1647 = vunpack.c.l.b16 %v1583
    %v1648 = vunpack.c.l.b16 %v1584
    %v1649 = vpack.c.b16 %v1618, %v1617
    %v1650 = vpack.c.b16 %v1620, %v1619
    %v1651 = vpack.c.b16 %v1622, %v1621
    %v1652 = vpack.c.b16 %v1624, %v1623
    %v1653 = vpack.c.b16 %v1626, %v1625
    %v1654 = vpack.c.b16 %v1628, %v1627
    %v1655 = vpack.c.b16 %v1630, %v1629
    %v1656 = vpack.c.b16 %v1632, %v1631
    %v1657 = vpack.c.b16 %v1634, %v1633
    %v1658 = vpack.c.b16 %v1636, %v1635
    %v1659 = vpack.c.b16 %v1638, %v1637
    %v1660 = vpack.c.b16 %v1640, %v1639
    %v1661 = vpack.c.b16 %v1642, %v1641
    %v1662 = vpack.c.b16 %v1644, %v1643
    %v1663 = vpack.c.b16 %v1646, %v1645
    %v1664 = vpack.c.b16 %v1648, %v1647
    %1681 = vmatprep.subr.bf16.mxu0 0
    %1682 = vmatpush1.bf16.msra.mxu0 %v1649
    %1683 = vmatprep.subr.bf16.mxu0 0
    %1684 = vmatpush1.bf16.msra.mxu0 %v1650
    %1685 = vmatprep.subr.bf16.mxu0 0
    %1686 = vmatpush1.bf16.msra.mxu0 %v1651
    %1687 = vmatprep.subr.bf16.mxu0 0
    %1688 = vmatpush1.bf16.msra.mxu0 %v1652
    %1689 = vmatprep.subr.bf16.mxu0 0
    %1690 = vmatpush1.bf16.msra.mxu0 %v1653
    %1691 = vmatprep.subr.bf16.mxu0 0
    %1692 = vmatpush1.bf16.msra.mxu0 %v1654
    %1693 = vmatprep.subr.bf16.mxu0 0
    %1694 = vmatpush1.bf16.msra.mxu0 %v1655
    %1695 = vmatprep.subr.bf16.mxu0 0
    %1696 = vmatpush1.bf16.msra.mxu0 %v1656
    %1697 = vmatprep.subr.bf16.mxu0 0
    %1698 = vmatpush1.bf16.msra.mxu0 %v1657
    %1699 = vmatprep.subr.bf16.mxu0 0
    %1700 = vmatpush1.bf16.msra.mxu0 %v1658
    %1701 = vmatprep.subr.bf16.mxu0 0
    %1702 = vmatpush1.bf16.msra.mxu0 %v1659
    %1703 = vmatprep.subr.bf16.mxu0 0
    %1704 = vmatpush1.bf16.msra.mxu0 %v1660
    %1705 = vmatprep.subr.bf16.mxu0 0
    %1706 = vmatpush1.bf16.msra.mxu0 %v1661
    %1707 = vmatprep.subr.bf16.mxu0 0
    %1708 = vmatpush1.bf16.msra.mxu0 %v1662
    %1709 = vmatprep.subr.bf16.mxu0 0
    %1710 = vmatpush1.bf16.msra.mxu0 %v1663
    %1711 = vmatprep.subr.bf16.mxu0 0
    %1712 = vmatpush1.bf16.msra.mxu0 %v1664
    %1713 = vmatprep.mubr.bf16.mxu0 %v1552
    %1714 = vmatmul.mubr.bf16.gmra.mrb[0].mxu0 %v1551
    %v1715 = vpop.f32.mrb[0].mxu0
    %v1716 = vadd.f32 0.0, %v1715
    %v1717 = vpop.f32.mrb[0].mxu0
    %v1718 = vpop.f32.mrb[0].mxu0
    %v1719 = vadd.f32 0.0, %v1718
    %v1720 = vpop.f32.mrb[0].mxu0
    %1721 = vdwg.mxu0
    %v1722 = vpack.c.bf16 %v1719, %v1716
    %v1723 = vld [vmem:[%s12] sm:$0x1]
    %v1725 = vpack.i.b16 %v1723, %v1723
    %v1727 = vlaneseq
    %v1728 = vshrl.u32 %v1727, 7
    %v1729 = vsub.s32 0, %v1728
    %v1730 = vrot.slane %v1725, %v1729
    %v1731 = vadd.bf16 %v1722, %v1730
    %v1732 = vmax.bf16 %v1731, 0
    %v1733 = vld [vmem:[#allocation14] sm:$0xf]
    %v1734 = vld [vmem:[#allocation14 + $0x4] sm:$0xf]
    %v1735 = vld [vmem:[#allocation14 + $0x8] sm:$0xf]
    %v1736 = vld [vmem:[#allocation14 + $0xc] sm:$0xf]
    %v1737 = vld [vmem:[#allocation14 + $0x10] sm:$0xf]
    %v1738 = vld [vmem:[#allocation14 + $0x14] sm:$0xf]
    %v1739 = vld [vmem:[#allocation14 + $0x18] sm:$0xf]
    %v1740 = vld [vmem:[#allocation14 + $0x1c] sm:$0xf]
    %v1741 = vld [vmem:[#allocation14 + $0x20] sm:$0xf]
    %v1742 = vld [vmem:[#allocation14 + $0x24] sm:$0xf]
    %v1743 = vld [vmem:[#allocation14 + $0x28] sm:$0xf]
    %v1744 = vld [vmem:[#allocation14 + $0x2c] sm:$0xf]
    %v1745 = vld [vmem:[#allocation14 + $0x30] sm:$0xf]
    %v1746 = vld [vmem:[#allocation14 + $0x34] sm:$0xf]
    %v1747 = vld [vmem:[#allocation14 + $0x38] sm:$0xf]
    %v1748 = vld [vmem:[#allocation14 + $0x3c] sm:$0xf]
    %v1749 = vld [vmem:[%s14] sm:$0x1]
    %v1751 = vlaneseq
    %v1752 = vshrl.u32 %v1751, 7
    %v1753 = vsub.s32 0, %v1752
    %v1754 = vrot.slane %v1749, %v1753
    %v1772 = vunpack.c.l.b16 %v1733
    %v1773 = vunpack.c.l.b16 %v1734
    %v1774 = vunpack.c.l.b16 %v1735
    %v1775 = vunpack.c.l.b16 %v1736
    %v1776 = vunpack.c.l.b16 %v1737
    %v1777 = vunpack.c.l.b16 %v1738
    %v1778 = vunpack.c.l.b16 %v1739
    %v1779 = vunpack.c.l.b16 %v1740
    %v1780 = vunpack.c.l.b16 %v1741
    %v1781 = vunpack.c.l.b16 %v1742
    %v1782 = vunpack.c.l.b16 %v1743
    %v1783 = vunpack.c.l.b16 %v1744
    %v1784 = vunpack.c.l.b16 %v1745
    %v1785 = vunpack.c.l.b16 %v1746
    %v1786 = vunpack.c.l.b16 %v1747
    %v1787 = vunpack.c.l.b16 %v1748
    %v1788 = vpack.c.b16 %v1773, %v1772
    %v1789 = vpack.c.b16 %v1775, %v1774
    %v1790 = vpack.c.b16 %v1777, %v1776
    %v1791 = vpack.c.b16 %v1779, %v1778
    %v1792 = vpack.c.b16 %v1781, %v1780
    %v1793 = vpack.c.b16 %v1783, %v1782
    %v1794 = vpack.c.b16 %v1785, %v1784
    %v1795 = vpack.c.b16 %v1787, %v1786
    %1804 = vmatprep.subr.bf16.mxu0 0
    %1805 = vmatpush1.bf16.msra.mxu0 %v1788
    %1806 = vmatprep.subr.bf16.mxu0 0
    %1807 = vmatpush1.bf16.msra.mxu0 %v1789
    %1808 = vmatprep.subr.bf16.mxu0 0
    %1809 = vmatpush1.bf16.msra.mxu0 %v1790
    %1810 = vmatprep.subr.bf16.mxu0 0
    %1811 = vmatpush1.bf16.msra.mxu0 %v1791
    %1812 = vmatprep.subr.bf16.mxu0 0
    %1813 = vmatpush1.bf16.msra.mxu0 %v1792
    %1814 = vmatprep.subr.bf16.mxu0 0
    %1815 = vmatpush1.bf16.msra.mxu0 %v1793
    %1816 = vmatprep.subr.bf16.mxu0 0
    %1817 = vmatpush1.bf16.msra.mxu0 %v1794
    %1818 = vmatprep.subr.bf16.mxu0 0
    %1819 = vmatpush1.bf16.msra.mxu0 %v1795
    %1820 = vmatprep.subr.bf16.mxu0 0
    %1821 = vmatpush1.bf16.msra.mxu0 0
    %1822 = vmatprep.subr.bf16.mxu0 0
    %1823 = vmatpush1.bf16.msra.mxu0 0
    %1824 = vmatprep.subr.bf16.mxu0 0
    %1825 = vmatpush1.bf16.msra.mxu0 0
    %1826 = vmatprep.subr.bf16.mxu0 0
    %1827 = vmatpush1.bf16.msra.mxu0 0
    %1828 = vmatprep.subr.bf16.mxu0 0
    %1829 = vmatpush1.bf16.msra.mxu0 0
    %1830 = vmatprep.subr.bf16.mxu0 0
    %1831 = vmatpush1.bf16.msra.mxu0 0
    %1832 = vmatprep.subr.bf16.mxu0 0
    %1833 = vmatpush1.bf16.msra.mxu0 0
    %1834 = vmatprep.subr.bf16.mxu0 0
    %1835 = vmatpush1.bf16.msra.mxu0 0
    %1836 = vmatprep.mubr.bf16.mxu0 0
    %1837 = vmatmul.mubr.bf16.gmra.mrb[0].mxu0 %v1732
    %v1838 = vpop.f32.mrb[0].mxu0
    %v1839 = vadd.f32 %v1754, %v1838
    %v1840 = vpop.f32.mrb[0].mxu0
    %v1841 = vpop.f32.mrb[0].mxu0
    %v1842 = vadd.f32 %v1754, %v1841
    %v1843 = vpop.f32.mrb[0].mxu0
    %1844 = vdwg.mxu0
    %1845 = vst [vmem:[#allocation16] sm:$0xff] %v1839
    %1846 = vst [vmem:[#allocation16 + $0x8] sm:$0xff] %v1842
    // Predicated region
    $region94: #{tpu_custom_call.1} parent=1 // pred_check
      _
    $region95: #{tpu_custom_call.1} parent=1 // pred_check_branch
      %1848 = sbr.rel (0) target = $region97
    $region96: #{tpu_custom_call.1} parent=1 // pred_region
      %s1850 = ssub.s32 256, 256
      %1851 = vsyncadd [#allocation4], %s1850
      %s1852 = sshll.u32 [#allocation16], 4
      %s1853 = int_to_ptr.vmem [resolvable:$true] %s1852
      %1858 = dma.vmem_to_hbm [thread:$0]  %s1853, 256, %s15, [#allocation4], 128, 128, 8
    $region97: #{tpu_custom_call.1} parent=1 // pred_fallthru
      _
    // Predicated region
    $region98: #{tpu_custom_call.1} parent=1 // pred_check
      _
    $region99: #{tpu_custom_call.1} parent=1 // pred_check_branch
      %1860 = sbr.rel (0) target = $region101
    $region100: #{tpu_custom_call.1} parent=1 // pred_region
      %1861 = dma.done [#allocation4], 256
    $region101: #{tpu_custom_call.1} parent=1 // pred_fallthru
      _
    %1862 = vsyncpa [#allocation3], 1
    %1863 = vsyncpa [#allocation6], 1
    %1864 = vsyncpa [#allocation9], 1
    %1865 = vsyncpa [#allocation12], 1
    %1866 = vsyncpa [#allocation15], 1
    %1867 = vsyncpa [#allocation4], 1

// kernel: tpu_custom_call.1
$region0: #{tpu_custom_call.1}
  #allocation0 [shape = 'u32[]', space=smem, size = 0x4, offset = 0x4, fixed_abs, tag = 'smem constant byte address 0x4 - core index']
  #allocation1 [shape = 'u32[144,128]{1,0:T(1,128)}', space=vmem, size = 0x12000, scoped, tag = 'internal scratch']
  %s0 = inlined_call_operand.hbm [shape: bf16[16,16], index: 0, kind: input, shape index: {}]
  %s1 = inlined_call_operand.hbm [shape: bf16[16,64], index: 1, kind: input, shape index: {}]
  %s2 = inlined_call_operand.vmem [shape: bf16[1,64], index: 2, kind: input, shape index: {}]
  %s3 = inlined_call_operand.hbm [shape: bf16[64,128], index: 3, kind: input, shape index: {}]
  %s4 = inlined_call_operand.vmem [shape: bf16[1,128], index: 4, kind: input, shape index: {}]
  %s5 = inlined_call_operand.hbm [shape: bf16[128,256], index: 5, kind: input, shape index: {}]
  %s6 = inlined_call_operand.vmem [shape: bf16[1,256], index: 6, kind: input, shape index: {}]
  %s7 = inlined_call_operand.hbm [shape: bf16[256,512], index: 7, kind: input, shape index: {}]
  %s8 = inlined_call_operand.vmem [shape: bf16[1,512], index: 8, kind: input, shape index: {}]
  %s9 = inlined_call_operand.hbm [shape: bf16[512,256], index: 9, kind: input, shape index: {}]
  %s10 = inlined_call_operand.vmem [shape: bf16[1,256], index: 10, kind: input, shape index: {}]
  %s11 = inlined_call_operand.hbm [shape: bf16[256,128], index: 11, kind: input, shape index: {}]
  %s12 = inlined_call_operand.vmem [shape: bf16[1,128], index: 12, kind: input, shape index: {}]
  %s13 = inlined_call_operand.hbm [shape: bf16[128,128], index: 13, kind: input, shape index: {}]
  %s14 = inlined_call_operand.vmem [shape: f32[1,128], index: 14, kind: input, shape index: {}]
  %s15 = inlined_call_operand.hbm [shape: f32[16,128], index: 15, kind: output, shape index: {}]
  %s16 = sld [smem:[#allocation0]]
  $region102: #{tpu_custom_call.1} parent=0
    _
  %s18 = ssub.s32 1, %s16
  %s19 = scalar_select 0, %s18, %s16
  $region1: #{tpu_custom_call.1} parent=0
    #allocation2 [shape = 'u8[4096]{0}', space=vmem, size = 0x1000, scoped, tag = 'input window, operand 0, single buffered']
    #allocation3 [shape = 's32[1]{0}', space=sflag, size = 0x4, scoped, tag = 'scoped memory for tpu_custom_call.1']
    #allocation4 [shape = 's32[1]{0}', space=sflag, size = 0x4, scoped, tag = 'scoped memory for tpu_custom_call.1']
    #allocation5 [shape = 'u8[4096]{0}', space=vmem, size = 0x1000, scoped, tag = 'input window, operand 1, single buffered']
    #allocation6 [shape = 's32[1]{0}', space=sflag, size = 0x4, scoped, tag = 'scoped memory for tpu_custom_call.1']
    #allocation7 [shape = 'u8[16384]{0}', space=vmem, size = 0x4000, scoped, tag = 'input window, operand 3, single buffered']
    #allocation8 [shape = 'u8[65536]{0}', space=vmem, size = 0x10000, scoped, tag = 'input window, operand 5, single buffered']
    #allocation9 [shape = 's32[1]{0}', space=sflag, size = 0x4, scoped, tag = 'scoped memory for tpu_custom_call.1']
    #allocation10 [shape = 'u8[262144]{0}', space=vmem, size = 0x40000, scoped, tag = 'input window, operand 7, single buffered']
    #allocation11 [shape = 'u8[262144]{0}', space=vmem, size = 0x40000, scoped, tag = 'input window, operand 9, single buffered']
    #allocation12 [shape = 's32[1]{0}', space=sflag, size = 0x4, scoped, tag = 'scoped memory for tpu_custom_call.1']
    #allocation13 [shape = 'u8[65536]{0}', space=vmem, size = 0x10000, scoped, tag = 'input window, operand 11, single buffered']
    #allocation14 [shape = 'u8[32768]{0}', space=vmem, size = 0x8000, scoped, tag = 'input window, operand 13, single buffered']
    #allocation15 [shape = 's32[1]{0}', space=sflag, size = 0x4, scoped, tag = 'scoped memory for tpu_custom_call.1']
    #allocation16 [shape = 'u8[8192]{0}', space=vmem, size = 0x2000, scoped, tag = 'output window, operand 0, single buffered']
    %20 = vsyncpa [#allocation3], 0
    %21 = vsyncpa [#allocation6], 0
    %22 = vsyncpa [#allocation9], 0
    %23 = vsyncpa [#allocation12], 0
    %24 = vsyncpa [#allocation15], 0
    %25 = vsyncpa [#allocation4], 0
    // Predicated region
    $region2: #{tpu_custom_call.1} parent=1 // pred_check
      _
    $region3: #{tpu_custom_call.1} parent=1 // pred_check_branch
      %27 = sbr.rel (0) target = $region5
    $region4: #{tpu_custom_call.1} parent=1 // pred_region
      %s29 = ssub.s32 128, 128
      %30 = vsyncadd [#allocation3], %s29
      %s31 = sshll.u32 [#allocation2], 4
      %s32 = int_to_ptr.vmem [resolvable:$true] %s31
      %37 = dma.hbm_to_vmem [thread:$0]  %s0, 128, %s32, [#allocation3], 64, 64, 4
    $region5: #{tpu_custom_call.1} parent=1 // pred_fallthru
      _
    // Predicated region
    $region6: #{tpu_custom_call.1} parent=1 // pred_check
      _
    $region7: #{tpu_custom_call.1} parent=1 // pred_check_branch
      %39 = sbr.rel (0) target = $region9
    $region8: #{tpu_custom_call.1} parent=1 // pred_region
      %s41 = ssub.s32 128, 128
      %42 = vsyncadd [#allocation6], %s41
      %s43 = sshll.u32 [#allocation5], 4
      %s44 = int_to_ptr.vmem [resolvable:$true] %s43
      %49 = dma.hbm_to_vmem [thread:$0]  %s1, 128, %s44, [#allocation6], 64, 64, 4
    $region9: #{tpu_custom_call.1} parent=1 // pred_fallthru
      _
    // Predicated region
    $region10: #{tpu_custom_call.1} parent=1 // pred_check
      _
    $region11: #{tpu_custom_call.1} parent=1 // pred_check_branch
      %51 = sbr.rel (0) target = $region13
    $region12: #{tpu_custom_call.1} parent=1 // pred_region
      _
    $region13: #{tpu_custom_call.1} parent=1 // pred_fallthru
      _
    // Predicated region
    $region14: #{tpu_custom_call.1} parent=1 // pred_check
      _
    $region15: #{tpu_custom_call.1} parent=1 // pred_check_branch
      %53 = sbr.rel (0) target = $region17
    $region16: #{tpu_custom_call.1} parent=1 // pred_region
      %s55 = ssub.s32 512, 512
      %56 = vsyncadd [#allocation6], %s55
      %s57 = sshll.u32 [#allocation7], 4
      %s58 = int_to_ptr.vmem [resolvable:$true] %s57
      %63 = dma.hbm_to_vmem [thread:$0]  %s3, 512, %s58, [#allocation6], 64, 64, 4
    $region17: #{tpu_custom_call.1} parent=1 // pred_fallthru
      _
    // Predicated region
    $region18: #{tpu_custom_call.1} parent=1 // pred_check
      _
    $region19: #{tpu_custom_call.1} parent=1 // pred_check_branch
      %65 = sbr.rel (0) target = $region21
    $region20: #{tpu_custom_call.1} parent=1 // pred_region
      _
    $region21: #{tpu_custom_call.1} parent=1 // pred_fallthru
      _
    // Predicated region
    $region22: #{tpu_custom_call.1} parent=1 // pred_check
      _
    $region23: #{tpu_custom_call.1} parent=1 // pred_check_branch
      %67 = sbr.rel (0) target = $region25
    $region24: #{tpu_custom_call.1} parent=1 // pred_region
      %s69 = ssub.s32 2048, 2048
      %70 = vsyncadd [#allocation9], %s69
      %s71 = sshll.u32 [#allocation8], 4
      %s72 = int_to_ptr.vmem [resolvable:$true] %s71
      %77 = dma.hbm_to_vmem [thread:$0]  %s5, 2048, %s72, [#allocation9], 128, 128, 8
    $region25: #{tpu_custom_call.1} parent=1 // pred_fallthru
      _
    // Predicated region
    $region26: #{tpu_custom_call.1} parent=1 // pred_check
      _
    $region27: #{tpu_custom_call.1} parent=1 // pred_check_branch
      %79 = sbr.rel (0) target = $region29
    $region28: #{tpu_custom_call.1} parent=1 // pred_region
      _
    $region29: #{tpu_custom_call.1} parent=1 // pred_fallthru
      _
    // Predicated region
    $region30: #{tpu_custom_call.1} parent=1 // pred_check
      _
    $region31: #{tpu_custom_call.1} parent=1 // pred_check_branch
      %81 = sbr.rel (0) target = $region33
    $region32: #{tpu_custom_call.1} parent=1 // pred_region
      %s83 = ssub.s32 8192, 8192
      %84 = vsyncadd [#allocation9], %s83
      %s85 = sshll.u32 [#allocation10], 4
      %s86 = int_to_ptr.vmem [resolvable:$true] %s85
      %91 = dma.hbm_to_vmem [thread:$0]  %s7, 8192, %s86, [#allocation9], 256, 256, 16
    $region33: #{tpu_custom_call.1} parent=1 // pred_fallthru
      _
    // Predicated region
    $region34: #{tpu_custom_call.1} parent=1 // pred_check
      _
    $region35: #{tpu_custom_call.1} parent=1 // pred_check_branch
      %93 = sbr.rel (0) target = $region37
    $region36: #{tpu_custom_call.1} parent=1 // pred_region
      _
    $region37: #{tpu_custom_call.1} parent=1 // pred_fallthru
      _
    // Predicated region
    $region38: #{tpu_custom_call.1} parent=1 // pred_check
      _
    $region39: #{tpu_custom_call.1} parent=1 // pred_check_branch
      %95 = sbr.rel (0) target = $region41
    $region40: #{tpu_custom_call.1} parent=1 // pred_region
      %s97 = ssub.s32 8192, 8192
      %98 = vsyncadd [#allocation12], %s97
      %s99 = sshll.u32 [#allocation11], 4
      %s100 = int_to_ptr.vmem [resolvable:$true] %s99
      %105 = dma.hbm_to_vmem [thread:$0]  %s9, 8192, %s100, [#allocation12], 128, 128, 8
    $region41: #{tpu_custom_call.1} parent=1 // pred_fallthru
      _
    // Predicated region
    $region42: #{tpu_custom_call.1} parent=1 // pred_check
      _
    $region43: #{tpu_custom_call.1} parent=1 // pred_check_branch
      %107 = sbr.rel (0) target = $region45
    $region44: #{tpu_custom_call.1} parent=1 // pred_region
      _
    $region45: #{tpu_custom_call.1} parent=1 // pred_fallthru
      _
    // Predicated region
    $region46: #{tpu_custom_call.1} parent=1 // pred_check
      _
    $region47: #{tpu_custom_call.1} parent=1 // pred_check_branch
      %109 = sbr.rel (0) target = $region49
    $region48: #{tpu_custom_call.1} parent=1 // pred_region
      %s111 = ssub.s32 2048, 2048
      %112 = vsyncadd [#allocation12], %s111
      %s113 = sshll.u32 [#allocation13], 4
      %s114 = int_to_ptr.vmem [resolvable:$true] %s113
      %119 = dma.hbm_to_vmem [thread:$0]  %s11, 2048, %s114, [#allocation12], 64, 64, 4
    $region49: #{tpu_custom_call.1} parent=1 // pred_fallthru
      _
    // Predicated region
    $region50: #{tpu_custom_call.1} parent=1 // pred_check
      _
    $region51: #{tpu_custom_call.1} parent=1 // pred_check_branch
      %121 = sbr.rel (0) target = $region53
    $region52: #{tpu_custom_call.1} parent=1 // pred_region
      _
    $region53: #{tpu_custom_call.1} parent=1 // pred_fallthru
      _
    // Predicated region
    $region54: #{tpu_custom_call.1} parent=1 // pred_check
      _
    $region55: #{tpu_custom_call.1} parent=1 // pred_check_branch
      %123 = sbr.rel (0) target = $region57
    $region56: #{tpu_custom_call.1} parent=1 // pred_region
      %s125 = ssub.s32 1024, 1024
      %126 = vsyncadd [#allocation15], %s125
      %s127 = sshll.u32 [#allocation14], 4
      %s128 = int_to_ptr.vmem [resolvable:$true] %s127
      %133 = dma.hbm_to_vmem [thread:$0]  %s13, 1024, %s128, [#allocation15], 64, 64, 4
    $region57: #{tpu_custom_call.1} parent=1 // pred_fallthru
      _
    // Predicated region
    $region58: #{tpu_custom_call.1} parent=1 // pred_check
      _
    $region59: #{tpu_custom_call.1} parent=1 // pred_check_branch
      %135 = sbr.rel (0) target = $region61
    $region60: #{tpu_custom_call.1} parent=1 // pred_region
      _
    $region61: #{tpu_custom_call.1} parent=1 // pred_fallthru
      _
    // Predicated region
    $region62: #{tpu_custom_call.1} parent=1 // pred_check
      _
    $region63: #{tpu_custom_call.1} parent=1 // pred_check_branch
      %137 = sbr.rel (0) target = $region65
    $region64: #{tpu_custom_call.1} parent=1 // pred_region
      %138 = dma.done [#allocation3], 128
    $region65: #{tpu_custom_call.1} parent=1 // pred_fallthru
      _
    // Predicated region
    $region66: #{tpu_custom_call.1} parent=1 // pred_check
      _
    $region67: #{tpu_custom_call.1} parent=1 // pred_check_branch
      %140 = sbr.rel (0) target = $region69
    $region68: #{tpu_custom_call.1} parent=1 // pred_region
      %141 = dma.done [#allocation6], 128
    $region69: #{tpu_custom_call.1} parent=1 // pred_fallthru
      _
    // Predicated region
    $region70: #{tpu_custom_call.1} parent=1 // pred_check
      _
    $region71: #{tpu_custom_call.1} parent=1 // pred_check_branch
      %143 = sbr.rel (0) target = $region73
    $region72: #{tpu_custom_call.1} parent=1 // pred_region
      %144 = dma.done [#allocation6], 512
    $region73: #{tpu_custom_call.1} parent=1 // pred_fallthru
      _
    // Predicated region
    $region74: #{tpu_custom_call.1} parent=1 // pred_check
      _
    $region75: #{tpu_custom_call.1} parent=1 // pred_check_branch
      %146 = sbr.rel (0) target = $region77
    $region76: #{tpu_custom_call.1} parent=1 // pred_region
      %147 = dma.done [#allocation9], 2048
    $region77: #{tpu_custom_call.1} parent=1 // pred_fallthru
      _
    // Predicated region
    $region78: #{tpu_custom_call.1} parent=1 // pred_check
      _
    $region79: #{tpu_custom_call.1} parent=1 // pred_check_branch
      %149 = sbr.rel (0) target = $region81
    $region80: #{tpu_custom_call.1} parent=1 // pred_region
      %150 = dma.done [#allocation9], 8192
    $region81: #{tpu_custom_call.1} parent=1 // pred_fallthru
      _
    // Predicated region
    $region82: #{tpu_custom_call.1} parent=1 // pred_check
      _
    $region83: #{tpu_custom_call.1} parent=1 // pred_check_branch
      %152 = sbr.rel (0) target = $region85
    $region84: #{tpu_custom_call.1} parent=1 // pred_region
      %153 = dma.done [#allocation12], 8192
    $region85: #{tpu_custom_call.1} parent=1 // pred_fallthru
      _
    // Predicated region
    $region86: #{tpu_custom_call.1} parent=1 // pred_check
      _
    $region87: #{tpu_custom_call.1} parent=1 // pred_check_branch
      %155 = sbr.rel (0) target = $region89
    $region88: #{tpu_custom_call.1} parent=1 // pred_region
      %156 = dma.done [#allocation12], 2048
    $region89: #{tpu_custom_call.1} parent=1 // pred_fallthru
      _
    // Predicated region
    $region90: #{tpu_custom_call.1} parent=1 // pred_check
      _
    $region91: #{tpu_custom_call.1} parent=1 // pred_check_branch
      %158 = sbr.rel (0) target = $region93
    $region92: #{tpu_custom_call.1} parent=1 // pred_region
      %159 = dma.done [#allocation15], 1024
    $region93: #{tpu_custom_call.1} parent=1 // pred_fallthru
      _
    %v161 = vld [vmem:[#allocation2] sm:$0xf]
    %v162 = vld [vmem:[#allocation2 + $0x4] sm:$0xf]
    %v163 = vld [vmem:[#allocation5] sm:$0xf]
    %v164 = vld [vmem:[#allocation5 + $0x4] sm:$0xf]
    %v167 = vunpack.c.l.b16 %v161
    %v168 = vunpack.c.l.b16 %v162
    %v169 = vpack.c.b16 %v168, %v167
    %v172 = vunpack.c.l.b16 %v163
    %v173 = vunpack.c.l.b16 %v164
    %v174 = vpack.c.b16 %v173, %v172
    %vm176 = vcmask 130048
    %v178 = vsel %vm176, %v169, 0
    %180 = vmatprep.subr.bf16.mxu0 0
    %181 = vmatpush1.bf16.msra.mxu0 %v174
    %182 = vmatprep.subr.bf16.mxu0 0
    %183 = vmatpush1.bf16.msra.mxu0 0
    %184 = vmatprep.subr.bf16.mxu0 0
    %185 = vmatpush1.bf16.msra.mxu0 0
    %186 = vmatprep.subr.bf16.mxu0 0
    %187 = vmatpush1.bf16.msra.mxu0 0
    %188 = vmatprep.subr.bf16.mxu0 0
    %189 = vmatpush1.bf16.msra.mxu0 0
    %190 = vmatprep.subr.bf16.mxu0 0
    %191 = vmatpush1.bf16.msra.mxu0 0
    %192 = vmatprep.subr.bf16.mxu0 0
    %193 = vmatpush1.bf16.msra.mxu0 0
    %194 = vmatprep.subr.bf16.mxu0 0
    %195 = vmatpush1.bf16.msra.mxu0 0
    %196 = vmatprep.subr.bf16.mxu0 0
    %197 = vmatpush1.bf16.msra.mxu0 0
    %198 = vmatprep.subr.bf16.mxu0 0
    %199 = vmatpush1.bf16.msra.mxu0 0
    %200 = vmatprep.subr.bf16.mxu0 0
    %201 = vmatpush1.bf16.msra.mxu0 0
    %202 = vmatprep.subr.bf16.mxu0 0
    %203 = vmatpush1.bf16.msra.mxu0 0
    %204 = vmatprep.subr.bf16.mxu0 0
    %205 = vmatpush1.bf16.msra.mxu0 0
    %206 = vmatprep.subr.bf16.mxu0 0
    %207 = vmatpush1.bf16.msra.mxu0 0
    %208 = vmatprep.subr.bf16.mxu0 0
    %209 = vmatpush1.bf16.msra.mxu0 0
    %210 = vmatprep.subr.bf16.mxu0 0
    %211 = vmatpush1.bf16.msra.mxu0 0
    %212 = vmatprep.mubr.bf16.mxu0 0
    %213 = vmatmul.mubr.bf16.gmra.mrb[0].mxu0 %v178
    %v214 = vpop.f32.mrb[0].mxu0
    %v215 = vadd.f32 0.0, %v214
    %v216 = vpop.f32.mrb[0].mxu0
    %v217 = vpop.f32.mrb[0].mxu0
    %v218 = vadd.f32 0.0, %v217
    %v219 = vpop.f32.mrb[0].mxu0
    %220 = vdwg.mxu0
    %v221 = vpack.c.bf16 %v218, %v215
    %v222 = vld [vmem:[%s2] sm:$0x1]
    %v224 = vpack.i.b16 %v222, %v222
    %v226 = vlaneseq
    %v227 = vshrl.u32 %v226, 7
    %v228 = vsub.s32 0, %v227
    %v229 = vrot.slane %v224, %v228
    %v230 = vadd.bf16 %v221, %v229
    %v231 = vmax.bf16 %v230, 0
    %v232 = vld [vmem:[#allocation7] sm:$0xf]
    %v233 = vld [vmem:[#allocation7 + $0x4] sm:$0xf]
    %v234 = vld [vmem:[#allocation7 + $0x8] sm:$0xf]
    %v235 = vld [vmem:[#allocation7 + $0xc] sm:$0xf]
    %v236 = vld [vmem:[#allocation7 + $0x10] sm:$0xf]
    %v237 = vld [vmem:[#allocation7 + $0x14] sm:$0xf]
    %v238 = vld [vmem:[#allocation7 + $0x18] sm:$0xf]
    %v239 = vld [vmem:[#allocation7 + $0x1c] sm:$0xf]
    %v248 = vunpack.c.l.b16 %v232
    %v249 = vunpack.c.l.b16 %v233
    %v250 = vunpack.c.l.b16 %v234
    %v251 = vunpack.c.l.b16 %v235
    %v252 = vunpack.c.l.b16 %v236
    %v253 = vunpack.c.l.b16 %v237
    %v254 = vunpack.c.l.b16 %v238
    %v255 = vunpack.c.l.b16 %v239
    %v256 = vpack.c.b16 %v249, %v248
    %v257 = vpack.c.b16 %v251, %v250
    %v258 = vpack.c.b16 %v253, %v252
    %v259 = vpack.c.b16 %v255, %v254
    %vm264 = vcmask 523264
    %v266 = vsel %vm264, %v231, 0
    %268 = vmatprep.subr.bf16.mxu0 0
    %269 = vmatpush1.bf16.msra.mxu0 %v256
    %270 = vmatprep.subr.bf16.mxu0 0
    %271 = vmatpush1.bf16.msra.mxu0 %v257
    %272 = vmatprep.subr.bf16.mxu0 0
    %273 = vmatpush1.bf16.msra.mxu0 %v258
    %274 = vmatprep.subr.bf16.mxu0 0
    %275 = vmatpush1.bf16.msra.mxu0 %v259
    %276 = vmatprep.subr.bf16.mxu0 0
    %277 = vmatpush1.bf16.msra.mxu0 0
    %278 = vmatprep.subr.bf16.mxu0 0
    %279 = vmatpush1.bf16.msra.mxu0 0
    %280 = vmatprep.subr.bf16.mxu0 0
    %281 = vmatpush1.bf16.msra.mxu0 0
    %282 = vmatprep.subr.bf16.mxu0 0
    %283 = vmatpush1.bf16.msra.mxu0 0
    %284 = vmatprep.subr.bf16.mxu0 0
    %285 = vmatpush1.bf16.msra.mxu0 0
    %286 = vmatprep.subr.bf16.mxu0 0
    %287 = vmatpush1.bf16.msra.mxu0 0
    %288 = vmatprep.subr.bf16.mxu0 0
    %289 = vmatpush1.bf16.msra.mxu0 0
    %290 = vmatprep.subr.bf16.mxu0 0
    %291 = vmatpush1.bf16.msra.mxu0 0
    %292 = vmatprep.subr.bf16.mxu0 0
    %293 = vmatpush1.bf16.msra.mxu0 0
    %294 = vmatprep.subr.bf16.mxu0 0
    %295 = vmatpush1.bf16.msra.mxu0 0
    %296 = vmatprep.subr.bf16.mxu0 0
    %297 = vmatpush1.bf16.msra.mxu0 0
    %298 = vmatprep.subr.bf16.mxu0 0
    %299 = vmatpush1.bf16.msra.mxu0 0
    %300 = vmatprep.mubr.bf16.mxu0 0
    %301 = vmatmul.mubr.bf16.gmra.mrb[0].mxu0 %v266
    %v302 = vpop.f32.mrb[0].mxu0
    %v303 = vadd.f32 0.0, %v302
    %v304 = vpop.f32.mrb[0].mxu0
    %v305 = vpop.f32.mrb[0].mxu0
    %v306 = vadd.f32 0.0, %v305
    %v307 = vpop.f32.mrb[0].mxu0
    %308 = vdwg.mxu0
    %v309 = vpack.c.bf16 %v306, %v303
    %v310 = vld [vmem:[%s4] sm:$0x1]
    %v312 = vpack.i.b16 %v310, %v310
    %v314 = vlaneseq
    %v315 = vshrl.u32 %v314, 7
    %v316 = vsub.s32 0, %v315
    %v317 = vrot.slane %v312, %v316
    %v318 = vadd.bf16 %v309, %v317
    %v319 = vmax.bf16 %v318, 0
    %v320 = vld [vmem:[#allocation8] sm:$0xff]
    %v321 = vld [vmem:[#allocation8 + $0x8] sm:$0xff]
    %v322 = vld [vmem:[#allocation8 + $0x10] sm:$0xff]
    %v323 = vld [vmem:[#allocation8 + $0x18] sm:$0xff]
    %v324 = vld [vmem:[#allocation8 + $0x20] sm:$0xff]
    %v325 = vld [vmem:[#allocation8 + $0x28] sm:$0xff]
    %v326 = vld [vmem:[#allocation8 + $0x30] sm:$0xff]
    %v327 = vld [vmem:[#allocation8 + $0x38] sm:$0xff]
    %v328 = vld [vmem:[#allocation8 + $0x40] sm:$0xff]
    %v329 = vld [vmem:[#allocation8 + $0x48] sm:$0xff]
    %v330 = vld [vmem:[#allocation8 + $0x50] sm:$0xff]
    %v331 = vld [vmem:[#allocation8 + $0x58] sm:$0xff]
    %v332 = vld [vmem:[#allocation8 + $0x60] sm:$0xff]
    %v333 = vld [vmem:[#allocation8 + $0x68] sm:$0xff]
    %v334 = vld [vmem:[#allocation8 + $0x70] sm:$0xff]
    %v335 = vld [vmem:[#allocation8 + $0x78] sm:$0xff]
    %v352 = vunpack.c.l.b16 %v320
    %v353 = vunpack.c.h.b16 %v320
    %v354 = vunpack.c.l.b16 %v321
    %v355 = vunpack.c.h.b16 %v321
    %v356 = vunpack.c.l.b16 %v322
    %v357 = vunpack.c.h.b16 %v322
    %v358 = vunpack.c.l.b16 %v323
    %v359 = vunpack.c.h.b16 %v323
    %v360 = vunpack.c.l.b16 %v324
    %v361 = vunpack.c.h.b16 %v324
    %v362 = vunpack.c.l.b16 %v325
    %v363 = vunpack.c.h.b16 %v325
    %v364 = vunpack.c.l.b16 %v326
    %v365 = vunpack.c.h.b16 %v326
    %v366 = vunpack.c.l.b16 %v327
    %v367 = vunpack.c.h.b16 %v327
    %v368 = vunpack.c.l.b16 %v328
    %v369 = vunpack.c.h.b16 %v328
    %v370 = vunpack.c.l.b16 %v329
    %v371 = vunpack.c.h.b16 %v329
    %v372 = vunpack.c.l.b16 %v330
    %v373 = vunpack.c.h.b16 %v330
    %v374 = vunpack.c.l.b16 %v331
    %v375 = vunpack.c.h.b16 %v331
    %v376 = vunpack.c.l.b16 %v332
    %v377 = vunpack.c.h.b16 %v332
    %v378 = vunpack.c.l.b16 %v333
    %v379 = vunpack.c.h.b16 %v333
    %v380 = vunpack.c.l.b16 %v334
    %v381 = vunpack.c.h.b16 %v334
    %v382 = vunpack.c.l.b16 %v335
    %v383 = vunpack.c.h.b16 %v335
    %v384 = vpack.c.b16 %v354, %v352
    %v385 = vpack.c.b16 %v355, %v353
    %v386 = vpack.c.b16 %v358, %v356
    %v387 = vpack.c.b16 %v359, %v357
    %v388 = vpack.c.b16 %v362, %v360
    %v389 = vpack.c.b16 %v363, %v361
    %v390 = vpack.c.b16 %v366, %v364
    %v391 = vpack.c.b16 %v367, %v365
    %v392 = vpack.c.b16 %v370, %v368
    %v393 = vpack.c.b16 %v371, %v369
    %v394 = vpack.c.b16 %v374, %v372
    %v395 = vpack.c.b16 %v375, %v373
    %v396 = vpack.c.b16 %v378, %v376
    %v397 = vpack.c.b16 %v379, %v377
    %v398 = vpack.c.b16 %v382, %v380
    %v399 = vpack.c.b16 %v383, %v381
    %416 = vmatprep.subr.bf16.mxu0 %v385
    %417 = vmatpush1.bf16.msra.mxu0 %v384
    %418 = vmatprep.subr.bf16.mxu0 %v387
    %419 = vmatpush1.bf16.msra.mxu0 %v386
    %420 = vmatprep.subr.bf16.mxu0 %v389
    %421 = vmatpush1.bf16.msra.mxu0 %v388
    %422 = vmatprep.subr.bf16.mxu0 %v391
    %423 = vmatpush1.bf16.msra.mxu0 %v390
    %424 = vmatprep.subr.bf16.mxu0 %v393
    %425 = vmatpush1.bf16.msra.mxu0 %v392
    %426 = vmatprep.subr.bf16.mxu0 %v395
    %427 = vmatpush1.bf16.msra.mxu0 %v394
    %428 = vmatprep.subr.bf16.mxu0 %v397
    %429 = vmatpush1.bf16.msra.mxu0 %v396
    %430 = vmatprep.subr.bf16.mxu0 %v399
    %431 = vmatpush1.bf16.msra.mxu0 %v398
    %432 = vmatprep.subr.bf16.mxu0 0
    %433 = vmatpush1.bf16.msra.mxu0 0
    %434 = vmatprep.subr.bf16.mxu0 0
    %435 = vmatpush1.bf16.msra.mxu0 0
    %436 = vmatprep.subr.bf16.mxu0 0
    %437 = vmatpush1.bf16.msra.mxu0 0
    %438 = vmatprep.subr.bf16.mxu0 0
    %439 = vmatpush1.bf16.msra.mxu0 0
    %440 = vmatprep.subr.bf16.mxu0 0
    %441 = vmatpush1.bf16.msra.mxu0 0
    %442 = vmatprep.subr.bf16.mxu0 0
    %443 = vmatpush1.bf16.msra.mxu0 0
    %444 = vmatprep.subr.bf16.mxu0 0
    %445 = vmatpush1.bf16.msra.mxu0 0
    %446 = vmatprep.subr.bf16.mxu0 0
    %447 = vmatpush1.bf16.msra.mxu0 0
    %448 = vmatprep.mubr.bf16.mxu0 0
    %449 = vmatmul.mubr.bf16.gmra.mrb[0].mxu0 %v319
    %v450 = vpop.f32.mrb[0].mxu0
    %v451 = vadd.f32 0.0, %v450
    %v452 = vpop.f32.mrb[0].mxu0
    %v453 = vadd.f32 0.0, %v452
    %v454 = vpop.f32.mrb[0].mxu0
    %v455 = vadd.f32 0.0, %v454
    %v456 = vpop.f32.mrb[0].mxu0
    %v457 = vadd.f32 0.0, %v456
    %458 = vdwg.mxu0
    %v459 = vpack.c.bf16 %v455, %v451
    %v460 = vpack.c.bf16 %v457, %v453
    %v461 = vld [vmem:[%s6] sm:$0x3]
    %v464 = vunpack.c.l.s4 1966171168
    %v465 = vunpack.c.0.s8 %v464
    %v466 = vlaneseq
    %v467 = vshrl.u32 %v466, 7
    %v468 = vsub.s32 %v465, %v467
    %v469 = vrot.slane %v461, %v468
    %v470 = vcombine.high %v469, %v469
    %v472 = vunpack.c.l.s4 1966171168
    %v473 = vunpack.c.0.s8 %v472
    %v474 = vlaneseq
    %v475 = vshrl.u32 %v474, 7
    %v476 = vsub.s32 %v473, %v475
    %v477 = vrot.slane %v469, %v476
    %v479 = vunpack.c.l.s4 1966171168
    %v480 = vunpack.c.0.s8 %v479
    %v481 = vlaneseq
    %v482 = vshrl.u32 %v481, 7
    %v483 = vsub.s32 %v480, %v482
    %v484 = vrot.slane %v470, %v483
    %v486 = vpack.i.b16 %v477, %v477
    %v488 = vlaneseq
    %v489 = vshrl.u32 %v488, 7
    %v490 = vsub.s32 0, %v489
    %v491 = vrot.slane %v486, %v490
    %v493 = vpack.i.b16 %v484, %v484
    %v495 = vlaneseq
    %v496 = vshrl.u32 %v495, 7
    %v497 = vsub.s32 0, %v496
    %v498 = vrot.slane %v493, %v497
    %v499 = vadd.bf16 %v459, %v491
    %v500 = vadd.bf16 %v460, %v498
    %v501 = vmax.bf16 %v499, 0
    %v502 = vmax.bf16 %v500, 0
    %v503 = vld [vmem:[#allocation10] sm:$0xff]
    %v504 = vld [vmem:[#allocation10 + $0x8] sm:$0xff]
    %v505 = vld [vmem:[#allocation10 + $0x10] sm:$0xff]
    %v506 = vld [vmem:[#allocation10 + $0x18] sm:$0xff]
    %v507 = vld [vmem:[#allocation10 + $0x20] sm:$0xff]
    %v508 = vld [vmem:[#allocation10 + $0x28] sm:$0xff]
    %v509 = vld [vmem:[#allocation10 + $0x30] sm:$0xff]
    %v510 = vld [vmem:[#allocation10 + $0x38] sm:$0xff]
    %v511 = vld [vmem:[#allocation10 + $0x40] sm:$0xff]
    %v512 = vld [vmem:[#allocation10 + $0x48] sm:$0xff]
    %v513 = vld [vmem:[#allocation10 + $0x50] sm:$0xff]
    %v514 = vld [vmem:[#allocation10 + $0x58] sm:$0xff]
    %v515 = vld [vmem:[#allocation10 + $0x60] sm:$0xff]
    %v516 = vld [vmem:[#allocation10 + $0x68] sm:$0xff]
    %v517 = vld [vmem:[#allocation10 + $0x70] sm:$0xff]
    %v518 = vld [vmem:[#allocation10 + $0x78] sm:$0xff]
    %v519 = vld [vmem:[#allocation10 + $0x80] sm:$0xff]
    %v520 = vld [vmem:[#allocation10 + $0x88] sm:$0xff]
    %v521 = vld [vmem:[#allocation10 + $0x90] sm:$0xff]
    %v522 = vld [vmem:[#allocation10 + $0x98] sm:$0xff]
    %v523 = vld [vmem:[#allocation10 + $0xa0] sm:$0xff]
    %v524 = vld [vmem:[#allocation10 + $0xa8] sm:$0xff]
    %v525 = vld [vmem:[#allocation10 + $0xb0] sm:$0xff]
    %v526 = vld [vmem:[#allocation10 + $0xb8] sm:$0xff]
    %v527 = vld [vmem:[#allocation10 + $0xc0] sm:$0xff]
    %v528 = vld [vmem:[#allocation10 + $0xc8] sm:$0xff]
    %v529 = vld [vmem:[#allocation10 + $0xd0] sm:$0xff]
    %v530 = vld [vmem:[#allocation10 + $0xd8] sm:$0xff]
    %v531 = vld [vmem:[#allocation10 + $0xe0] sm:$0xff]
    %v532 = vld [vmem:[#allocation10 + $0xe8] sm:$0xff]
    %v533 = vld [vmem:[#allocation10 + $0xf0] sm:$0xff]
    %v534 = vld [vmem:[#allocation10 + $0xf8] sm:$0xff]
    %v535 = vld [vmem:[#allocation10 + $0x100] sm:$0xff]
    %v536 = vld [vmem:[#allocation10 + $0x108] sm:$0xff]
    %v537 = vld [vmem:[#allocation10 + $0x110] sm:$0xff]
    %v538 = vld [vmem:[#allocation10 + $0x118] sm:$0xff]
    %v539 = vld [vmem:[#allocation10 + $0x120] sm:$0xff]
    %v540 = vld [vmem:[#allocation10 + $0x128] sm:$0xff]
    %v541 = vld [vmem:[#allocation10 + $0x130] sm:$0xff]
    %v542 = vld [vmem:[#allocation10 + $0x138] sm:$0xff]
    %v543 = vld [vmem:[#allocation10 + $0x140] sm:$0xff]
    %v544 = vld [vmem:[#allocation10 + $0x148] sm:$0xff]
    %v545 = vld [vmem:[#allocation10 + $0x150] sm:$0xff]
    %v546 = vld [vmem:[#allocation10 + $0x158] sm:$0xff]
    %v547 = vld [vmem:[#allocation10 + $0x160] sm:$0xff]
    %v548 = vld [vmem:[#allocation10 + $0x168] sm:$0xff]
    %v549 = vld [vmem:[#allocation10 + $0x170] sm:$0xff]
    %v550 = vld [vmem:[#allocation10 + $0x178] sm:$0xff]
    %v551 = vld [vmem:[#allocation10 + $0x180] sm:$0xff]
    %v552 = vld [vmem:[#allocation10 + $0x188] sm:$0xff]
    %v553 = vld [vmem:[#allocation10 + $0x190] sm:$0xff]
    %v554 = vld [vmem:[#allocation10 + $0x198] sm:$0xff]
    %v555 = vld [vmem:[#allocation10 + $0x1a0] sm:$0xff]
    %v556 = vld [vmem:[#allocation10 + $0x1a8] sm:$0xff]
    %v557 = vld [vmem:[#allocation10 + $0x1b0] sm:$0xff]
    %v558 = vld [vmem:[#allocation10 + $0x1b8] sm:$0xff]
    %v559 = vld [vmem:[#allocation10 + $0x1c0] sm:$0xff]
    %v560 = vld [vmem:[#allocation10 + $0x1c8] sm:$0xff]
    %v561 = vld [vmem:[#allocation10 + $0x1d0] sm:$0xff]
    %v562 = vld [vmem:[#allocation10 + $0x1d8] sm:$0xff]
    %v563 = vld [vmem:[#allocation10 + $0x1e0] sm:$0xff]
    %v564 = vld [vmem:[#allocation10 + $0x1e8] sm:$0xff]
    %v565 = vld [vmem:[#allocation10 + $0x1f0] sm:$0xff]
    %v566 = vld [vmem:[#allocation10 + $0x1f8] sm:$0xff]
    %v631 = vunpack.c.l.b16 %v503
    %v632 = vunpack.c.h.b16 %v503
    %v633 = vunpack.c.l.b16 %v504
    %v634 = vunpack.c.h.b16 %v504
    %v635 = vunpack.c.l.b16 %v505
    %v636 = vunpack.c.h.b16 %v505
    %v637 = vunpack.c.l.b16 %v506
    %v638 = vunpack.c.h.b16 %v506
    %v639 = vunpack.c.l.b16 %v507
    %v640 = vunpack.c.h.b16 %v507
    %v641 = vunpack.c.l.b16 %v508
    %v642 = vunpack.c.h.b16 %v508
    %v643 = vunpack.c.l.b16 %v509
    %v644 = vunpack.c.h.b16 %v509
    %v645 = vunpack.c.l.b16 %v510
    %v646 = vunpack.c.h.b16 %v510
    %v647 = vunpack.c.l.b16 %v511
    %v648 = vunpack.c.h.b16 %v511
    %v649 = vunpack.c.l.b16 %v512
    %v650 = vunpack.c.h.b16 %v512
    %v651 = vunpack.c.l.b16 %v513
    %v652 = vunpack.c.h.b16 %v513
    %v653 = vunpack.c.l.b16 %v514
    %v654 = vunpack.c.h.b16 %v514
    %v655 = vunpack.c.l.b16 %v515
    %v656 = vunpack.c.h.b16 %v515
    %v657 = vunpack.c.l.b16 %v516
    %v658 = vunpack.c.h.b16 %v516
    %v659 = vunpack.c.l.b16 %v517
    %v660 = vunpack.c.h.b16 %v517
    %v661 = vunpack.c.l.b16 %v518
    %v662 = vunpack.c.h.b16 %v518
    %v663 = vunpack.c.l.b16 %v519
    %v664 = vunpack.c.h.b16 %v519
    %v665 = vunpack.c.l.b16 %v520
    %v666 = vunpack.c.h.b16 %v520
    %v667 = vunpack.c.l.b16 %v521
    %v668 = vunpack.c.h.b16 %v521
    %v669 = vunpack.c.l.b16 %v522
    %v670 = vunpack.c.h.b16 %v522
    %v671 = vunpack.c.l.b16 %v523
    %v672 = vunpack.c.h.b16 %v523
    %v673 = vunpack.c.l.b16 %v524
    %v674 = vunpack.c.h.b16 %v524
    %v675 = vunpack.c.l.b16 %v525
    %v676 = vunpack.c.h.b16 %v525
    %v677 = vunpack.c.l.b16 %v526
    %v678 = vunpack.c.h.b16 %v526
    %v679 = vunpack.c.l.b16 %v527
    %v680 = vunpack.c.h.b16 %v527
    %v681 = vunpack.c.l.b16 %v528
    %v682 = vunpack.c.h.b16 %v528
    %v683 = vunpack.c.l.b16 %v529
    %v684 = vunpack.c.h.b16 %v529
    %v685 = vunpack.c.l.b16 %v530
    %v686 = vunpack.c.h.b16 %v530
    %v687 = vunpack.c.l.b16 %v531
    %v688 = vunpack.c.h.b16 %v531
    %v689 = vunpack.c.l.b16 %v532
    %v690 = vunpack.c.h.b16 %v532
    %v691 = vunpack.c.l.b16 %v533
    %v692 = vunpack.c.h.b16 %v533
    %v693 = vunpack.c.l.b16 %v534
    %v694 = vunpack.c.h.b16 %v534
    %v695 = vunpack.c.l.b16 %v535
    %v696 = vunpack.c.h.b16 %v535
    %v697 = vunpack.c.l.b16 %v536
    %v698 = vunpack.c.h.b16 %v536
    %v699 = vunpack.c.l.b16 %v537
    %v700 = vunpack.c.h.b16 %v537
    %v701 = vunpack.c.l.b16 %v538
    %v702 = vunpack.c.h.b16 %v538
    %v703 = vunpack.c.l.b16 %v539
    %v704 = vunpack.c.h.b16 %v539
    %v705 = vunpack.c.l.b16 %v540
    %v706 = vunpack.c.h.b16 %v540
    %v707 = vunpack.c.l.b16 %v541
    %v708 = vunpack.c.h.b16 %v541
    %v709 = vunpack.c.l.b16 %v542
    %v710 = vunpack.c.h.b16 %v542
    %v711 = vunpack.c.l.b16 %v543
    %v712 = vunpack.c.h.b16 %v543
    %v713 = vunpack.c.l.b16 %v544
    %v714 = vunpack.c.h.b16 %v544
    %v715 = vunpack.c.l.b16 %v545
    %v716 = vunpack.c.h.b16 %v545
    %v717 = vunpack.c.l.b16 %v546
    %v718 = vunpack.c.h.b16 %v546
    %v719 = vunpack.c.l.b16 %v547
    %v720 = vunpack.c.h.b16 %v547
    %v721 = vunpack.c.l.b16 %v548
    %v722 = vunpack.c.h.b16 %v548
    %v723 = vunpack.c.l.b16 %v549
    %v724 = vunpack.c.h.b16 %v549
    %v725 = vunpack.c.l.b16 %v550
    %v726 = vunpack.c.h.b16 %v550
    %v727 = vunpack.c.l.b16 %v551
    %v728 = vunpack.c.h.b16 %v551
    %v729 = vunpack.c.l.b16 %v552
    %v730 = vunpack.c.h.b16 %v552
    %v731 = vunpack.c.l.b16 %v553
    %v732 = vunpack.c.h.b16 %v553
    %v733 = vunpack.c.l.b16 %v554
    %v734 = vunpack.c.h.b16 %v554
    %v735 = vunpack.c.l.b16 %v555
    %v736 = vunpack.c.h.b16 %v555
    %v737 = vunpack.c.l.b16 %v556
    %v738 = vunpack.c.h.b16 %v556
    %v739 = vunpack.c.l.b16 %v557
    %v740 = vunpack.c.h.b16 %v557
    %v741 = vunpack.c.l.b16 %v558
    %v742 = vunpack.c.h.b16 %v558
    %v743 = vunpack.c.l.b16 %v559
    %v744 = vunpack.c.h.b16 %v559
    %v745 = vunpack.c.l.b16 %v560
    %v746 = vunpack.c.h.b16 %v560
    %v747 = vunpack.c.l.b16 %v561
    %v748 = vunpack.c.h.b16 %v561
    %v749 = vunpack.c.l.b16 %v562
    %v750 = vunpack.c.h.b16 %v562
    %v751 = vunpack.c.l.b16 %v563
    %v752 = vunpack.c.h.b16 %v563
    %v753 = vunpack.c.l.b16 %v564
    %v754 = vunpack.c.h.b16 %v564
    %v755 = vunpack.c.l.b16 %v565
    %v756 = vunpack.c.h.b16 %v565
    %v757 = vunpack.c.l.b16 %v566
    %v758 = vunpack.c.h.b16 %v566
    %v759 = vpack.c.b16 %v635, %v631
    %v760 = vpack.c.b16 %v636, %v632
    %v761 = vpack.c.b16 %v637, %v633
    %v762 = vpack.c.b16 %v638, %v634
    %v763 = vpack.c.b16 %v643, %v639
    %v764 = vpack.c.b16 %v644, %v640
    %v765 = vpack.c.b16 %v645, %v641
    %v766 = vpack.c.b16 %v646, %v642
    %v767 = vpack.c.b16 %v651, %v647
    %v768 = vpack.c.b16 %v652, %v648
    %v769 = vpack.c.b16 %v653, %v649
    %v770 = vpack.c.b16 %v654, %v650
    %v771 = vpack.c.b16 %v659, %v655
    %v772 = vpack.c.b16 %v660, %v656
    %v773 = vpack.c.b16 %v661, %v657
    %v774 = vpack.c.b16 %v662, %v658
    %v775 = vpack.c.b16 %v667, %v663
    %v776 = vpack.c.b16 %v668, %v664
    %v777 = vpack.c.b16 %v669, %v665
    %v778 = vpack.c.b16 %v670, %v666
    %v779 = vpack.c.b16 %v675, %v671
    %v780 = vpack.c.b16 %v676, %v672
    %v781 = vpack.c.b16 %v677, %v673
    %v782 = vpack.c.b16 %v678, %v674
    %v783 = vpack.c.b16 %v683, %v679
    %v784 = vpack.c.b16 %v684, %v680
    %v785 = vpack.c.b16 %v685, %v681
    %v786 = vpack.c.b16 %v686, %v682
    %v787 = vpack.c.b16 %v691, %v687
    %v788 = vpack.c.b16 %v692, %v688
    %v789 = vpack.c.b16 %v693, %v689
    %v790 = vpack.c.b16 %v694, %v690
    %v791 = vpack.c.b16 %v699, %v695
    %v792 = vpack.c.b16 %v700, %v696
    %v793 = vpack.c.b16 %v701, %v697
    %v794 = vpack.c.b16 %v702, %v698
    %v795 = vpack.c.b16 %v707, %v703
    %v796 = vpack.c.b16 %v708, %v704
    %v797 = vpack.c.b16 %v709, %v705
    %v798 = vpack.c.b16 %v710, %v706
    %v799 = vpack.c.b16 %v715, %v711
    %v800 = vpack.c.b16 %v716, %v712
    %v801 = vpack.c.b16 %v717, %v713
    %v802 = vpack.c.b16 %v718, %v714
    %v803 = vpack.c.b16 %v723, %v719
    %v804 = vpack.c.b16 %v724, %v720
    %v805 = vpack.c.b16 %v725, %v721
    %v806 = vpack.c.b16 %v726, %v722
    %v807 = vpack.c.b16 %v731, %v727
    %v808 = vpack.c.b16 %v732, %v728
    %v809 = vpack.c.b16 %v733, %v729
    %v810 = vpack.c.b16 %v734, %v730
    %v811 = vpack.c.b16 %v739, %v735
    %v812 = vpack.c.b16 %v740, %v736
    %v813 = vpack.c.b16 %v741, %v737
    %v814 = vpack.c.b16 %v742, %v738
    %v815 = vpack.c.b16 %v747, %v743
    %v816 = vpack.c.b16 %v748, %v744
    %v817 = vpack.c.b16 %v749, %v745
    %v818 = vpack.c.b16 %v750, %v746
    %v819 = vpack.c.b16 %v755, %v751
    %v820 = vpack.c.b16 %v756, %v752
    %v821 = vpack.c.b16 %v757, %v753
    %v822 = vpack.c.b16 %v758, %v754
    %887 = vmatprep.subr.bf16.mxu0 %v760
    %888 = vmatpush1.bf16.msra.mxu0 %v759
    %889 = vmatprep.subr.bf16.mxu0 %v764
    %890 = vmatpush1.bf16.msra.mxu0 %v763
    %891 = vmatprep.subr.bf16.mxu0 %v768
    %892 = vmatpush1.bf16.msra.mxu0 %v767
    %893 = vmatprep.subr.bf16.mxu0 %v772
    %894 = vmatpush1.bf16.msra.mxu0 %v771
    %895 = vmatprep.subr.bf16.mxu0 %v776
    %896 = vmatpush1.bf16.msra.mxu0 %v775
    %897 = vmatprep.subr.bf16.mxu0 %v780
    %898 = vmatpush1.bf16.msra.mxu0 %v779
    %899 = vmatprep.subr.bf16.mxu0 %v784
    %900 = vmatpush1.bf16.msra.mxu0 %v783
    %901 = vmatprep.subr.bf16.mxu0 %v788
    %902 = vmatpush1.bf16.msra.mxu0 %v787
    %903 = vmatprep.subr.bf16.mxu0 %v792
    %904 = vmatpush1.bf16.msra.mxu0 %v791
    %905 = vmatprep.subr.bf16.mxu0 %v796
    %906 = vmatpush1.bf16.msra.mxu0 %v795
    %907 = vmatprep.subr.bf16.mxu0 %v800
    %908 = vmatpush1.bf16.msra.mxu0 %v799
    %909 = vmatprep.subr.bf16.mxu0 %v804
    %910 = vmatpush1.bf16.msra.mxu0 %v803
    %911 = vmatprep.subr.bf16.mxu0 %v808
    %912 = vmatpush1.bf16.msra.mxu0 %v807
    %913 = vmatprep.subr.bf16.mxu0 %v812
    %914 = vmatpush1.bf16.msra.mxu0 %v811
    %915 = vmatprep.subr.bf16.mxu0 %v816
    %916 = vmatpush1.bf16.msra.mxu0 %v815
    %917 = vmatprep.subr.bf16.mxu0 %v820
    %918 = vmatpush1.bf16.msra.mxu0 %v819
    %919 = vmatprep.mubr.bf16.mxu0 %v502
    %920 = vmatmul.mubr.bf16.gmra.mrb[0].mxu0 %v501
    %v921 = vpop.f32.mrb[0].mxu0
    %v922 = vadd.f32 0.0, %v921
    %v923 = vpop.f32.mrb[0].mxu0
    %v924 = vadd.f32 0.0, %v923
    %v925 = vpop.f32.mrb[0].mxu0
    %v926 = vadd.f32 0.0, %v925
    %v927 = vpop.f32.mrb[0].mxu0
    %v928 = vadd.f32 0.0, %v927
    %929 = vdwg.mxu0
    %930 = vmatprep.subr.bf16.mxu0 %v762
    %931 = vmatpush1.bf16.msra.mxu0 %v761
    %932 = vmatprep.subr.bf16.mxu0 %v766
    %933 = vmatpush1.bf16.msra.mxu0 %v765
    %934 = vmatprep.subr.bf16.mxu0 %v770
    %935 = vmatpush1.bf16.msra.mxu0 %v769
    %936 = vmatprep.subr.bf16.mxu0 %v774
    %937 = vmatpush1.bf16.msra.mxu0 %v773
    %938 = vmatprep.subr.bf16.mxu0 %v778
    %939 = vmatpush1.bf16.msra.mxu0 %v777
    %940 = vmatprep.subr.bf16.mxu0 %v782
    %941 = vmatpush1.bf16.msra.mxu0 %v781
    %942 = vmatprep.subr.bf16.mxu0 %v786
    %943 = vmatpush1.bf16.msra.mxu0 %v785
    %944 = vmatprep.subr.bf16.mxu0 %v790
    %945 = vmatpush1.bf16.msra.mxu0 %v789
    %946 = vmatprep.subr.bf16.mxu0 %v794
    %947 = vmatpush1.bf16.msra.mxu0 %v793
    %948 = vmatprep.subr.bf16.mxu0 %v798
    %949 = vmatpush1.bf16.msra.mxu0 %v797
    %950 = vmatprep.subr.bf16.mxu0 %v802
    %951 = vmatpush1.bf16.msra.mxu0 %v801
    %952 = vmatprep.subr.bf16.mxu0 %v806
    %953 = vmatpush1.bf16.msra.mxu0 %v805
    %954 = vmatprep.subr.bf16.mxu0 %v810
    %955 = vmatpush1.bf16.msra.mxu0 %v809
    %956 = vmatprep.subr.bf16.mxu0 %v814
    %957 = vmatpush1.bf16.msra.mxu0 %v813
    %958 = vmatprep.subr.bf16.mxu0 %v818
    %959 = vmatpush1.bf16.msra.mxu0 %v817
    %960 = vmatprep.subr.bf16.mxu0 %v822
    %961 = vmatpush1.bf16.msra.mxu0 %v821
    %962 = vmatprep.mubr.bf16.mxu0 %v502
    %963 = vmatmul.mubr.bf16.gmra.mrb[0].mxu0 %v501
    %v964 = vpop.f32.mrb[0].mxu0
    %v965 = vadd.f32 0.0, %v964
    %v966 = vpop.f32.mrb[0].mxu0
    %v967 = vadd.f32 0.0, %v966
    %v968 = vpop.f32.mrb[0].mxu0
    %v969 = vadd.f32 0.0, %v968
    %v970 = vpop.f32.mrb[0].mxu0
    %v971 = vadd.f32 0.0, %v970
    %972 = vdwg.mxu0
    %v973 = vpack.c.bf16 %v926, %v922
    %v974 = vpack.c.bf16 %v928, %v924
    %v975 = vpack.c.bf16 %v969, %v965
    %v976 = vpack.c.bf16 %v971, %v967
    %v977 = vld [vmem:[%s8] sm:$0xf]
    %v980 = vunpack.c.l.s4 1966171168
    %v981 = vunpack.c.0.s8 %v980
    %v982 = vlaneseq
    %v983 = vshrl.u32 %v982, 7
    %v984 = vsub.s32 %v981, %v983
    %v985 = vrot.slane %v977, %v984
    %v986 = vcombine.high %v985, %v985
    %v988 = vunpack.c.l.s4 1966171168
    %v989 = vunpack.c.0.s8 %v988
    %v990 = vlaneseq
    %v991 = vshrl.u32 %v990, 7
    %v992 = vsub.s32 %v989, %v991
    %v993 = vrot.slane %v985, %v992
    %v995 = vunpack.c.l.s4 1966171168
    %v996 = vunpack.c.0.s8 %v995
    %v997 = vlaneseq
    %v998 = vshrl.u32 %v997, 7
    %v999 = vsub.s32 %v996, %v998
    %v1000 = vrot.slane %v986, %v999
    %v1001 = vcombine.high %v993, %v993
    %v1002 = vcombine.high %v1000, %v1000
    %v1004 = vpack.i.b16 %v993, %v993
    %v1006 = vlaneseq
    %v1007 = vshrl.u32 %v1006, 7
    %v1008 = vsub.s32 0, %v1007
    %v1009 = vrot.slane %v1004, %v1008
    %v1011 = vpack.i.b16 %v1000, %v1000
    %v1013 = vlaneseq
    %v1014 = vshrl.u32 %v1013, 7
    %v1015 = vsub.s32 0, %v1014
    %v1016 = vrot.slane %v1011, %v1015
    %v1018 = vpack.i.b16 %v1001, %v1001
    %v1020 = vlaneseq
    %v1021 = vshrl.u32 %v1020, 7
    %v1022 = vsub.s32 0, %v1021
    %v1023 = vrot.slane %v1018, %v1022
    %v1025 = vpack.i.b16 %v1002, %v1002
    %v1027 = vlaneseq
    %v1028 = vshrl.u32 %v1027, 7
    %v1029 = vsub.s32 0, %v1028
    %v1030 = vrot.slane %v1025, %v1029
    %v1031 = vadd.bf16 %v973, %v1009
    %v1032 = vadd.bf16 %v974, %v1016
    %v1033 = vadd.bf16 %v975, %v1023
    %v1034 = vadd.bf16 %v976, %v1030
    %v1035 = vmax.bf16 %v1031, 0
    %v1036 = vmax.bf16 %v1032, 0
    %v1037 = vmax.bf16 %v1033, 0
    %v1038 = vmax.bf16 %v1034, 0
    %v1039 = vld [vmem:[#allocation11] sm:$0xff]
    %v1040 = vld [vmem:[#allocation11 + $0x8] sm:$0xff]
    %v1041 = vld [vmem:[#allocation11 + $0x10] sm:$0xff]
    %v1042 = vld [vmem:[#allocation11 + $0x18] sm:$0xff]
    %v1043 = vld [vmem:[#allocation11 + $0x20] sm:$0xff]
    %v1044 = vld [vmem:[#allocation11 + $0x28] sm:$0xff]
    %v1045 = vld [vmem:[#allocation11 + $0x30] sm:$0xff]
    %v1046 = vld [vmem:[#allocation11 + $0x38] sm:$0xff]
    %v1047 = vld [vmem:[#allocation11 + $0x40] sm:$0xff]
    %v1048 = vld [vmem:[#allocation11 + $0x48] sm:$0xff]
    %v1049 = vld [vmem:[#allocation11 + $0x50] sm:$0xff]
    %v1050 = vld [vmem:[#allocation11 + $0x58] sm:$0xff]
    %v1051 = vld [vmem:[#allocation11 + $0x60] sm:$0xff]
    %v1052 = vld [vmem:[#allocation11 + $0x68] sm:$0xff]
    %v1053 = vld [vmem:[#allocation11 + $0x70] sm:$0xff]
    %v1054 = vld [vmem:[#allocation11 + $0x78] sm:$0xff]
    %v1055 = vld [vmem:[#allocation11 + $0x80] sm:$0xff]
    %v1056 = vld [vmem:[#allocation11 + $0x88] sm:$0xff]
    %v1057 = vld [vmem:[#allocation11 + $0x90] sm:$0xff]
    %v1058 = vld [vmem:[#allocation11 + $0x98] sm:$0xff]
    %v1059 = vld [vmem:[#allocation11 + $0xa0] sm:$0xff]
    %v1060 = vld [vmem:[#allocation11 + $0xa8] sm:$0xff]
    %v1061 = vld [vmem:[#allocation11 + $0xb0] sm:$0xff]
    %v1062 = vld [vmem:[#allocation11 + $0xb8] sm:$0xff]
    %v1063 = vld [vmem:[#allocation11 + $0xc0] sm:$0xff]
    %v1064 = vld [vmem:[#allocation11 + $0xc8] sm:$0xff]
    %v1065 = vld [vmem:[#allocation11 + $0xd0] sm:$0xff]
    %v1066 = vld [vmem:[#allocation11 + $0xd8] sm:$0xff]
    %v1067 = vld [vmem:[#allocation11 + $0xe0] sm:$0xff]
    %v1068 = vld [vmem:[#allocation11 + $0xe8] sm:$0xff]
    %v1069 = vld [vmem:[#allocation11 + $0xf0] sm:$0xff]
    %v1070 = vld [vmem:[#allocation11 + $0xf8] sm:$0xff]
    %v1071 = vld [vmem:[#allocation11 + $0x100] sm:$0xff]
    %v1072 = vld [vmem:[#allocation11 + $0x108] sm:$0xff]
    %v1073 = vld [vmem:[#allocation11 + $0x110] sm:$0xff]
    %v1074 = vld [vmem:[#allocation11 + $0x118] sm:$0xff]
    %v1075 = vld [vmem:[#allocation11 + $0x120] sm:$0xff]
    %v1076 = vld [vmem:[#allocation11 + $0x128] sm:$0xff]
    %v1077 = vld [vmem:[#allocation11 + $0x130] sm:$0xff]
    %v1078 = vld [vmem:[#allocation11 + $0x138] sm:$0xff]
    %v1079 = vld [vmem:[#allocation11 + $0x140] sm:$0xff]
    %v1080 = vld [vmem:[#allocation11 + $0x148] sm:$0xff]
    %v1081 = vld [vmem:[#allocation11 + $0x150] sm:$0xff]
    %v1082 = vld [vmem:[#allocation11 + $0x158] sm:$0xff]
    %v1083 = vld [vmem:[#allocation11 + $0x160] sm:$0xff]
    %v1084 = vld [vmem:[#allocation11 + $0x168] sm:$0xff]
    %v1085 = vld [vmem:[#allocation11 + $0x170] sm:$0xff]
    %v1086 = vld [vmem:[#allocation11 + $0x178] sm:$0xff]
    %v1087 = vld [vmem:[#allocation11 + $0x180] sm:$0xff]
    %v1088 = vld [vmem:[#allocation11 + $0x188] sm:$0xff]
    %v1089 = vld [vmem:[#allocation11 + $0x190] sm:$0xff]
    %v1090 = vld [vmem:[#allocation11 + $0x198] sm:$0xff]
    %v1091 = vld [vmem:[#allocation11 + $0x1a0] sm:$0xff]
    %v1092 = vld [vmem:[#allocation11 + $0x1a8] sm:$0xff]
    %v1093 = vld [vmem:[#allocation11 + $0x1b0] sm:$0xff]
    %v1094 = vld [vmem:[#allocation11 + $0x1b8] sm:$0xff]
    %v1095 = vld [vmem:[#allocation11 + $0x1c0] sm:$0xff]
    %v1096 = vld [vmem:[#allocation11 + $0x1c8] sm:$0xff]
    %v1097 = vld [vmem:[#allocation11 + $0x1d0] sm:$0xff]
    %v1098 = vld [vmem:[#allocation11 + $0x1d8] sm:$0xff]
    %v1099 = vld [vmem:[#allocation11 + $0x1e0] sm:$0xff]
    %v1100 = vld [vmem:[#allocation11 + $0x1e8] sm:$0xff]
    %v1101 = vld [vmem:[#allocation11 + $0x1f0] sm:$0xff]
    %v1102 = vld [vmem:[#allocation11 + $0x1f8] sm:$0xff]
    %v1167 = vunpack.c.l.b16 %v1039
    %v1168 = vunpack.c.h.b16 %v1039
    %v1169 = vunpack.c.l.b16 %v1040
    %v1170 = vunpack.c.h.b16 %v1040
    %v1171 = vunpack.c.l.b16 %v1041
    %v1172 = vunpack.c.h.b16 %v1041
    %v1173 = vunpack.c.l.b16 %v1042
    %v1174 = vunpack.c.h.b16 %v1042
    %v1175 = vunpack.c.l.b16 %v1043
    %v1176 = vunpack.c.h.b16 %v1043
    %v1177 = vunpack.c.l.b16 %v1044
    %v1178 = vunpack.c.h.b16 %v1044
    %v1179 = vunpack.c.l.b16 %v1045
    %v1180 = vunpack.c.h.b16 %v1045
    %v1181 = vunpack.c.l.b16 %v1046
    %v1182 = vunpack.c.h.b16 %v1046
    %v1183 = vunpack.c.l.b16 %v1047
    %v1184 = vunpack.c.h.b16 %v1047
    %v1185 = vunpack.c.l.b16 %v1048
    %v1186 = vunpack.c.h.b16 %v1048
    %v1187 = vunpack.c.l.b16 %v1049
    %v1188 = vunpack.c.h.b16 %v1049
    %v1189 = vunpack.c.l.b16 %v1050
    %v1190 = vunpack.c.h.b16 %v1050
    %v1191 = vunpack.c.l.b16 %v1051
    %v1192 = vunpack.c.h.b16 %v1051
    %v1193 = vunpack.c.l.b16 %v1052
    %v1194 = vunpack.c.h.b16 %v1052
    %v1195 = vunpack.c.l.b16 %v1053
    %v1196 = vunpack.c.h.b16 %v1053
    %v1197 = vunpack.c.l.b16 %v1054
    %v1198 = vunpack.c.h.b16 %v1054
    %v1199 = vunpack.c.l.b16 %v1055
    %v1200 = vunpack.c.h.b16 %v1055
    %v1201 = vunpack.c.l.b16 %v1056
    %v1202 = vunpack.c.h.b16 %v1056
    %v1203 = vunpack.c.l.b16 %v1057
    %v1204 = vunpack.c.h.b16 %v1057
    %v1205 = vunpack.c.l.b16 %v1058
    %v1206 = vunpack.c.h.b16 %v1058
    %v1207 = vunpack.c.l.b16 %v1059
    %v1208 = vunpack.c.h.b16 %v1059
    %v1209 = vunpack.c.l.b16 %v1060
    %v1210 = vunpack.c.h.b16 %v1060
    %v1211 = vunpack.c.l.b16 %v1061
    %v1212 = vunpack.c.h.b16 %v1061
    %v1213 = vunpack.c.l.b16 %v1062
    %v1214 = vunpack.c.h.b16 %v1062
    %v1215 = vunpack.c.l.b16 %v1063
    %v1216 = vunpack.c.h.b16 %v1063
    %v1217 = vunpack.c.l.b16 %v1064
    %v1218 = vunpack.c.h.b16 %v1064
    %v1219 = vunpack.c.l.b16 %v1065
    %v1220 = vunpack.c.h.b16 %v1065
    %v1221 = vunpack.c.l.b16 %v1066
    %v1222 = vunpack.c.h.b16 %v1066
    %v1223 = vunpack.c.l.b16 %v1067
    %v1224 = vunpack.c.h.b16 %v1067
    %v1225 = vunpack.c.l.b16 %v1068
    %v1226 = vunpack.c.h.b16 %v1068
    %v1227 = vunpack.c.l.b16 %v1069
    %v1228 = vunpack.c.h.b16 %v1069
    %v1229 = vunpack.c.l.b16 %v1070
    %v1230 = vunpack.c.h.b16 %v1070
    %v1231 = vunpack.c.l.b16 %v1071
    %v1232 = vunpack.c.h.b16 %v1071
    %v1233 = vunpack.c.l.b16 %v1072
    %v1234 = vunpack.c.h.b16 %v1072
    %v1235 = vunpack.c.l.b16 %v1073
    %v1236 = vunpack.c.h.b16 %v1073
    %v1237 = vunpack.c.l.b16 %v1074
    %v1238 = vunpack.c.h.b16 %v1074
    %v1239 = vunpack.c.l.b16 %v1075
    %v1240 = vunpack.c.h.b16 %v1075
    %v1241 = vunpack.c.l.b16 %v1076
    %v1242 = vunpack.c.h.b16 %v1076
    %v1243 = vunpack.c.l.b16 %v1077
    %v1244 = vunpack.c.h.b16 %v1077
    %v1245 = vunpack.c.l.b16 %v1078
    %v1246 = vunpack.c.h.b16 %v1078
    %v1247 = vunpack.c.l.b16 %v1079
    %v1248 = vunpack.c.h.b16 %v1079
    %v1249 = vunpack.c.l.b16 %v1080
    %v1250 = vunpack.c.h.b16 %v1080
    %v1251 = vunpack.c.l.b16 %v1081
    %v1252 = vunpack.c.h.b16 %v1081
    %v1253 = vunpack.c.l.b16 %v1082
    %v1254 = vunpack.c.h.b16 %v1082
    %v1255 = vunpack.c.l.b16 %v1083
    %v1256 = vunpack.c.h.b16 %v1083
    %v1257 = vunpack.c.l.b16 %v1084
    %v1258 = vunpack.c.h.b16 %v1084
    %v1259 = vunpack.c.l.b16 %v1085
    %v1260 = vunpack.c.h.b16 %v1085
    %v1261 = vunpack.c.l.b16 %v1086
    %v1262 = vunpack.c.h.b16 %v1086
    %v1263 = vunpack.c.l.b16 %v1087
    %v1264 = vunpack.c.h.b16 %v1087
    %v1265 = vunpack.c.l.b16 %v1088
    %v1266 = vunpack.c.h.b16 %v1088
    %v1267 = vunpack.c.l.b16 %v1089
    %v1268 = vunpack.c.h.b16 %v1089
    %v1269 = vunpack.c.l.b16 %v1090
    %v1270 = vunpack.c.h.b16 %v1090
    %v1271 = vunpack.c.l.b16 %v1091
    %v1272 = vunpack.c.h.b16 %v1091
    %v1273 = vunpack.c.l.b16 %v1092
    %v1274 = vunpack.c.h.b16 %v1092
    %v1275 = vunpack.c.l.b16 %v1093
    %v1276 = vunpack.c.h.b16 %v1093
    %v1277 = vunpack.c.l.b16 %v1094
    %v1278 = vunpack.c.h.b16 %v1094
    %v1279 = vunpack.c.l.b16 %v1095
    %v1280 = vunpack.c.h.b16 %v1095
    %v1281 = vunpack.c.l.b16 %v1096
    %v1282 = vunpack.c.h.b16 %v1096
    %v1283 = vunpack.c.l.b16 %v1097
    %v1284 = vunpack.c.h.b16 %v1097
    %v1285 = vunpack.c.l.b16 %v1098
    %v1286 = vunpack.c.h.b16 %v1098
    %v1287 = vunpack.c.l.b16 %v1099
    %v1288 = vunpack.c.h.b16 %v1099
    %v1289 = vunpack.c.l.b16 %v1100
    %v1290 = vunpack.c.h.b16 %v1100
    %v1291 = vunpack.c.l.b16 %v1101
    %v1292 = vunpack.c.h.b16 %v1101
    %v1293 = vunpack.c.l.b16 %v1102
    %v1294 = vunpack.c.h.b16 %v1102
    %v1295 = vpack.c.b16 %v1169, %v1167
    %v1296 = vpack.c.b16 %v1170, %v1168
    %v1297 = vpack.c.b16 %v1173, %v1171
    %v1298 = vpack.c.b16 %v1174, %v1172
    %v1299 = vpack.c.b16 %v1177, %v1175
    %v1300 = vpack.c.b16 %v1178, %v1176
    %v1301 = vpack.c.b16 %v1181, %v1179
    %v1302 = vpack.c.b16 %v1182, %v1180
    %v1303 = vpack.c.b16 %v1185, %v1183
    %v1304 = vpack.c.b16 %v1186, %v1184
    %v1305 = vpack.c.b16 %v1189, %v1187
    %v1306 = vpack.c.b16 %v1190, %v1188
    %v1307 = vpack.c.b16 %v1193, %v1191
    %v1308 = vpack.c.b16 %v1194, %v1192
    %v1309 = vpack.c.b16 %v1197, %v1195
    %v1310 = vpack.c.b16 %v1198, %v1196
    %v1311 = vpack.c.b16 %v1201, %v1199
    %v1312 = vpack.c.b16 %v1202, %v1200
    %v1313 = vpack.c.b16 %v1205, %v1203
    %v1314 = vpack.c.b16 %v1206, %v1204
    %v1315 = vpack.c.b16 %v1209, %v1207
    %v1316 = vpack.c.b16 %v1210, %v1208
    %v1317 = vpack.c.b16 %v1213, %v1211
    %v1318 = vpack.c.b16 %v1214, %v1212
    %v1319 = vpack.c.b16 %v1217, %v1215
    %v1320 = vpack.c.b16 %v1218, %v1216
    %v1321 = vpack.c.b16 %v1221, %v1219
    %v1322 = vpack.c.b16 %v1222, %v1220
    %v1323 = vpack.c.b16 %v1225, %v1223
    %v1324 = vpack.c.b16 %v1226, %v1224
    %v1325 = vpack.c.b16 %v1229, %v1227
    %v1326 = vpack.c.b16 %v1230, %v1228
    %v1327 = vpack.c.b16 %v1233, %v1231
    %v1328 = vpack.c.b16 %v1234, %v1232
    %v1329 = vpack.c.b16 %v1237, %v1235
    %v1330 = vpack.c.b16 %v1238, %v1236
    %v1331 = vpack.c.b16 %v1241, %v1239
    %v1332 = vpack.c.b16 %v1242, %v1240
    %v1333 = vpack.c.b16 %v1245, %v1243
    %v1334 = vpack.c.b16 %v1246, %v1244
    %v1335 = vpack.c.b16 %v1249, %v1247
    %v1336 = vpack.c.b16 %v1250, %v1248
    %v1337 = vpack.c.b16 %v1253, %v1251
    %v1338 = vpack.c.b16 %v1254, %v1252
    %v1339 = vpack.c.b16 %v1257, %v1255
    %v1340 = vpack.c.b16 %v1258, %v1256
    %v1341 = vpack.c.b16 %v1261, %v1259
    %v1342 = vpack.c.b16 %v1262, %v1260
    %v1343 = vpack.c.b16 %v1265, %v1263
    %v1344 = vpack.c.b16 %v1266, %v1264
    %v1345 = vpack.c.b16 %v1269, %v1267
    %v1346 = vpack.c.b16 %v1270, %v1268
    %v1347 = vpack.c.b16 %v1273, %v1271
    %v1348 = vpack.c.b16 %v1274, %v1272
    %v1349 = vpack.c.b16 %v1277, %v1275
    %v1350 = vpack.c.b16 %v1278, %v1276
    %v1351 = vpack.c.b16 %v1281, %v1279
    %v1352 = vpack.c.b16 %v1282, %v1280
    %v1353 = vpack.c.b16 %v1285, %v1283
    %v1354 = vpack.c.b16 %v1286, %v1284
    %v1355 = vpack.c.b16 %v1289, %v1287
    %v1356 = vpack.c.b16 %v1290, %v1288
    %v1357 = vpack.c.b16 %v1293, %v1291
    %v1358 = vpack.c.b16 %v1294, %v1292
    %1423 = vmatprep.subr.bf16.mxu0 %v1296
    %1424 = vmatpush1.bf16.msra.mxu0 %v1295
    %1425 = vmatprep.subr.bf16.mxu0 %v1298
    %1426 = vmatpush1.bf16.msra.mxu0 %v1297
    %1427 = vmatprep.subr.bf16.mxu0 %v1300
    %1428 = vmatpush1.bf16.msra.mxu0 %v1299
    %1429 = vmatprep.subr.bf16.mxu0 %v1302
    %1430 = vmatpush1.bf16.msra.mxu0 %v1301
    %1431 = vmatprep.subr.bf16.mxu0 %v1304
    %1432 = vmatpush1.bf16.msra.mxu0 %v1303
    %1433 = vmatprep.subr.bf16.mxu0 %v1306
    %1434 = vmatpush1.bf16.msra.mxu0 %v1305
    %1435 = vmatprep.subr.bf16.mxu0 %v1308
    %1436 = vmatpush1.bf16.msra.mxu0 %v1307
    %1437 = vmatprep.subr.bf16.mxu0 %v1310
    %1438 = vmatpush1.bf16.msra.mxu0 %v1309
    %1439 = vmatprep.subr.bf16.mxu0 %v1312
    %1440 = vmatpush1.bf16.msra.mxu0 %v1311
    %1441 = vmatprep.subr.bf16.mxu0 %v1314
    %1442 = vmatpush1.bf16.msra.mxu0 %v1313
    %1443 = vmatprep.subr.bf16.mxu0 %v1316
    %1444 = vmatpush1.bf16.msra.mxu0 %v1315
    %1445 = vmatprep.subr.bf16.mxu0 %v1318
    %1446 = vmatpush1.bf16.msra.mxu0 %v1317
    %1447 = vmatprep.subr.bf16.mxu0 %v1320
    %1448 = vmatpush1.bf16.msra.mxu0 %v1319
    %1449 = vmatprep.subr.bf16.mxu0 %v1322
    %1450 = vmatpush1.bf16.msra.mxu0 %v1321
    %1451 = vmatprep.subr.bf16.mxu0 %v1324
    %1452 = vmatpush1.bf16.msra.mxu0 %v1323
    %1453 = vmatprep.subr.bf16.mxu0 %v1326
    %1454 = vmatpush1.bf16.msra.mxu0 %v1325
    %1455 = vmatprep.mubr.bf16.mxu0 %v1036
    %1456 = vmatmul.mubr.bf16.gmra.mrb[0].mxu0 %v1035
    %v1457 = vpop.f32.mrb[0].mxu0
    %v1458 = vadd.f32 0.0, %v1457
    %v1459 = vpop.f32.mrb[0].mxu0
    %v1460 = vadd.f32 0.0, %v1459
    %v1461 = vpop.f32.mrb[0].mxu0
    %v1462 = vadd.f32 0.0, %v1461
    %v1463 = vpop.f32.mrb[0].mxu0
    %v1464 = vadd.f32 0.0, %v1463
    %1465 = vdwg.mxu0
    %1466 = vmatprep.subr.bf16.mxu0 %v1328
    %1467 = vmatpush1.bf16.msra.mxu0 %v1327
    %1468 = vmatprep.subr.bf16.mxu0 %v1330
    %1469 = vmatpush1.bf16.msra.mxu0 %v1329
    %1470 = vmatprep.subr.bf16.mxu0 %v1332
    %1471 = vmatpush1.bf16.msra.mxu0 %v1331
    %1472 = vmatprep.subr.bf16.mxu0 %v1334
    %1473 = vmatpush1.bf16.msra.mxu0 %v1333
    %1474 = vmatprep.subr.bf16.mxu0 %v1336
    %1475 = vmatpush1.bf16.msra.mxu0 %v1335
    %1476 = vmatprep.subr.bf16.mxu0 %v1338
    %1477 = vmatpush1.bf16.msra.mxu0 %v1337
    %1478 = vmatprep.subr.bf16.mxu0 %v1340
    %1479 = vmatpush1.bf16.msra.mxu0 %v1339
    %1480 = vmatprep.subr.bf16.mxu0 %v1342
    %1481 = vmatpush1.bf16.msra.mxu0 %v1341
    %1482 = vmatprep.subr.bf16.mxu0 %v1344
    %1483 = vmatpush1.bf16.msra.mxu0 %v1343
    %1484 = vmatprep.subr.bf16.mxu0 %v1346
    %1485 = vmatpush1.bf16.msra.mxu0 %v1345
    %1486 = vmatprep.subr.bf16.mxu0 %v1348
    %1487 = vmatpush1.bf16.msra.mxu0 %v1347
    %1488 = vmatprep.subr.bf16.mxu0 %v1350
    %1489 = vmatpush1.bf16.msra.mxu0 %v1349
    %1490 = vmatprep.subr.bf16.mxu0 %v1352
    %1491 = vmatpush1.bf16.msra.mxu0 %v1351
    %1492 = vmatprep.subr.bf16.mxu0 %v1354
    %1493 = vmatpush1.bf16.msra.mxu0 %v1353
    %1494 = vmatprep.subr.bf16.mxu0 %v1356
    %1495 = vmatpush1.bf16.msra.mxu0 %v1355
    %1496 = vmatprep.subr.bf16.mxu0 %v1358
    %1497 = vmatpush1.bf16.msra.mxu0 %v1357
    %1498 = vmatprep.mubr.bf16.mxu0 %v1038
    %1499 = vmatmul.mubr.bf16.gmra.mrb[0].mxu0 %v1037
    %v1500 = vpop.f32.mrb[0].mxu0
    %v1501 = vadd.f32 %v1458, %v1500
    %v1502 = vpop.f32.mrb[0].mxu0
    %v1503 = vadd.f32 %v1460, %v1502
    %v1504 = vpop.f32.mrb[0].mxu0
    %v1505 = vadd.f32 %v1462, %v1504
    %v1506 = vpop.f32.mrb[0].mxu0
    %v1507 = vadd.f32 %v1464, %v1506
    %1508 = vdwg.mxu0
    %v1509 = vpack.c.bf16 %v1505, %v1501
    %v1510 = vpack.c.bf16 %v1507, %v1503
    %v1511 = vld [vmem:[%s10] sm:$0x3]
    %v1514 = vunpack.c.l.s4 1966171168
    %v1515 = vunpack.c.0.s8 %v1514
    %v1516 = vlaneseq
    %v1517 = vshrl.u32 %v1516, 7
    %v1518 = vsub.s32 %v1515, %v1517
    %v1519 = vrot.slane %v1511, %v1518
    %v1520 = vcombine.high %v1519, %v1519
    %v1522 = vunpack.c.l.s4 1966171168
    %v1523 = vunpack.c.0.s8 %v1522
    %v1524 = vlaneseq
    %v1525 = vshrl.u32 %v1524, 7
    %v1526 = vsub.s32 %v1523, %v1525
    %v1527 = vrot.slane %v1519, %v1526
    %v1529 = vunpack.c.l.s4 1966171168
    %v1530 = vunpack.c.0.s8 %v1529
    %v1531 = vlaneseq
    %v1532 = vshrl.u32 %v1531, 7
    %v1533 = vsub.s32 %v1530, %v1532
    %v1534 = vrot.slane %v1520, %v1533
    %v1536 = vpack.i.b16 %v1527, %v1527
    %v1538 = vlaneseq
    %v1539 = vshrl.u32 %v1538, 7
    %v1540 = vsub.s32 0, %v1539
    %v1541 = vrot.slane %v1536, %v1540
    %v1543 = vpack.i.b16 %v1534, %v1534
    %v1545 = vlaneseq
    %v1546 = vshrl.u32 %v1545, 7
    %v1547 = vsub.s32 0, %v1546
    %v1548 = vrot.slane %v1543, %v1547
    %v1549 = vadd.bf16 %v1509, %v1541
    %v1550 = vadd.bf16 %v1510, %v1548
    %v1551 = vmax.bf16 %v1549, 0
    %v1552 = vmax.bf16 %v1550, 0
    %v1553 = vld [vmem:[#allocation13] sm:$0xf]
    %v1554 = vld [vmem:[#allocation13 + $0x4] sm:$0xf]
    %v1555 = vld [vmem:[#allocation13 + $0x8] sm:$0xf]
    %v1556 = vld [vmem:[#allocation13 + $0xc] sm:$0xf]
    %v1557 = vld [vmem:[#allocation13 + $0x10] sm:$0xf]
    %v1558 = vld [vmem:[#allocation13 + $0x14] sm:$0xf]
    %v1559 = vld [vmem:[#allocation13 + $0x18] sm:$0xf]
    %v1560 = vld [vmem:[#allocation13 + $0x1c] sm:$0xf]
    %v1561 = vld [vmem:[#allocation13 + $0x20] sm:$0xf]
    %v1562 = vld [vmem:[#allocation13 + $0x24] sm:$0xf]
    %v1563 = vld [vmem:[#allocation13 + $0x28] sm:$0xf]
    %v1564 = vld [vmem:[#allocation13 + $0x2c] sm:$0xf]
    %v1565 = vld [vmem:[#allocation13 + $0x30] sm:$0xf]
    %v1566 = vld [vmem:[#allocation13 + $0x34] sm:$0xf]
    %v1567 = vld [vmem:[#allocation13 + $0x38] sm:$0xf]
    %v1568 = vld [vmem:[#allocation13 + $0x3c] sm:$0xf]
    %v1569 = vld [vmem:[#allocation13 + $0x40] sm:$0xf]
    %v1570 = vld [vmem:[#allocation13 + $0x44] sm:$0xf]
    %v1571 = vld [vmem:[#allocation13 + $0x48] sm:$0xf]
    %v1572 = vld [vmem:[#allocation13 + $0x4c] sm:$0xf]
    %v1573 = vld [vmem:[#allocation13 + $0x50] sm:$0xf]
    %v1574 = vld [vmem:[#allocation13 + $0x54] sm:$0xf]
    %v1575 = vld [vmem:[#allocation13 + $0x58] sm:$0xf]
    %v1576 = vld [vmem:[#allocation13 + $0x5c] sm:$0xf]
    %v1577 = vld [vmem:[#allocation13 + $0x60] sm:$0xf]
    %v1578 = vld [vmem:[#allocation13 + $0x64] sm:$0xf]
    %v1579 = vld [vmem:[#allocation13 + $0x68] sm:$0xf]
    %v1580 = vld [vmem:[#allocation13 + $0x6c] sm:$0xf]
    %v1581 = vld [vmem:[#allocation13 + $0x70] sm:$0xf]
    %v1582 = vld [vmem:[#allocation13 + $0x74] sm:$0xf]
    %v1583 = vld [vmem:[#allocation13 + $0x78] sm:$0xf]
    %v1584 = vld [vmem:[#allocation13 + $0x7c] sm:$0xf]
    %v1617 = vunpack.c.l.b16 %v1553
    %v1618 = vunpack.c.l.b16 %v1554
    %v1619 = vunpack.c.l.b16 %v1555
    %v1620 = vunpack.c.l.b16 %v1556
    %v1621 = vunpack.c.l.b16 %v1557
    %v1622 = vunpack.c.l.b16 %v1558
    %v1623 = vunpack.c.l.b16 %v1559
    %v1624 = vunpack.c.l.b16 %v1560
    %v1625 = vunpack.c.l.b16 %v1561
    %v1626 = vunpack.c.l.b16 %v1562
    %v1627 = vunpack.c.l.b16 %v1563
    %v1628 = vunpack.c.l.b16 %v1564
    %v1629 = vunpack.c.l.b16 %v1565
    %v1630 = vunpack.c.l.b16 %v1566
    %v1631 = vunpack.c.l.b16 %v1567
    %v1632 = vunpack.c.l.b16 %v1568
    %v1633 = vunpack.c.l.b16 %v1569
    %v1634 = vunpack.c.l.b16 %v1570
    %v1635 = vunpack.c.l.b16 %v1571
    %v1636 = vunpack.c.l.b16 %v1572
    %v1637 = vunpack.c.l.b16 %v1573
    %v1638 = vunpack.c.l.b16 %v1574
    %v1639 = vunpack.c.l.b16 %v1575
    %v1640 = vunpack.c.l.b16 %v1576
    %v1641 = vunpack.c.l.b16 %v1577
    %v1642 = vunpack.c.l.b16 %v1578
    %v1643 = vunpack.c.l.b16 %v1579
    %v1644 = vunpack.c.l.b16 %v1580
    %v1645 = vunpack.c.l.b16 %v1581
    %v1646 = vunpack.c.l.b16 %v1582
    %v1647 = vunpack.c.l.b16 %v1583
    %v1648 = vunpack.c.l.b16 %v1584
    %v1649 = vpack.c.b16 %v1618, %v1617
    %v1650 = vpack.c.b16 %v1620, %v1619
    %v1651 = vpack.c.b16 %v1622, %v1621
    %v1652 = vpack.c.b16 %v1624, %v1623
    %v1653 = vpack.c.b16 %v1626, %v1625
    %v1654 = vpack.c.b16 %v1628, %v1627
    %v1655 = vpack.c.b16 %v1630, %v1629
    %v1656 = vpack.c.b16 %v1632, %v1631
    %v1657 = vpack.c.b16 %v1634, %v1633
    %v1658 = vpack.c.b16 %v1636, %v1635
    %v1659 = vpack.c.b16 %v1638, %v1637
    %v1660 = vpack.c.b16 %v1640, %v1639
    %v1661 = vpack.c.b16 %v1642, %v1641
    %v1662 = vpack.c.b16 %v1644, %v1643
    %v1663 = vpack.c.b16 %v1646, %v1645
    %v1664 = vpack.c.b16 %v1648, %v1647
    %1681 = vmatprep.subr.bf16.mxu0 0
    %1682 = vmatpush1.bf16.msra.mxu0 %v1649
    %1683 = vmatprep.subr.bf16.mxu0 0
    %1684 = vmatpush1.bf16.msra.mxu0 %v1650
    %1685 = vmatprep.subr.bf16.mxu0 0
    %1686 = vmatpush1.bf16.msra.mxu0 %v1651
    %1687 = vmatprep.subr.bf16.mxu0 0
    %1688 = vmatpush1.bf16.msra.mxu0 %v1652
    %1689 = vmatprep.subr.bf16.mxu0 0
    %1690 = vmatpush1.bf16.msra.mxu0 %v1653
    %1691 = vmatprep.subr.bf16.mxu0 0
    %1692 = vmatpush1.bf16.msra.mxu0 %v1654
    %1693 = vmatprep.subr.bf16.mxu0 0
    %1694 = vmatpush1.bf16.msra.mxu0 %v1655
    %1695 = vmatprep.subr.bf16.mxu0 0
    %1696 = vmatpush1.bf16.msra.mxu0 %v1656
    %1697 = vmatprep.subr.bf16.mxu0 0
    %1698 = vmatpush1.bf16.msra.mxu0 %v1657
    %1699 = vmatprep.subr.bf16.mxu0 0
    %1700 = vmatpush1.bf16.msra.mxu0 %v1658
    %1701 = vmatprep.subr.bf16.mxu0 0
    %1702 = vmatpush1.bf16.msra.mxu0 %v1659
    %1703 = vmatprep.subr.bf16.mxu0 0
    %1704 = vmatpush1.bf16.msra.mxu0 %v1660
    %1705 = vmatprep.subr.bf16.mxu0 0
    %1706 = vmatpush1.bf16.msra.mxu0 %v1661
    %1707 = vmatprep.subr.bf16.mxu0 0
    %1708 = vmatpush1.bf16.msra.mxu0 %v1662
    %1709 = vmatprep.subr.bf16.mxu0 0
    %1710 = vmatpush1.bf16.msra.mxu0 %v1663
    %1711 = vmatprep.subr.bf16.mxu0 0
    %1712 = vmatpush1.bf16.msra.mxu0 %v1664
    %1713 = vmatprep.mubr.bf16.mxu0 %v1552
    %1714 = vmatmul.mubr.bf16.gmra.mrb[0].mxu0 %v1551
    %v1715 = vpop.f32.mrb[0].mxu0
    %v1716 = vadd.f32 0.0, %v1715
    %v1717 = vpop.f32.mrb[0].mxu0
    %v1718 = vpop.f32.mrb[0].mxu0
    %v1719 = vadd.f32 0.0, %v1718
    %v1720 = vpop.f32.mrb[0].mxu0
    %1721 = vdwg.mxu0
    %v1722 = vpack.c.bf16 %v1719, %v1716
    %v1723 = vld [vmem:[%s12] sm:$0x1]
    %v1725 = vpack.i.b16 %v1723, %v1723
    %v1727 = vlaneseq
    %v1728 = vshrl.u32 %v1727, 7
    %v1729 = vsub.s32 0, %v1728
    %v1730 = vrot.slane %v1725, %v1729
    %v1731 = vadd.bf16 %v1722, %v1730
    %v1732 = vmax.bf16 %v1731, 0
    %v1733 = vld [vmem:[#allocation14] sm:$0xf]
    %v1734 = vld [vmem:[#allocation14 + $0x4] sm:$0xf]
    %v1735 = vld [vmem:[#allocation14 + $0x8] sm:$0xf]
    %v1736 = vld [vmem:[#allocation14 + $0xc] sm:$0xf]
    %v1737 = vld [vmem:[#allocation14 + $0x10] sm:$0xf]
    %v1738 = vld [vmem:[#allocation14 + $0x14] sm:$0xf]
    %v1739 = vld [vmem:[#allocation14 + $0x18] sm:$0xf]
    %v1740 = vld [vmem:[#allocation14 + $0x1c] sm:$0xf]
    %v1741 = vld [vmem:[#allocation14 + $0x20] sm:$0xf]
    %v1742 = vld [vmem:[#allocation14 + $0x24] sm:$0xf]
    %v1743 = vld [vmem:[#allocation14 + $0x28] sm:$0xf]
    %v1744 = vld [vmem:[#allocation14 + $0x2c] sm:$0xf]
    %v1745 = vld [vmem:[#allocation14 + $0x30] sm:$0xf]
    %v1746 = vld [vmem:[#allocation14 + $0x34] sm:$0xf]
    %v1747 = vld [vmem:[#allocation14 + $0x38] sm:$0xf]
    %v1748 = vld [vmem:[#allocation14 + $0x3c] sm:$0xf]
    %v1749 = vld [vmem:[%s14] sm:$0x1]
    %v1751 = vlaneseq
    %v1752 = vshrl.u32 %v1751, 7
    %v1753 = vsub.s32 0, %v1752
    %v1754 = vrot.slane %v1749, %v1753
    %v1772 = vunpack.c.l.b16 %v1733
    %v1773 = vunpack.c.l.b16 %v1734
    %v1774 = vunpack.c.l.b16 %v1735
    %v1775 = vunpack.c.l.b16 %v1736
    %v1776 = vunpack.c.l.b16 %v1737
    %v1777 = vunpack.c.l.b16 %v1738
    %v1778 = vunpack.c.l.b16 %v1739
    %v1779 = vunpack.c.l.b16 %v1740
    %v1780 = vunpack.c.l.b16 %v1741
    %v1781 = vunpack.c.l.b16 %v1742
    %v1782 = vunpack.c.l.b16 %v1743
    %v1783 = vunpack.c.l.b16 %v1744
    %v1784 = vunpack.c.l.b16 %v1745
    %v1785 = vunpack.c.l.b16 %v1746
    %v1786 = vunpack.c.l.b16 %v1747
    %v1787 = vunpack.c.l.b16 %v1748
    %v1788 = vpack.c.b16 %v1773, %v1772
    %v1789 = vpack.c.b16 %v1775, %v1774
    %v1790 = vpack.c.b16 %v1777, %v1776
    %v1791 = vpack.c.b16 %v1779, %v1778
    %v1792 = vpack.c.b16 %v1781, %v1780
    %v1793 = vpack.c.b16 %v1783, %v1782
    %v1794 = vpack.c.b16 %v1785, %v1784
    %v1795 = vpack.c.b16 %v1787, %v1786
    %1804 = vmatprep.subr.bf16.mxu0 0
    %1805 = vmatpush1.bf16.msra.mxu0 %v1788
    %1806 = vmatprep.subr.bf16.mxu0 0
    %1807 = vmatpush1.bf16.msra.mxu0 %v1789
    %1808 = vmatprep.subr.bf16.mxu0 0
    %1809 = vmatpush1.bf16.msra.mxu0 %v1790
    %1810 = vmatprep.subr.bf16.mxu0 0
    %1811 = vmatpush1.bf16.msra.mxu0 %v1791
    %1812 = vmatprep.subr.bf16.mxu0 0
    %1813 = vmatpush1.bf16.msra.mxu0 %v1792
    %1814 = vmatprep.subr.bf16.mxu0 0
    %1815 = vmatpush1.bf16.msra.mxu0 %v1793
    %1816 = vmatprep.subr.bf16.mxu0 0
    %1817 = vmatpush1.bf16.msra.mxu0 %v1794
    %1818 = vmatprep.subr.bf16.mxu0 0
    %1819 = vmatpush1.bf16.msra.mxu0 %v1795
    %1820 = vmatprep.subr.bf16.mxu0 0
    %1821 = vmatpush1.bf16.msra.mxu0 0
    %1822 = vmatprep.subr.bf16.mxu0 0
    %1823 = vmatpush1.bf16.msra.mxu0 0
    %1824 = vmatprep.subr.bf16.mxu0 0
    %1825 = vmatpush1.bf16.msra.mxu0 0
    %1826 = vmatprep.subr.bf16.mxu0 0
    %1827 = vmatpush1.bf16.msra.mxu0 0
    %1828 = vmatprep.subr.bf16.mxu0 0
    %1829 = vmatpush1.bf16.msra.mxu0 0
    %1830 = vmatprep.subr.bf16.mxu0 0
    %1831 = vmatpush1.bf16.msra.mxu0 0
    %1832 = vmatprep.subr.bf16.mxu0 0
    %1833 = vmatpush1.bf16.msra.mxu0 0
    %1834 = vmatprep.subr.bf16.mxu0 0
    %1835 = vmatpush1.bf16.msra.mxu0 0
    %1836 = vmatprep.mubr.bf16.mxu0 0
    %1837 = vmatmul.mubr.bf16.gmra.mrb[0].mxu0 %v1732
    %v1838 = vpop.f32.mrb[0].mxu0
    %v1839 = vadd.f32 %v1754, %v1838
    %v1840 = vpop.f32.mrb[0].mxu0
    %v1841 = vpop.f32.mrb[0].mxu0
    %v1842 = vadd.f32 %v1754, %v1841
    %v1843 = vpop.f32.mrb[0].mxu0
    %1844 = vdwg.mxu0
    %1845 = vst [vmem:[#allocation16] sm:$0xff] %v1839
    %1846 = vst [vmem:[#allocation16 + $0x8] sm:$0xff] %v1842
    // Predicated region
    $region94: #{tpu_custom_call.1} parent=1 // pred_check
      _
    $region95: #{tpu_custom_call.1} parent=1 // pred_check_branch
      %1848 = sbr.rel (0) target = $region97
    $region96: #{tpu_custom_call.1} parent=1 // pred_region
      %s1850 = ssub.s32 256, 256
      %1851 = vsyncadd [#allocation4], %s1850
      %s1852 = sshll.u32 [#allocation16], 4
      %s1853 = int_to_ptr.vmem [resolvable:$true] %s1852
      %1858 = dma.vmem_to_hbm [thread:$0]  %s1853, 256, %s15, [#allocation4], 128, 128, 8
    $region97: #{tpu_custom_call.1} parent=1 // pred_fallthru
      _
    // Predicated region
    $region98: #{tpu_custom_call.1} parent=1 // pred_check
      _
    $region99: #{tpu_custom_call.1} parent=1 // pred_check_branch
      %1860 = sbr.rel (0) target = $region101
    $region100: #{tpu_custom_call.1} parent=1 // pred_region
      %1861 = dma.done [#allocation4], 256
    $region101: #{tpu_custom_call.1} parent=1 // pred_fallthru
      _
    %1862 = vsyncpa [#allocation3], 1
    %1863 = vsyncpa [#allocation6], 1
    %1864 = vsyncpa [#allocation9], 1
    %1865 = vsyncpa [#allocation12], 1
    %1866 = vsyncpa [#allocation15], 1
    %1867 = vsyncpa [#allocation4], 1

</llo_original>
